<compile_context>
chip_gen: v7x
topology: tpu7x:2x2x1
jax: 0.10.0
libtpu: 0.0.40
codegen_flags: <defaults>
</compile_context>

<pallas_src>
import functools

import jax
import jax.numpy as jnp
from jax.experimental import pallas as pl
from jax.experimental.pallas import tpu as pltpu

# ----------------------------- configuration ---------------------------------
BATCH = 2
CHANNELS = 4
IMG = 16
PATCH = 4
NUM_PATCHES = (IMG // PATCH) * (IMG // PATCH)      # 16 tokens per image
EMBED = 32
NUM_HEADS = 4
HEAD_CH = EMBED // NUM_HEADS                       # 8
DEPTH = 2
MLP_HIDDEN = 4 * EMBED                             # 128 (lane dense)
NUM_KEEP = 8                                       # context tokens kept per image
HEAD_DIM = 16                                      # ContextEncoder.head out dim (unused in fwd)
PATCH_FEATS = CHANNELS * PATCH * PATCH             # 64
LN_EPS = 1e-5                                      # PyTorch nn.LayerNorm default
DTYPE = jnp.float32


# ------------------------------ fused Pallas kernel ---------------------------
def _fused_encoder_kernel(pk_ref, pos_ref, pw_ref, pb_ref,
                          ln1_g_ref, ln1_b_ref, qkv_w_ref, qkv_b_ref,
                          proj_w_ref, proj_b_ref, ln2_g_ref, ln2_b_ref,
                          fc1_w_ref, fc1_b_ref, fc2_w_ref, fc2_b_ref,
                          lnf_g_ref, lnf_b_ref, out_ref,
                          *, depth, num_heads, eps):
    """One grid step == one image: patch-embed -> transformer -> final LN."""
    f32 = jnp.float32

    def layer_norm(x, g, b):
        mu = jnp.mean(x, axis=-1, keepdims=True)
        var = jnp.mean(jnp.square(x - mu), axis=-1, keepdims=True)
        return (x - mu) * jax.lax.rsqrt(var + eps) * g + b

    def gelu(x):
        # tanh-approx GELU.
        # TODO(synk): PyTorch nn.GELU default is the exact erf form (~1e-3 elementwise diff).
        c = jnp.float32(0.7978845608028654)  # sqrt(2/pi)
        return 0.5 * x * (1.0 + jnp.tanh(c * (x + 0.044715 * x * x * x)))

    # ---- patch embedding (Conv2d as matmul over pre-gathered patches) + pos ----
    patches = pk_ref[0].astype(f32)                                   # (K, C*P*P)
    x = jnp.dot(patches, pw_ref[...].astype(f32), preferred_element_type=f32)
    x = x + pb_ref[...].astype(f32) + pos_ref[0].astype(f32)          # (K, D)

    t, d = x.shape
    dh = d // num_heads
    scale = jnp.float32(1.0 / (dh ** 0.5))

    for l in range(depth):                      # static unroll, DEPTH is small
        # ----------------------- multi-head self attention -----------------------
        h = layer_norm(x, ln1_g_ref[l].astype(f32), ln1_b_ref[l].astype(f32))
        qkv = jnp.dot(h, qkv_w_ref[l].astype(f32), preferred_element_type=f32)
        qkv = qkv + qkv_b_ref[l].astype(f32)                          # (K, 3D)
        q = qkv[:, 0 * d:1 * d]
        k = qkv[:, 1 * d:2 * d]
        v = qkv[:, 2 * d:3 * d]

        head_outs = []
        for hh in range(num_heads):             # static unroll over heads
            lo, hi = hh * dh, (hh + 1) * dh
            qh, kh, vh = q[:, lo:hi], k[:, lo:hi], v[:, lo:hi]
            # scores = qh @ kh^T (contract last dims of both; no explicit transpose)
            s = jax.lax.dot_general(qh, kh, (((1,), (1,)), ((), ())),
                                    preferred_element_type=f32) * scale   # (T, T)
            s = s - jnp.max(s, axis=-1, keepdims=True)
            p = jnp.exp(s)
            p = p * pl.reciprocal(jnp.sum(p, axis=-1, keepdims=True), approx=True)
            head_outs.append(jnp.dot(p, vh, preferred_element_type=f32))  # (T, Dh)
        attn = jnp.concatenate(head_outs, axis=-1)                    # (T, D)

        attn = jnp.dot(attn, proj_w_ref[l].astype(f32),
                       preferred_element_type=f32) + proj_b_ref[l].astype(f32)
        x = x + attn                                                  # residual

        # --------------------------------- MLP -----------------------------------
        h = layer_norm(x, ln2_g_ref[l].astype(f32), ln2_b_ref[l].astype(f32))
        h = jnp.dot(h, fc1_w_ref[l].astype(f32), preferred_element_type=f32)
        h = gelu(h + fc1_b_ref[l].astype(f32))                        # (T, MLP_HIDDEN)
        h = jnp.dot(h, fc2_w_ref[l].astype(f32),
                    preferred_element_type=f32) + fc2_b_ref[l].astype(f32)
        x = x + h                                                     # residual

    x = layer_norm(x, lnf_g_ref[...].astype(f32), lnf_b_ref[...].astype(f32))
    out_ref[0, :, :] = x.astype(out_ref.dtype)


def _replicated(shape):
    """BlockSpec for a weight that is identical for every grid step (DMA'd once)."""
    rank = len(shape)
    return pl.BlockSpec(shape, lambda i, _r=rank: (0,) * _r)


# --------------------------- parameter construction ---------------------------
def init_params(key):
    def nrm(k, shape, std=0.02):
        return (jax.random.normal(k, shape, jnp.float32) * std).astype(DTYPE)

    keys = jax.random.split(key, 8 + DEPTH)
    p = {
        # VisionEmbedding: Conv2d(C, EMBED, kernel=PATCH, stride=PATCH) as a matmul
        "patch_w": nrm(keys[0], (PATCH_FEATS, EMBED)),
        "patch_b": jnp.zeros((EMBED,), DTYPE),
        "pos_embed": nrm(keys[1], (1, NUM_PATCHES, EMBED)),
        # final transformer norm
        "lnf_g": jnp.ones((EMBED,), DTYPE),
        "lnf_b": jnp.zeros((EMBED,), DTYPE),
        # ContextEncoder.head (defined in __init__, unused in forward)
        "head_w": nrm(keys[2], (EMBED, HEAD_DIM)),
        "head_b": jnp.zeros((HEAD_DIM,), DTYPE),
        "blocks": [],
    }
    for d in range(DEPTH):
        bk = jax.random.split(keys[8 + d], 4)
        p["blocks"].append({
            "ln1_g": jnp.ones((EMBED,), DTYPE),
            "ln1_b": jnp.zeros((EMBED,), DTYPE),
            "qkv_w": nrm(bk[0], (EMBED, 3 * EMBED)),
            "qkv_b": jnp.zeros((3 * EMBED,), DTYPE),
            "proj_w": nrm(bk[1], (EMBED, EMBED)),
            "proj_b": jnp.zeros((EMBED,), DTYPE),
            "ln2_g": jnp.ones((EMBED,), DTYPE),
            "ln2_b": jnp.zeros((EMBED,), DTYPE),
            "fc1_w": nrm(bk[2], (EMBED, MLP_HIDDEN)),
            "fc1_b": jnp.zeros((MLP_HIDDEN,), DTYPE),
            "fc2_w": nrm(bk[3], (MLP_HIDDEN, EMBED)),
            "fc2_b": jnp.zeros((EMBED,), DTYPE),
        })
    return p


def pack_params(p):
    """Stack per-block params along a leading depth axis; reshape vectors to 2D."""
    def stk_m(name):   # matrices -> (DEPTH, a, b)
        return jnp.stack([blk[name] for blk in p["blocks"]], axis=0)

    def stk_v(name):   # vectors  -> (DEPTH, 1, dim)
        return jnp.stack([blk[name] for blk in p["blocks"]], axis=0)[:, None, :]

    return {
        "patch_w": p["patch_w"],
        "patch_b": p["patch_b"].reshape(1, EMBED),
        "pos_embed": p["pos_embed"].reshape(NUM_PATCHES, EMBED),
        "lnf_g": p["lnf_g"].reshape(1, EMBED),
        "lnf_b": p["lnf_b"].reshape(1, EMBED),
        "ln1_g": stk_v("ln1_g"), "ln1_b": stk_v("ln1_b"),
        "qkv_w": stk_m("qkv_w"), "qkv_b": stk_v("qkv_b"),
        "proj_w": stk_m("proj_w"), "proj_b": stk_v("proj_b"),
        "ln2_g": stk_v("ln2_g"), "ln2_b": stk_v("ln2_b"),
        "fc1_w": stk_m("fc1_w"), "fc1_b": stk_v("fc1_b"),
        "fc2_w": stk_m("fc2_w"), "fc2_b": stk_v("fc2_b"),
        # NOTE: head_w / head_b are intentionally not packed — unused in forward().
    }


# ------------------------------- glue helpers ---------------------------------
def unfold_patches(signal, patch):
    """(B, C, H, W) NCHW -> (B, N, C*P*P) with (C, ph, pw) flattening (Conv2d order)."""
    b, c, h, w = signal.shape
    gh, gw = h // patch, w // patch
    x = signal.reshape(b, c, gh, patch, gw, patch)
    x = x.transpose(0, 2, 4, 1, 3, 5)
    return x.reshape(b, gh * gw, c * patch * patch)


def _chunk(x, n, axis=0):
    """torch.chunk semantics (ceil-sized chunks)."""
    size = x.shape[axis]
    step = -(-size // n)
    return [jax.lax.slice_in_dim(x, i, min(i + step, size), axis=axis)
            for i in range(0, size, step)]


# ------------------------------- model forward --------------------------------
@functools.partial(jax.jit, static_argnames=("num_splits",))
def context_encoder_forward(signal, context_mask, packed, num_splits=1):
    """Mirror of ContextEncoder.forward: returns (context_list, context_mask_list)."""
    b = signal.shape[0]
    idx = context_mask.astype(jnp.int32)                              # (B, K)

    # Gather-then-embed (== embed-then-gather for per-token ops): only the kept
    # context tokens ever enter the fused kernel.
    patches = unfold_patches(signal, PATCH)                           # (B, N, CPP)
    patches_kept = jnp.take_along_axis(patches, idx[..., None], axis=1)   # (B, K, CPP)
    pos_kept = jnp.take(packed["pos_embed"], idx, axis=0)             # (B, K, D)

    k_tok = patches_kept.shape[1]
    cpp = patches_kept.shape[2]
    d = packed["patch_w"].shape[1]
    mlp = packed["fc1_w"].shape[2]
    depth = packed["qkv_w"].shape[0]

    kernel = functools.partial(_fused_encoder_kernel,
                               depth=depth, num_heads=NUM_HEADS, eps=LN_EPS)

    ctx = pl.pallas_call(
        kernel,
        out_shape=jax.ShapeDtypeStruct((b, k_tok, d), signal.dtype),
        grid=(b,),
        in_specs=[
            pl.BlockSpec((1, k_tok, cpp), lambda i: (i, 0, 0)),   # kept patches
            pl.BlockSpec((1, k_tok, d), lambda i: (i, 0, 0)),     # kept pos embed
            _replicated((cpp, d)),                                # patch_w
            _replicated((1, d)),                                  # patch_b
            _replicated((depth, 1, d)),                           # ln1_g
            _replicated((depth, 1, d)),                           # ln1_b
            _replicated((depth, d, 3 * d)),                       # qkv_w
            _replicated((depth, 1, 3 * d)),                       # qkv_b
            _replicated((depth, d, d)),                           # proj_w
            _replicated((depth, 1, d)),                           # proj_b
            _replicated((depth, 1, d)),                           # ln2_g
            _replicated((depth, 1, d)),                           # ln2_b
            _replicated((depth, d, mlp)),                         # fc1_w
            _replicated((depth, 1, mlp)),                         # fc1_b
            _replicated((depth, mlp, d)),                         # fc2_w
            _replicated((depth, 1, d)),                           # fc2_b
            _replicated((1, d)),                                  # lnf_g
            _replicated((1, d)),                                  # lnf_b
        ],
        out_specs=pl.BlockSpec((1, k_tok, d), lambda i: (i, 0, 0)),
        compiler_params=pltpu.CompilerParams(
            dimension_semantics=("parallel",)),                   # v7x: 2 TCs
    )(patches_kept, pos_kept,
      packed["patch_w"], packed["patch_b"],
      packed["ln1_g"], packed["ln1_b"], packed["qkv_w"], packed["qkv_b"],
      packed["proj_w"], packed["proj_b"], packed["ln2_g"], packed["ln2_b"],
      packed["fc1_w"], packed["fc1_b"], packed["fc2_w"], packed["fc2_b"],
      packed["lnf_g"], packed["lnf_b"])

    # NOTE: self.head is constructed but never applied in the reference forward().
    context_list = _chunk(ctx, num_splits)
    context_mask_list = _chunk(context_mask, num_splits)
    return context_list, context_mask_list


# --------------------------- pure-JAX reference (for sanity) -------------------
def reference_forward(signal, context_mask, p):
    HIGH = jax.lax.Precision.HIGHEST
    patches = unfold_patches(signal, PATCH)
    x = jnp.einsum("bnc,cd->bnd", patches, p["patch_w"], precision=HIGH) + p["patch_b"]
    x = x + p["pos_embed"]
    idx = context_mask.astype(jnp.int32)
    x = jnp.take_along_axis(x, idx[..., None], axis=1)                # (B, K, D)

    def ln(z, g, bb):
        mu = z.mean(-1, keepdims=True)
        var = ((z - mu) ** 2).mean(-1, keepdims=True)
        return (z - mu) * jax.lax.rsqrt(var + LN_EPS) * g + bb

    def gelu(z):
        c = 0.7978845608028654
        return 0.5 * z * (1.0 + jnp.tanh(c * (z + 0.044715 * z ** 3)))

    for blk in p["blocks"]:
        h = ln(x, blk["ln1_g"], blk["ln1_b"])
        qkv = jnp.einsum("btd,de->bte", h, blk["qkv_w"], precision=HIGH) + blk["qkv_b"]
        q, k, v = jnp.split(qkv, 3, axis=-1)
        b, t, d = q.shape
        sp = lambda z: z.reshape(b, t, NUM_HEADS, HEAD_CH).transpose(0, 2, 1, 3)
        qh, kh, vh = sp(q), sp(k), sp(v)
        s = jnp.einsum("bhqd,bhkd->bhqk", qh, kh, precision=HIGH) / (HEAD_CH ** 0.5)
        pr = jax.nn.softmax(s, axis=-1)
        o = jnp.einsum("bhqk,bhkd->bhqd", pr, vh, precision=HIGH)
        o = o.transpose(0, 2, 1, 3).reshape(b, t, d)
        x = x + jnp.einsum("btd,de->bte", o, blk["proj_w"], precision=HIGH) + blk["proj_b"]
        h = ln(x, blk["ln2_g"], blk["ln2_b"])
        h = gelu(jnp.einsum("btd,de->bte", h, blk["fc1_w"], precision=HIGH) + blk["fc1_b"])
        h = jnp.einsum("bte,ed->btd", h, blk["fc2_w"], precision=HIGH) + blk["fc2_b"]
        x = x + h
    return ln(x, p["lnf_g"], p["lnf_b"])


# ----------------------------------- main --------------------------------------
if __name__ == "__main__":
    key = jax.random.PRNGKey(0)
    k_params, k_sig, k_mask = jax.random.split(key, 3)

    params = init_params(k_params)
    packed = pack_params(params)

    signal = jax.random.normal(k_sig, (BATCH, CHANNELS, IMG, IMG), DTYPE)  # NCHW
    perm = jax.vmap(lambda k: jax.random.permutation(k, NUM_PATCHES))(
        jax.random.split(k_mask, BATCH))
    context_mask = jnp.sort(perm[:, :NUM_KEEP], axis=1).astype(jnp.int32)

    context_list, context_mask_list = context_encoder_forward(
        signal, context_mask, packed, num_splits=2)

    for c in context_list:
        jax.block_until_ready(c)
    for m in context_mask_list:
        jax.block_until_ready(m)

    # sanity: each chunk -> (chunk_batch, NUM_KEEP, EMBED), finite, matches reference
    assert all(c.shape == (BATCH // 2, NUM_KEEP, EMBED) for c in context_list)
    assert all(bool(jnp.all(jnp.isfinite(c))) for c in context_list)
    ctx_full = jnp.concatenate(context_list, axis=0)
    ref = reference_forward(signal, context_mask, params)
    assert float(jnp.max(jnp.abs(ctx_full - ref))) < 5e-2
    print("KERNEL_OK")
</pallas_src>

<mosaic_0001>
module attributes {stable_mosaic.version = 11 : i64} {
  func.func @_fused_encoder_kernel(%arg0: i32, %arg1: memref<1x8x64xf32, #tpu.memory_space<vmem>>, %arg2: memref<1x8x32xf32, #tpu.memory_space<vmem>>, %arg3: memref<64x32xf32, #tpu.memory_space<vmem>>, %arg4: memref<1x32xf32, #tpu.memory_space<vmem>>, %arg5: memref<2x1x32xf32, #tpu.memory_space<vmem>>, %arg6: memref<2x1x32xf32, #tpu.memory_space<vmem>>, %arg7: memref<2x32x96xf32, #tpu.memory_space<vmem>>, %arg8: memref<2x1x96xf32, #tpu.memory_space<vmem>>, %arg9: memref<2x32x32xf32, #tpu.memory_space<vmem>>, %arg10: memref<2x1x32xf32, #tpu.memory_space<vmem>>, %arg11: memref<2x1x32xf32, #tpu.memory_space<vmem>>, %arg12: memref<2x1x32xf32, #tpu.memory_space<vmem>>, %arg13: memref<2x32x128xf32, #tpu.memory_space<vmem>>, %arg14: memref<2x1x128xf32, #tpu.memory_space<vmem>>, %arg15: memref<2x128x32xf32, #tpu.memory_space<vmem>>, %arg16: memref<2x1x32xf32, #tpu.memory_space<vmem>>, %arg17: memref<1x32xf32, #tpu.memory_space<vmem>>, %arg18: memref<1x32xf32, #tpu.memory_space<vmem>>, %arg19: memref<1x8x32xf32, #tpu.memory_space<vmem>>) attributes {dimension_semantics = [#tpu.dimension_semantics<parallel>], iteration_bounds = array<i64: 2>, scalar_prefetch = 0 : i64, scratch_operands = 0 : i64, tpu.core_type = #tpu.core_type<tc>, window_params = [{transform_indices = @transform_0, window_bounds = array<i64: 1, 8, 64>}, {transform_indices = @transform_1, window_bounds = array<i64: 1, 8, 32>}, {pipeline_mode = #tpu.pipeline_mode<synchronous>, transform_indices = @transform_2, window_bounds = array<i64: 64, 32>}, {pipeline_mode = #tpu.pipeline_mode<synchronous>, transform_indices = @transform_3, window_bounds = array<i64: 1, 32>}, {pipeline_mode = #tpu.pipeline_mode<synchronous>, transform_indices = @transform_4, window_bounds = array<i64: 2, 1, 32>}, {pipeline_mode = #tpu.pipeline_mode<synchronous>, transform_indices = @transform_5, window_bounds = array<i64: 2, 1, 32>}, {pipeline_mode = #tpu.pipeline_mode<synchronous>, transform_indices = @transform_6, window_bounds = array<i64: 2, 32, 96>}, {pipeline_mode = #tpu.pipeline_mode<synchronous>, transform_indices = @transform_7, window_bounds = array<i64: 2, 1, 96>}, {pipeline_mode = #tpu.pipeline_mode<synchronous>, transform_indices = @transform_8, window_bounds = array<i64: 2, 32, 32>}, {pipeline_mode = #tpu.pipeline_mode<synchronous>, transform_indices = @transform_9, window_bounds = array<i64: 2, 1, 32>}, {pipeline_mode = #tpu.pipeline_mode<synchronous>, transform_indices = @transform_10, window_bounds = array<i64: 2, 1, 32>}, {pipeline_mode = #tpu.pipeline_mode<synchronous>, transform_indices = @transform_11, window_bounds = array<i64: 2, 1, 32>}, {pipeline_mode = #tpu.pipeline_mode<synchronous>, transform_indices = @transform_12, window_bounds = array<i64: 2, 32, 128>}, {pipeline_mode = #tpu.pipeline_mode<synchronous>, transform_indices = @transform_13, window_bounds = array<i64: 2, 1, 128>}, {pipeline_mode = #tpu.pipeline_mode<synchronous>, transform_indices = @transform_14, window_bounds = array<i64: 2, 128, 32>}, {pipeline_mode = #tpu.pipeline_mode<synchronous>, transform_indices = @transform_15, window_bounds = array<i64: 2, 1, 32>}, {pipeline_mode = #tpu.pipeline_mode<synchronous>, transform_indices = @transform_16, window_bounds = array<i64: 1, 32>}, {pipeline_mode = #tpu.pipeline_mode<synchronous>, transform_indices = @transform_17, window_bounds = array<i64: 1, 32>}, {transform_indices = @transform_18, window_bounds = array<i64: 1, 8, 32>}]} {
    %c0 = arith.constant 0 : index
    %c0_0 = arith.constant 0 : index
    %c0_1 = arith.constant 0 : index
    %0 = vector.load %arg1[%c0, %c0_0, %c0_1] : memref<1x8x64xf32, #tpu.memory_space<vmem>>, vector<1x8x64xf32>
    %1 = vector.shape_cast %0 : vector<1x8x64xf32> to vector<8x64xf32>
    %c0_2 = arith.constant 0 : index
    %c0_3 = arith.constant 0 : index
    %2 = vector.load %arg3[%c0_2, %c0_3] : memref<64x32xf32, #tpu.memory_space<vmem>>, vector<64x32xf32>
    %cst = arith.constant dense<0.000000e+00> : vector<8x32xf32>
    %3 = tpu.matmul %1, %2, %cst {dimension_numbers = #tpu.dot_dimension_numbers<[1], [0], [0], [1], [0, 0, 1, 1], [], []>} : vector<8x64xf32>, vector<64x32xf32>, vector<8x32xf32> -> vector<8x32xf32>
    %c0_4 = arith.constant 0 : index
    %c0_5 = arith.constant 0 : index
    %4 = vector.load %arg4[%c0_4, %c0_5] : memref<1x32xf32, #tpu.memory_space<vmem>>, vector<1x32xf32>
    %5 = vector.broadcast %4 : vector<1x32xf32> to vector<8x32xf32>
    %6 = arith.addf %3, %5 : vector<8x32xf32>
    %c0_6 = arith.constant 0 : index
    %c0_7 = arith.constant 0 : index
    %c0_8 = arith.constant 0 : index
    %7 = vector.load %arg2[%c0_6, %c0_7, %c0_8] : memref<1x8x32xf32, #tpu.memory_space<vmem>>, vector<1x8x32xf32>
    %8 = vector.shape_cast %7 : vector<1x8x32xf32> to vector<8x32xf32>
    %9 = arith.addf %6, %8 : vector<8x32xf32>
    %c0_9 = arith.constant 0 : index
    %c0_10 = arith.constant 0 : index
    %c0_11 = arith.constant 0 : index
    %10 = vector.load %arg5[%c0_9, %c0_10, %c0_11] : memref<2x1x32xf32, #tpu.memory_space<vmem>>, vector<1x1x32xf32>
    %11 = vector.shape_cast %10 : vector<1x1x32xf32> to vector<1x32xf32>
    %c0_12 = arith.constant 0 : index
    %c0_13 = arith.constant 0 : index
    %c0_14 = arith.constant 0 : index
    %12 = vector.load %arg6[%c0_12, %c0_13, %c0_14] : memref<2x1x32xf32, #tpu.memory_space<vmem>>, vector<1x1x32xf32>
    %13 = vector.shape_cast %12 : vector<1x1x32xf32> to vector<1x32xf32>
    %cst_15 = arith.constant dense<0.000000e+00> : vector<8xf32>
    %14 = vector.multi_reduction <add>, %9, %cst_15 [1] : vector<8x32xf32> to vector<8xf32>
    %15 = vector.shape_cast %14 : vector<8xf32> to vector<8x1xf32>
    %cst_16 = arith.constant 3.200000e+01 : f32
    %16 = vector.broadcast %cst_16 : f32 to vector<8x1xf32>
    %17 = arith.divf %15, %16 : vector<8x1xf32>
    %18 = vector.broadcast %17 : vector<8x1xf32> to vector<8x32xf32>
    %19 = arith.subf %9, %18 : vector<8x32xf32>
    %20 = arith.mulf %19, %19 : vector<8x32xf32>
    %cst_17 = arith.constant dense<0.000000e+00> : vector<8xf32>
    %21 = vector.multi_reduction <add>, %20, %cst_17 [1] : vector<8x32xf32> to vector<8xf32>
    %22 = vector.shape_cast %21 : vector<8xf32> to vector<8x1xf32>
    %cst_18 = arith.constant 3.200000e+01 : f32
    %23 = vector.broadcast %cst_18 : f32 to vector<8x1xf32>
    %24 = arith.divf %22, %23 : vector<8x1xf32>
    %25 = vector.broadcast %17 : vector<8x1xf32> to vector<8x32xf32>
    %26 = arith.subf %9, %25 : vector<8x32xf32>
    %cst_19 = arith.constant 9.99999974E-6 : f32
    %27 = vector.broadcast %cst_19 : f32 to vector<8x1xf32>
    %28 = arith.addf %24, %27 : vector<8x1xf32>
    %29 = math.rsqrt %28 : vector<8x1xf32>
    %30 = vector.broadcast %29 : vector<8x1xf32> to vector<8x32xf32>
    %31 = arith.mulf %26, %30 : vector<8x32xf32>
    %32 = vector.broadcast %11 : vector<1x32xf32> to vector<8x32xf32>
    %33 = arith.mulf %31, %32 : vector<8x32xf32>
    %34 = vector.broadcast %13 : vector<1x32xf32> to vector<8x32xf32>
    %35 = arith.addf %33, %34 : vector<8x32xf32>
    %c0_20 = arith.constant 0 : index
    %c0_21 = arith.constant 0 : index
    %c0_22 = arith.constant 0 : index
    %36 = vector.load %arg7[%c0_20, %c0_21, %c0_22] : memref<2x32x96xf32, #tpu.memory_space<vmem>>, vector<1x32x96xf32>
    %37 = vector.shape_cast %36 : vector<1x32x96xf32> to vector<32x96xf32>
    %cst_23 = arith.constant dense<0.000000e+00> : vector<8x96xf32>
    %38 = tpu.matmul %35, %37, %cst_23 {dimension_numbers = #tpu.dot_dimension_numbers<[1], [0], [0], [1], [0, 0, 1, 1], [], []>} : vector<8x32xf32>, vector<32x96xf32>, vector<8x96xf32> -> vector<8x96xf32>
    %c0_24 = arith.constant 0 : index
    %c0_25 = arith.constant 0 : index
    %c0_26 = arith.constant 0 : index
    %39 = vector.load %arg8[%c0_24, %c0_25, %c0_26] : memref<2x1x96xf32, #tpu.memory_space<vmem>>, vector<1x1x96xf32>
    %40 = vector.shape_cast %39 : vector<1x1x96xf32> to vector<1x96xf32>
    %41 = vector.broadcast %40 : vector<1x96xf32> to vector<8x96xf32>
    %42 = arith.addf %38, %41 : vector<8x96xf32>
    %43 = vector.extract_strided_slice %42 {offsets = [0, 0], sizes = [8, 32], strides = [1, 1]} : vector<8x96xf32> to vector<8x32xf32>
    %44 = vector.extract_strided_slice %42 {offsets = [0, 32], sizes = [8, 32], strides = [1, 1]} : vector<8x96xf32> to vector<8x32xf32>
    %45 = vector.extract_strided_slice %42 {offsets = [0, 64], sizes = [8, 32], strides = [1, 1]} : vector<8x96xf32> to vector<8x32xf32>
    %46 = vector.extract_strided_slice %43 {offsets = [0, 0], sizes = [8, 8], strides = [1, 1]} : vector<8x32xf32> to vector<8x8xf32>
    %47 = vector.extract_strided_slice %44 {offsets = [0, 0], sizes = [8, 8], strides = [1, 1]} : vector<8x32xf32> to vector<8x8xf32>
    %48 = vector.extract_strided_slice %45 {offsets = [0, 0], sizes = [8, 8], strides = [1, 1]} : vector<8x32xf32> to vector<8x8xf32>
    %cst_27 = arith.constant dense<0.000000e+00> : vector<8x8xf32>
    %49 = tpu.matmul %46, %47, %cst_27 {dimension_numbers = #tpu.dot_dimension_numbers<[1], [1], [0], [0], [0, 0, 1, 0], [], []>} : vector<8x8xf32>, vector<8x8xf32>, vector<8x8xf32> -> vector<8x8xf32>
    %cst_28 = arith.constant 0.353553385 : f32
    %50 = vector.broadcast %cst_28 : f32 to vector<8x8xf32>
    %51 = arith.mulf %49, %50 : vector<8x8xf32>
    %cst_29 = arith.constant dense<0xFF800000> : vector<8xf32>
    %52 = vector.multi_reduction <maximumf>, %51, %cst_29 [1] : vector<8x8xf32> to vector<8xf32>
    %53 = vector.shape_cast %52 : vector<8xf32> to vector<8x1xf32>
    %54 = vector.broadcast %53 : vector<8x1xf32> to vector<8x8xf32>
    %55 = arith.subf %51, %54 : vector<8x8xf32>
    %56 = math.exp %55 : vector<8x8xf32>
    %cst_30 = arith.constant dense<0.000000e+00> : vector<8xf32>
    %57 = vector.multi_reduction <add>, %56, %cst_30 [1] : vector<8x8xf32> to vector<8xf32>
    %58 = vector.shape_cast %57 : vector<8xf32> to vector<8x1xf32>
    %59 = tpu.reciprocal %58 {approx = true} : vector<8x1xf32> -> vector<8x1xf32>
    %60 = vector.broadcast %59 : vector<8x1xf32> to vector<8x8xf32>
    %61 = arith.mulf %56, %60 : vector<8x8xf32>
    %cst_31 = arith.constant dense<0.000000e+00> : vector<8x8xf32>
    %62 = tpu.matmul %61, %48, %cst_31 {dimension_numbers = #tpu.dot_dimension_numbers<[1], [0], [0], [1], [0, 0, 1, 1], [], []>} : vector<8x8xf32>, vector<8x8xf32>, vector<8x8xf32> -> vector<8x8xf32>
    %63 = vector.extract_strided_slice %43 {offsets = [0, 8], sizes = [8, 8], strides = [1, 1]} : vector<8x32xf32> to vector<8x8xf32>
    %64 = vector.extract_strided_slice %44 {offsets = [0, 8], sizes = [8, 8], strides = [1, 1]} : vector<8x32xf32> to vector<8x8xf32>
    %65 = vector.extract_strided_slice %45 {offsets = [0, 8], sizes = [8, 8], strides = [1, 1]} : vector<8x32xf32> to vector<8x8xf32>
    %cst_32 = arith.constant dense<0.000000e+00> : vector<8x8xf32>
    %66 = tpu.matmul %63, %64, %cst_32 {dimension_numbers = #tpu.dot_dimension_numbers<[1], [1], [0], [0], [0, 0, 1, 0], [], []>} : vector<8x8xf32>, vector<8x8xf32>, vector<8x8xf32> -> vector<8x8xf32>
    %cst_33 = arith.constant 0.353553385 : f32
    %67 = vector.broadcast %cst_33 : f32 to vector<8x8xf32>
    %68 = arith.mulf %66, %67 : vector<8x8xf32>
    %cst_34 = arith.constant dense<0xFF800000> : vector<8xf32>
    %69 = vector.multi_reduction <maximumf>, %68, %cst_34 [1] : vector<8x8xf32> to vector<8xf32>
    %70 = vector.shape_cast %69 : vector<8xf32> to vector<8x1xf32>
    %71 = vector.broadcast %70 : vector<8x1xf32> to vector<8x8xf32>
    %72 = arith.subf %68, %71 : vector<8x8xf32>
    %73 = math.exp %72 : vector<8x8xf32>
    %cst_35 = arith.constant dense<0.000000e+00> : vector<8xf32>
    %74 = vector.multi_reduction <add>, %73, %cst_35 [1] : vector<8x8xf32> to vector<8xf32>
    %75 = vector.shape_cast %74 : vector<8xf32> to vector<8x1xf32>
    %76 = tpu.reciprocal %75 {approx = true} : vector<8x1xf32> -> vector<8x1xf32>
    %77 = vector.broadcast %76 : vector<8x1xf32> to vector<8x8xf32>
    %78 = arith.mulf %73, %77 : vector<8x8xf32>
    %cst_36 = arith.constant dense<0.000000e+00> : vector<8x8xf32>
    %79 = tpu.matmul %78, %65, %cst_36 {dimension_numbers = #tpu.dot_dimension_numbers<[1], [0], [0], [1], [0, 0, 1, 1], [], []>} : vector<8x8xf32>, vector<8x8xf32>, vector<8x8xf32> -> vector<8x8xf32>
    %80 = vector.extract_strided_slice %43 {offsets = [0, 16], sizes = [8, 8], strides = [1, 1]} : vector<8x32xf32> to vector<8x8xf32>
    %81 = vector.extract_strided_slice %44 {offsets = [0, 16], sizes = [8, 8], strides = [1, 1]} : vector<8x32xf32> to vector<8x8xf32>
    %82 = vector.extract_strided_slice %45 {offsets = [0, 16], sizes = [8, 8], strides = [1, 1]} : vector<8x32xf32> to vector<8x8xf32>
    %cst_37 = arith.constant dense<0.000000e+00> : vector<8x8xf32>
    %83 = tpu.matmul %80, %81, %cst_37 {dimension_numbers = #tpu.dot_dimension_numbers<[1], [1], [0], [0], [0, 0, 1, 0], [], []>} : vector<8x8xf32>, vector<8x8xf32>, vector<8x8xf32> -> vector<8x8xf32>
    %cst_38 = arith.constant 0.353553385 : f32
    %84 = vector.broadcast %cst_38 : f32 to vector<8x8xf32>
    %85 = arith.mulf %83, %84 : vector<8x8xf32>
    %cst_39 = arith.constant dense<0xFF800000> : vector<8xf32>
    %86 = vector.multi_reduction <maximumf>, %85, %cst_39 [1] : vector<8x8xf32> to vector<8xf32>
    %87 = vector.shape_cast %86 : vector<8xf32> to vector<8x1xf32>
    %88 = vector.broadcast %87 : vector<8x1xf32> to vector<8x8xf32>
    %89 = arith.subf %85, %88 : vector<8x8xf32>
    %90 = math.exp %89 : vector<8x8xf32>
    %cst_40 = arith.constant dense<0.000000e+00> : vector<8xf32>
    %91 = vector.multi_reduction <add>, %90, %cst_40 [1] : vector<8x8xf32> to vector<8xf32>
    %92 = vector.shape_cast %91 : vector<8xf32> to vector<8x1xf32>
    %93 = tpu.reciprocal %92 {approx = true} : vector<8x1xf32> -> vector<8x1xf32>
    %94 = vector.broadcast %93 : vector<8x1xf32> to vector<8x8xf32>
    %95 = arith.mulf %90, %94 : vector<8x8xf32>
    %cst_41 = arith.constant dense<0.000000e+00> : vector<8x8xf32>
    %96 = tpu.matmul %95, %82, %cst_41 {dimension_numbers = #tpu.dot_dimension_numbers<[1], [0], [0], [1], [0, 0, 1, 1], [], []>} : vector<8x8xf32>, vector<8x8xf32>, vector<8x8xf32> -> vector<8x8xf32>
    %97 = vector.extract_strided_slice %43 {offsets = [0, 24], sizes = [8, 8], strides = [1, 1]} : vector<8x32xf32> to vector<8x8xf32>
    %98 = vector.extract_strided_slice %44 {offsets = [0, 24], sizes = [8, 8], strides = [1, 1]} : vector<8x32xf32> to vector<8x8xf32>
    %99 = vector.extract_strided_slice %45 {offsets = [0, 24], sizes = [8, 8], strides = [1, 1]} : vector<8x32xf32> to vector<8x8xf32>
    %cst_42 = arith.constant dense<0.000000e+00> : vector<8x8xf32>
    %100 = tpu.matmul %97, %98, %cst_42 {dimension_numbers = #tpu.dot_dimension_numbers<[1], [1], [0], [0], [0, 0, 1, 0], [], []>} : vector<8x8xf32>, vector<8x8xf32>, vector<8x8xf32> -> vector<8x8xf32>
    %cst_43 = arith.constant 0.353553385 : f32
    %101 = vector.broadcast %cst_43 : f32 to vector<8x8xf32>
    %102 = arith.mulf %100, %101 : vector<8x8xf32>
    %cst_44 = arith.constant dense<0xFF800000> : vector<8xf32>
    %103 = vector.multi_reduction <maximumf>, %102, %cst_44 [1] : vector<8x8xf32> to vector<8xf32>
    %104 = vector.shape_cast %103 : vector<8xf32> to vector<8x1xf32>
    %105 = vector.broadcast %104 : vector<8x1xf32> to vector<8x8xf32>
    %106 = arith.subf %102, %105 : vector<8x8xf32>
    %107 = math.exp %106 : vector<8x8xf32>
    %cst_45 = arith.constant dense<0.000000e+00> : vector<8xf32>
    %108 = vector.multi_reduction <add>, %107, %cst_45 [1] : vector<8x8xf32> to vector<8xf32>
    %109 = vector.shape_cast %108 : vector<8xf32> to vector<8x1xf32>
    %110 = tpu.reciprocal %109 {approx = true} : vector<8x1xf32> -> vector<8x1xf32>
    %111 = vector.broadcast %110 : vector<8x1xf32> to vector<8x8xf32>
    %112 = arith.mulf %107, %111 : vector<8x8xf32>
    %cst_46 = arith.constant dense<0.000000e+00> : vector<8x8xf32>
    %113 = tpu.matmul %112, %99, %cst_46 {dimension_numbers = #tpu.dot_dimension_numbers<[1], [0], [0], [1], [0, 0, 1, 1], [], []>} : vector<8x8xf32>, vector<8x8xf32>, vector<8x8xf32> -> vector<8x8xf32>
    %114 = tpu.concatenate %62, %79, %96, %113 in 1 : vector<8x8xf32>, vector<8x8xf32>, vector<8x8xf32>, vector<8x8xf32> -> vector<8x32xf32>
    %c0_47 = arith.constant 0 : index
    %c0_48 = arith.constant 0 : index
    %c0_49 = arith.constant 0 : index
    %115 = vector.load %arg9[%c0_47, %c0_48, %c0_49] : memref<2x32x32xf32, #tpu.memory_space<vmem>>, vector<1x32x32xf32>
    %116 = vector.shape_cast %115 : vector<1x32x32xf32> to vector<32x32xf32>
    %cst_50 = arith.constant dense<0.000000e+00> : vector<8x32xf32>
    %117 = tpu.matmul %114, %116, %cst_50 {dimension_numbers = #tpu.dot_dimension_numbers<[1], [0], [0], [1], [0, 0, 1, 1], [], []>} : vector<8x32xf32>, vector<32x32xf32>, vector<8x32xf32> -> vector<8x32xf32>
    %c0_51 = arith.constant 0 : index
    %c0_52 = arith.constant 0 : index
    %c0_53 = arith.constant 0 : index
    %118 = vector.load %arg10[%c0_51, %c0_52, %c0_53] : memref<2x1x32xf32, #tpu.memory_space<vmem>>, vector<1x1x32xf32>
    %119 = vector.shape_cast %118 : vector<1x1x32xf32> to vector<1x32xf32>
    %120 = vector.broadcast %119 : vector<1x32xf32> to vector<8x32xf32>
    %121 = arith.addf %117, %120 : vector<8x32xf32>
    %122 = arith.addf %9, %121 : vector<8x32xf32>
    %c0_54 = arith.constant 0 : index
    %c0_55 = arith.constant 0 : index
    %c0_56 = arith.constant 0 : index
    %123 = vector.load %arg11[%c0_54, %c0_55, %c0_56] : memref<2x1x32xf32, #tpu.memory_space<vmem>>, vector<1x1x32xf32>
    %124 = vector.shape_cast %123 : vector<1x1x32xf32> to vector<1x32xf32>
    %c0_57 = arith.constant 0 : index
    %c0_58 = arith.constant 0 : index
    %c0_59 = arith.constant 0 : index
    %125 = vector.load %arg12[%c0_57, %c0_58, %c0_59] : memref<2x1x32xf32, #tpu.memory_space<vmem>>, vector<1x1x32xf32>
    %126 = vector.shape_cast %125 : vector<1x1x32xf32> to vector<1x32xf32>
    %cst_60 = arith.constant dense<0.000000e+00> : vector<8xf32>
    %127 = vector.multi_reduction <add>, %122, %cst_60 [1] : vector<8x32xf32> to vector<8xf32>
    %128 = vector.shape_cast %127 : vector<8xf32> to vector<8x1xf32>
    %cst_61 = arith.constant 3.200000e+01 : f32
    %129 = vector.broadcast %cst_61 : f32 to vector<8x1xf32>
    %130 = arith.divf %128, %129 : vector<8x1xf32>
    %131 = vector.broadcast %130 : vector<8x1xf32> to vector<8x32xf32>
    %132 = arith.subf %122, %131 : vector<8x32xf32>
    %133 = arith.mulf %132, %132 : vector<8x32xf32>
    %cst_62 = arith.constant dense<0.000000e+00> : vector<8xf32>
    %134 = vector.multi_reduction <add>, %133, %cst_62 [1] : vector<8x32xf32> to vector<8xf32>
    %135 = vector.shape_cast %134 : vector<8xf32> to vector<8x1xf32>
    %cst_63 = arith.constant 3.200000e+01 : f32
    %136 = vector.broadcast %cst_63 : f32 to vector<8x1xf32>
    %137 = arith.divf %135, %136 : vector<8x1xf32>
    %138 = vector.broadcast %130 : vector<8x1xf32> to vector<8x32xf32>
    %139 = arith.subf %122, %138 : vector<8x32xf32>
    %cst_64 = arith.constant 9.99999974E-6 : f32
    %140 = vector.broadcast %cst_64 : f32 to vector<8x1xf32>
    %141 = arith.addf %137, %140 : vector<8x1xf32>
    %142 = math.rsqrt %141 : vector<8x1xf32>
    %143 = vector.broadcast %142 : vector<8x1xf32> to vector<8x32xf32>
    %144 = arith.mulf %139, %143 : vector<8x32xf32>
    %145 = vector.broadcast %124 : vector<1x32xf32> to vector<8x32xf32>
    %146 = arith.mulf %144, %145 : vector<8x32xf32>
    %147 = vector.broadcast %126 : vector<1x32xf32> to vector<8x32xf32>
    %148 = arith.addf %146, %147 : vector<8x32xf32>
    %c0_65 = arith.constant 0 : index
    %c0_66 = arith.constant 0 : index
    %c0_67 = arith.constant 0 : index
    %149 = vector.load %arg13[%c0_65, %c0_66, %c0_67] : memref<2x32x128xf32, #tpu.memory_space<vmem>>, vector<1x32x128xf32>
    %150 = vector.shape_cast %149 : vector<1x32x128xf32> to vector<32x128xf32>
    %cst_68 = arith.constant dense<0.000000e+00> : vector<8x128xf32>
    %151 = tpu.matmul %148, %150, %cst_68 {dimension_numbers = #tpu.dot_dimension_numbers<[1], [0], [0], [1], [0, 0, 1, 1], [], []>} : vector<8x32xf32>, vector<32x128xf32>, vector<8x128xf32> -> vector<8x128xf32>
    %c0_69 = arith.constant 0 : index
    %c0_70 = arith.constant 0 : index
    %c0_71 = arith.constant 0 : index
    %152 = vector.load %arg14[%c0_69, %c0_70, %c0_71] : memref<2x1x128xf32, #tpu.memory_space<vmem>>, vector<1x1x128xf32>
    %153 = vector.shape_cast %152 : vector<1x1x128xf32> to vector<1x128xf32>
    %154 = vector.broadcast %153 : vector<1x128xf32> to vector<8x128xf32>
    %155 = arith.addf %151, %154 : vector<8x128xf32>
    %cst_72 = arith.constant 5.000000e-01 : f32
    %156 = vector.broadcast %cst_72 : f32 to vector<8x128xf32>
    %157 = arith.mulf %156, %155 : vector<8x128xf32>
    %cst_73 = arith.constant 4.471500e-02 : f32
    %158 = vector.broadcast %cst_73 : f32 to vector<8x128xf32>
    %159 = arith.mulf %158, %155 : vector<8x128xf32>
    %160 = arith.mulf %159, %155 : vector<8x128xf32>
    %161 = arith.mulf %160, %155 : vector<8x128xf32>
    %162 = arith.addf %155, %161 : vector<8x128xf32>
    %cst_74 = arith.constant 0.797884583 : f32
    %163 = vector.broadcast %cst_74 : f32 to vector<8x128xf32>
    %164 = arith.mulf %163, %162 : vector<8x128xf32>
    %165 = math.tanh %164 : vector<8x128xf32>
    %cst_75 = arith.constant 1.000000e+00 : f32
    %166 = vector.broadcast %cst_75 : f32 to vector<8x128xf32>
    %167 = arith.addf %166, %165 : vector<8x128xf32>
    %168 = arith.mulf %157, %167 : vector<8x128xf32>
    %c0_76 = arith.constant 0 : index
    %c0_77 = arith.constant 0 : index
    %c0_78 = arith.constant 0 : index
    %169 = vector.load %arg15[%c0_76, %c0_77, %c0_78] : memref<2x128x32xf32, #tpu.memory_space<vmem>>, vector<1x128x32xf32>
    %170 = vector.shape_cast %169 : vector<1x128x32xf32> to vector<128x32xf32>
    %cst_79 = arith.constant dense<0.000000e+00> : vector<8x32xf32>
    %171 = tpu.matmul %168, %170, %cst_79 {dimension_numbers = #tpu.dot_dimension_numbers<[1], [0], [0], [1], [0, 0, 1, 1], [], []>} : vector<8x128xf32>, vector<128x32xf32>, vector<8x32xf32> -> vector<8x32xf32>
    %c0_80 = arith.constant 0 : index
    %c0_81 = arith.constant 0 : index
    %c0_82 = arith.constant 0 : index
    %172 = vector.load %arg16[%c0_80, %c0_81, %c0_82] : memref<2x1x32xf32, #tpu.memory_space<vmem>>, vector<1x1x32xf32>
    %173 = vector.shape_cast %172 : vector<1x1x32xf32> to vector<1x32xf32>
    %174 = vector.broadcast %173 : vector<1x32xf32> to vector<8x32xf32>
    %175 = arith.addf %171, %174 : vector<8x32xf32>
    %176 = arith.addf %122, %175 : vector<8x32xf32>
    %c1 = arith.constant 1 : index
    %c0_83 = arith.constant 0 : index
    %c0_84 = arith.constant 0 : index
    %177 = vector.load %arg5[%c1, %c0_83, %c0_84] : memref<2x1x32xf32, #tpu.memory_space<vmem>>, vector<1x1x32xf32>
    %178 = vector.shape_cast %177 : vector<1x1x32xf32> to vector<1x32xf32>
    %c1_85 = arith.constant 1 : index
    %c0_86 = arith.constant 0 : index
    %c0_87 = arith.constant 0 : index
    %179 = vector.load %arg6[%c1_85, %c0_86, %c0_87] : memref<2x1x32xf32, #tpu.memory_space<vmem>>, vector<1x1x32xf32>
    %180 = vector.shape_cast %179 : vector<1x1x32xf32> to vector<1x32xf32>
    %cst_88 = arith.constant dense<0.000000e+00> : vector<8xf32>
    %181 = vector.multi_reduction <add>, %176, %cst_88 [1] : vector<8x32xf32> to vector<8xf32>
    %182 = vector.shape_cast %181 : vector<8xf32> to vector<8x1xf32>
    %cst_89 = arith.constant 3.200000e+01 : f32
    %183 = vector.broadcast %cst_89 : f32 to vector<8x1xf32>
    %184 = arith.divf %182, %183 : vector<8x1xf32>
    %185 = vector.broadcast %184 : vector<8x1xf32> to vector<8x32xf32>
    %186 = arith.subf %176, %185 : vector<8x32xf32>
    %187 = arith.mulf %186, %186 : vector<8x32xf32>
    %cst_90 = arith.constant dense<0.000000e+00> : vector<8xf32>
    %188 = vector.multi_reduction <add>, %187, %cst_90 [1] : vector<8x32xf32> to vector<8xf32>
    %189 = vector.shape_cast %188 : vector<8xf32> to vector<8x1xf32>
    %cst_91 = arith.constant 3.200000e+01 : f32
    %190 = vector.broadcast %cst_91 : f32 to vector<8x1xf32>
    %191 = arith.divf %189, %190 : vector<8x1xf32>
    %192 = vector.broadcast %184 : vector<8x1xf32> to vector<8x32xf32>
    %193 = arith.subf %176, %192 : vector<8x32xf32>
    %cst_92 = arith.constant 9.99999974E-6 : f32
    %194 = vector.broadcast %cst_92 : f32 to vector<8x1xf32>
    %195 = arith.addf %191, %194 : vector<8x1xf32>
    %196 = math.rsqrt %195 : vector<8x1xf32>
    %197 = vector.broadcast %196 : vector<8x1xf32> to vector<8x32xf32>
    %198 = arith.mulf %193, %197 : vector<8x32xf32>
    %199 = vector.broadcast %178 : vector<1x32xf32> to vector<8x32xf32>
    %200 = arith.mulf %198, %199 : vector<8x32xf32>
    %201 = vector.broadcast %180 : vector<1x32xf32> to vector<8x32xf32>
    %202 = arith.addf %200, %201 : vector<8x32xf32>
    %c1_93 = arith.constant 1 : index
    %c0_94 = arith.constant 0 : index
    %c0_95 = arith.constant 0 : index
    %203 = vector.load %arg7[%c1_93, %c0_94, %c0_95] : memref<2x32x96xf32, #tpu.memory_space<vmem>>, vector<1x32x96xf32>
    %204 = vector.shape_cast %203 : vector<1x32x96xf32> to vector<32x96xf32>
    %cst_96 = arith.constant dense<0.000000e+00> : vector<8x96xf32>
    %205 = tpu.matmul %202, %204, %cst_96 {dimension_numbers = #tpu.dot_dimension_numbers<[1], [0], [0], [1], [0, 0, 1, 1], [], []>} : vector<8x32xf32>, vector<32x96xf32>, vector<8x96xf32> -> vector<8x96xf32>
    %c1_97 = arith.constant 1 : index
    %c0_98 = arith.constant 0 : index
    %c0_99 = arith.constant 0 : index
    %206 = vector.load %arg8[%c1_97, %c0_98, %c0_99] : memref<2x1x96xf32, #tpu.memory_space<vmem>>, vector<1x1x96xf32>
    %207 = vector.shape_cast %206 : vector<1x1x96xf32> to vector<1x96xf32>
    %208 = vector.broadcast %207 : vector<1x96xf32> to vector<8x96xf32>
    %209 = arith.addf %205, %208 : vector<8x96xf32>
    %210 = vector.extract_strided_slice %209 {offsets = [0, 0], sizes = [8, 32], strides = [1, 1]} : vector<8x96xf32> to vector<8x32xf32>
    %211 = vector.extract_strided_slice %209 {offsets = [0, 32], sizes = [8, 32], strides = [1, 1]} : vector<8x96xf32> to vector<8x32xf32>
    %212 = vector.extract_strided_slice %209 {offsets = [0, 64], sizes = [8, 32], strides = [1, 1]} : vector<8x96xf32> to vector<8x32xf32>
    %213 = vector.extract_strided_slice %210 {offsets = [0, 0], sizes = [8, 8], strides = [1, 1]} : vector<8x32xf32> to vector<8x8xf32>
    %214 = vector.extract_strided_slice %211 {offsets = [0, 0], sizes = [8, 8], strides = [1, 1]} : vector<8x32xf32> to vector<8x8xf32>
    %215 = vector.extract_strided_slice %212 {offsets = [0, 0], sizes = [8, 8], strides = [1, 1]} : vector<8x32xf32> to vector<8x8xf32>
    %cst_100 = arith.constant dense<0.000000e+00> : vector<8x8xf32>
    %216 = tpu.matmul %213, %214, %cst_100 {dimension_numbers = #tpu.dot_dimension_numbers<[1], [1], [0], [0], [0, 0, 1, 0], [], []>} : vector<8x8xf32>, vector<8x8xf32>, vector<8x8xf32> -> vector<8x8xf32>
    %cst_101 = arith.constant 0.353553385 : f32
    %217 = vector.broadcast %cst_101 : f32 to vector<8x8xf32>
    %218 = arith.mulf %216, %217 : vector<8x8xf32>
    %cst_102 = arith.constant dense<0xFF800000> : vector<8xf32>
    %219 = vector.multi_reduction <maximumf>, %218, %cst_102 [1] : vector<8x8xf32> to vector<8xf32>
    %220 = vector.shape_cast %219 : vector<8xf32> to vector<8x1xf32>
    %221 = vector.broadcast %220 : vector<8x1xf32> to vector<8x8xf32>
    %222 = arith.subf %218, %221 : vector<8x8xf32>
    %223 = math.exp %222 : vector<8x8xf32>
    %cst_103 = arith.constant dense<0.000000e+00> : vector<8xf32>
    %224 = vector.multi_reduction <add>, %223, %cst_103 [1] : vector<8x8xf32> to vector<8xf32>
    %225 = vector.shape_cast %224 : vector<8xf32> to vector<8x1xf32>
    %226 = tpu.reciprocal %225 {approx = true} : vector<8x1xf32> -> vector<8x1xf32>
    %227 = vector.broadcast %226 : vector<8x1xf32> to vector<8x8xf32>
    %228 = arith.mulf %223, %227 : vector<8x8xf32>
    %cst_104 = arith.constant dense<0.000000e+00> : vector<8x8xf32>
    %229 = tpu.matmul %228, %215, %cst_104 {dimension_numbers = #tpu.dot_dimension_numbers<[1], [0], [0], [1], [0, 0, 1, 1], [], []>} : vector<8x8xf32>, vector<8x8xf32>, vector<8x8xf32> -> vector<8x8xf32>
    %230 = vector.extract_strided_slice %210 {offsets = [0, 8], sizes = [8, 8], strides = [1, 1]} : vector<8x32xf32> to vector<8x8xf32>
    %231 = vector.extract_strided_slice %211 {offsets = [0, 8], sizes = [8, 8], strides = [1, 1]} : vector<8x32xf32> to vector<8x8xf32>
    %232 = vector.extract_strided_slice %212 {offsets = [0, 8], sizes = [8, 8], strides = [1, 1]} : vector<8x32xf32> to vector<8x8xf32>
    %cst_105 = arith.constant dense<0.000000e+00> : vector<8x8xf32>
    %233 = tpu.matmul %230, %231, %cst_105 {dimension_numbers = #tpu.dot_dimension_numbers<[1], [1], [0], [0], [0, 0, 1, 0], [], []>} : vector<8x8xf32>, vector<8x8xf32>, vector<8x8xf32> -> vector<8x8xf32>
    %cst_106 = arith.constant 0.353553385 : f32
    %234 = vector.broadcast %cst_106 : f32 to vector<8x8xf32>
    %235 = arith.mulf %233, %234 : vector<8x8xf32>
    %cst_107 = arith.constant dense<0xFF800000> : vector<8xf32>
    %236 = vector.multi_reduction <maximumf>, %235, %cst_107 [1] : vector<8x8xf32> to vector<8xf32>
    %237 = vector.shape_cast %236 : vector<8xf32> to vector<8x1xf32>
    %238 = vector.broadcast %237 : vector<8x1xf32> to vector<8x8xf32>
    %239 = arith.subf %235, %238 : vector<8x8xf32>
    %240 = math.exp %239 : vector<8x8xf32>
    %cst_108 = arith.constant dense<0.000000e+00> : vector<8xf32>
    %241 = vector.multi_reduction <add>, %240, %cst_108 [1] : vector<8x8xf32> to vector<8xf32>
    %242 = vector.shape_cast %241 : vector<8xf32> to vector<8x1xf32>
    %243 = tpu.reciprocal %242 {approx = true} : vector<8x1xf32> -> vector<8x1xf32>
    %244 = vector.broadcast %243 : vector<8x1xf32> to vector<8x8xf32>
    %245 = arith.mulf %240, %244 : vector<8x8xf32>
    %cst_109 = arith.constant dense<0.000000e+00> : vector<8x8xf32>
    %246 = tpu.matmul %245, %232, %cst_109 {dimension_numbers = #tpu.dot_dimension_numbers<[1], [0], [0], [1], [0, 0, 1, 1], [], []>} : vector<8x8xf32>, vector<8x8xf32>, vector<8x8xf32> -> vector<8x8xf32>
    %247 = vector.extract_strided_slice %210 {offsets = [0, 16], sizes = [8, 8], strides = [1, 1]} : vector<8x32xf32> to vector<8x8xf32>
    %248 = vector.extract_strided_slice %211 {offsets = [0, 16], sizes = [8, 8], strides = [1, 1]} : vector<8x32xf32> to vector<8x8xf32>
    %249 = vector.extract_strided_slice %212 {offsets = [0, 16], sizes = [8, 8], strides = [1, 1]} : vector<8x32xf32> to vector<8x8xf32>
    %cst_110 = arith.constant dense<0.000000e+00> : vector<8x8xf32>
    %250 = tpu.matmul %247, %248, %cst_110 {dimension_numbers = #tpu.dot_dimension_numbers<[1], [1], [0], [0], [0, 0, 1, 0], [], []>} : vector<8x8xf32>, vector<8x8xf32>, vector<8x8xf32> -> vector<8x8xf32>
    %cst_111 = arith.constant 0.353553385 : f32
    %251 = vector.broadcast %cst_111 : f32 to vector<8x8xf32>
    %252 = arith.mulf %250, %251 : vector<8x8xf32>
    %cst_112 = arith.constant dense<0xFF800000> : vector<8xf32>
    %253 = vector.multi_reduction <maximumf>, %252, %cst_112 [1] : vector<8x8xf32> to vector<8xf32>
    %254 = vector.shape_cast %253 : vector<8xf32> to vector<8x1xf32>
    %255 = vector.broadcast %254 : vector<8x1xf32> to vector<8x8xf32>
    %256 = arith.subf %252, %255 : vector<8x8xf32>
    %257 = math.exp %256 : vector<8x8xf32>
    %cst_113 = arith.constant dense<0.000000e+00> : vector<8xf32>
    %258 = vector.multi_reduction <add>, %257, %cst_113 [1] : vector<8x8xf32> to vector<8xf32>
    %259 = vector.shape_cast %258 : vector<8xf32> to vector<8x1xf32>
    %260 = tpu.reciprocal %259 {approx = true} : vector<8x1xf32> -> vector<8x1xf32>
    %261 = vector.broadcast %260 : vector<8x1xf32> to vector<8x8xf32>
    %262 = arith.mulf %257, %261 : vector<8x8xf32>
    %cst_114 = arith.constant dense<0.000000e+00> : vector<8x8xf32>
    %263 = tpu.matmul %262, %249, %cst_114 {dimension_numbers = #tpu.dot_dimension_numbers<[1], [0], [0], [1], [0, 0, 1, 1], [], []>} : vector<8x8xf32>, vector<8x8xf32>, vector<8x8xf32> -> vector<8x8xf32>
    %264 = vector.extract_strided_slice %210 {offsets = [0, 24], sizes = [8, 8], strides = [1, 1]} : vector<8x32xf32> to vector<8x8xf32>
    %265 = vector.extract_strided_slice %211 {offsets = [0, 24], sizes = [8, 8], strides = [1, 1]} : vector<8x32xf32> to vector<8x8xf32>
    %266 = vector.extract_strided_slice %212 {offsets = [0, 24], sizes = [8, 8], strides = [1, 1]} : vector<8x32xf32> to vector<8x8xf32>
    %cst_115 = arith.constant dense<0.000000e+00> : vector<8x8xf32>
    %267 = tpu.matmul %264, %265, %cst_115 {dimension_numbers = #tpu.dot_dimension_numbers<[1], [1], [0], [0], [0, 0, 1, 0], [], []>} : vector<8x8xf32>, vector<8x8xf32>, vector<8x8xf32> -> vector<8x8xf32>
    %cst_116 = arith.constant 0.353553385 : f32
    %268 = vector.broadcast %cst_116 : f32 to vector<8x8xf32>
    %269 = arith.mulf %267, %268 : vector<8x8xf32>
    %cst_117 = arith.constant dense<0xFF800000> : vector<8xf32>
    %270 = vector.multi_reduction <maximumf>, %269, %cst_117 [1] : vector<8x8xf32> to vector<8xf32>
    %271 = vector.shape_cast %270 : vector<8xf32> to vector<8x1xf32>
    %272 = vector.broadcast %271 : vector<8x1xf32> to vector<8x8xf32>
    %273 = arith.subf %269, %272 : vector<8x8xf32>
    %274 = math.exp %273 : vector<8x8xf32>
    %cst_118 = arith.constant dense<0.000000e+00> : vector<8xf32>
    %275 = vector.multi_reduction <add>, %274, %cst_118 [1] : vector<8x8xf32> to vector<8xf32>
    %276 = vector.shape_cast %275 : vector<8xf32> to vector<8x1xf32>
    %277 = tpu.reciprocal %276 {approx = true} : vector<8x1xf32> -> vector<8x1xf32>
    %278 = vector.broadcast %277 : vector<8x1xf32> to vector<8x8xf32>
    %279 = arith.mulf %274, %278 : vector<8x8xf32>
    %cst_119 = arith.constant dense<0.000000e+00> : vector<8x8xf32>
    %280 = tpu.matmul %279, %266, %cst_119 {dimension_numbers = #tpu.dot_dimension_numbers<[1], [0], [0], [1], [0, 0, 1, 1], [], []>} : vector<8x8xf32>, vector<8x8xf32>, vector<8x8xf32> -> vector<8x8xf32>
    %281 = tpu.concatenate %229, %246, %263, %280 in 1 : vector<8x8xf32>, vector<8x8xf32>, vector<8x8xf32>, vector<8x8xf32> -> vector<8x32xf32>
    %c1_120 = arith.constant 1 : index
    %c0_121 = arith.constant 0 : index
    %c0_122 = arith.constant 0 : index
    %282 = vector.load %arg9[%c1_120, %c0_121, %c0_122] : memref<2x32x32xf32, #tpu.memory_space<vmem>>, vector<1x32x32xf32>
    %283 = vector.shape_cast %282 : vector<1x32x32xf32> to vector<32x32xf32>
    %cst_123 = arith.constant dense<0.000000e+00> : vector<8x32xf32>
    %284 = tpu.matmul %281, %283, %cst_123 {dimension_numbers = #tpu.dot_dimension_numbers<[1], [0], [0], [1], [0, 0, 1, 1], [], []>} : vector<8x32xf32>, vector<32x32xf32>, vector<8x32xf32> -> vector<8x32xf32>
    %c1_124 = arith.constant 1 : index
    %c0_125 = arith.constant 0 : index
    %c0_126 = arith.constant 0 : index
    %285 = vector.load %arg10[%c1_124, %c0_125, %c0_126] : memref<2x1x32xf32, #tpu.memory_space<vmem>>, vector<1x1x32xf32>
    %286 = vector.shape_cast %285 : vector<1x1x32xf32> to vector<1x32xf32>
    %287 = vector.broadcast %286 : vector<1x32xf32> to vector<8x32xf32>
    %288 = arith.addf %284, %287 : vector<8x32xf32>
    %289 = arith.addf %176, %288 : vector<8x32xf32>
    %c1_127 = arith.constant 1 : index
    %c0_128 = arith.constant 0 : index
    %c0_129 = arith.constant 0 : index
    %290 = vector.load %arg11[%c1_127, %c0_128, %c0_129] : memref<2x1x32xf32, #tpu.memory_space<vmem>>, vector<1x1x32xf32>
    %291 = vector.shape_cast %290 : vector<1x1x32xf32> to vector<1x32xf32>
    %c1_130 = arith.constant 1 : index
    %c0_131 = arith.constant 0 : index
    %c0_132 = arith.constant 0 : index
    %292 = vector.load %arg12[%c1_130, %c0_131, %c0_132] : memref<2x1x32xf32, #tpu.memory_space<vmem>>, vector<1x1x32xf32>
    %293 = vector.shape_cast %292 : vector<1x1x32xf32> to vector<1x32xf32>
    %cst_133 = arith.constant dense<0.000000e+00> : vector<8xf32>
    %294 = vector.multi_reduction <add>, %289, %cst_133 [1] : vector<8x32xf32> to vector<8xf32>
    %295 = vector.shape_cast %294 : vector<8xf32> to vector<8x1xf32>
    %cst_134 = arith.constant 3.200000e+01 : f32
    %296 = vector.broadcast %cst_134 : f32 to vector<8x1xf32>
    %297 = arith.divf %295, %296 : vector<8x1xf32>
    %298 = vector.broadcast %297 : vector<8x1xf32> to vector<8x32xf32>
    %299 = arith.subf %289, %298 : vector<8x32xf32>
    %300 = arith.mulf %299, %299 : vector<8x32xf32>
    %cst_135 = arith.constant dense<0.000000e+00> : vector<8xf32>
    %301 = vector.multi_reduction <add>, %300, %cst_135 [1] : vector<8x32xf32> to vector<8xf32>
    %302 = vector.shape_cast %301 : vector<8xf32> to vector<8x1xf32>
    %cst_136 = arith.constant 3.200000e+01 : f32
    %303 = vector.broadcast %cst_136 : f32 to vector<8x1xf32>
    %304 = arith.divf %302, %303 : vector<8x1xf32>
    %305 = vector.broadcast %297 : vector<8x1xf32> to vector<8x32xf32>
    %306 = arith.subf %289, %305 : vector<8x32xf32>
    %cst_137 = arith.constant 9.99999974E-6 : f32
    %307 = vector.broadcast %cst_137 : f32 to vector<8x1xf32>
    %308 = arith.addf %304, %307 : vector<8x1xf32>
    %309 = math.rsqrt %308 : vector<8x1xf32>
    %310 = vector.broadcast %309 : vector<8x1xf32> to vector<8x32xf32>
    %311 = arith.mulf %306, %310 : vector<8x32xf32>
    %312 = vector.broadcast %291 : vector<1x32xf32> to vector<8x32xf32>
    %313 = arith.mulf %311, %312 : vector<8x32xf32>
    %314 = vector.broadcast %293 : vector<1x32xf32> to vector<8x32xf32>
    %315 = arith.addf %313, %314 : vector<8x32xf32>
    %c1_138 = arith.constant 1 : index
    %c0_139 = arith.constant 0 : index
    %c0_140 = arith.constant 0 : index
    %316 = vector.load %arg13[%c1_138, %c0_139, %c0_140] : memref<2x32x128xf32, #tpu.memory_space<vmem>>, vector<1x32x128xf32>
    %317 = vector.shape_cast %316 : vector<1x32x128xf32> to vector<32x128xf32>
    %cst_141 = arith.constant dense<0.000000e+00> : vector<8x128xf32>
    %318 = tpu.matmul %315, %317, %cst_141 {dimension_numbers = #tpu.dot_dimension_numbers<[1], [0], [0], [1], [0, 0, 1, 1], [], []>} : vector<8x32xf32>, vector<32x128xf32>, vector<8x128xf32> -> vector<8x128xf32>
    %c1_142 = arith.constant 1 : index
    %c0_143 = arith.constant 0 : index
    %c0_144 = arith.constant 0 : index
    %319 = vector.load %arg14[%c1_142, %c0_143, %c0_144] : memref<2x1x128xf32, #tpu.memory_space<vmem>>, vector<1x1x128xf32>
    %320 = vector.shape_cast %319 : vector<1x1x128xf32> to vector<1x128xf32>
    %321 = vector.broadcast %320 : vector<1x128xf32> to vector<8x128xf32>
    %322 = arith.addf %318, %321 : vector<8x128xf32>
    %cst_145 = arith.constant 5.000000e-01 : f32
    %323 = vector.broadcast %cst_145 : f32 to vector<8x128xf32>
    %324 = arith.mulf %323, %322 : vector<8x128xf32>
    %cst_146 = arith.constant 4.471500e-02 : f32
    %325 = vector.broadcast %cst_146 : f32 to vector<8x128xf32>
    %326 = arith.mulf %325, %322 : vector<8x128xf32>
    %327 = arith.mulf %326, %322 : vector<8x128xf32>
    %328 = arith.mulf %327, %322 : vector<8x128xf32>
    %329 = arith.addf %322, %328 : vector<8x128xf32>
    %cst_147 = arith.constant 0.797884583 : f32
    %330 = vector.broadcast %cst_147 : f32 to vector<8x128xf32>
    %331 = arith.mulf %330, %329 : vector<8x128xf32>
    %332 = math.tanh %331 : vector<8x128xf32>
    %cst_148 = arith.constant 1.000000e+00 : f32
    %333 = vector.broadcast %cst_148 : f32 to vector<8x128xf32>
    %334 = arith.addf %333, %332 : vector<8x128xf32>
    %335 = arith.mulf %324, %334 : vector<8x128xf32>
    %c1_149 = arith.constant 1 : index
    %c0_150 = arith.constant 0 : index
    %c0_151 = arith.constant 0 : index
    %336 = vector.load %arg15[%c1_149, %c0_150, %c0_151] : memref<2x128x32xf32, #tpu.memory_space<vmem>>, vector<1x128x32xf32>
    %337 = vector.shape_cast %336 : vector<1x128x32xf32> to vector<128x32xf32>
    %cst_152 = arith.constant dense<0.000000e+00> : vector<8x32xf32>
    %338 = tpu.matmul %335, %337, %cst_152 {dimension_numbers = #tpu.dot_dimension_numbers<[1], [0], [0], [1], [0, 0, 1, 1], [], []>} : vector<8x128xf32>, vector<128x32xf32>, vector<8x32xf32> -> vector<8x32xf32>
    %c1_153 = arith.constant 1 : index
    %c0_154 = arith.constant 0 : index
    %c0_155 = arith.constant 0 : index
    %339 = vector.load %arg16[%c1_153, %c0_154, %c0_155] : memref<2x1x32xf32, #tpu.memory_space<vmem>>, vector<1x1x32xf32>
    %340 = vector.shape_cast %339 : vector<1x1x32xf32> to vector<1x32xf32>
    %341 = vector.broadcast %340 : vector<1x32xf32> to vector<8x32xf32>
    %342 = arith.addf %338, %341 : vector<8x32xf32>
    %343 = arith.addf %289, %342 : vector<8x32xf32>
    %c0_156 = arith.constant 0 : index
    %c0_157 = arith.constant 0 : index
    %344 = vector.load %arg17[%c0_156, %c0_157] : memref<1x32xf32, #tpu.memory_space<vmem>>, vector<1x32xf32>
    %c0_158 = arith.constant 0 : index
    %c0_159 = arith.constant 0 : index
    %345 = vector.load %arg18[%c0_158, %c0_159] : memref<1x32xf32, #tpu.memory_space<vmem>>, vector<1x32xf32>
    %cst_160 = arith.constant dense<0.000000e+00> : vector<8xf32>
    %346 = vector.multi_reduction <add>, %343, %cst_160 [1] : vector<8x32xf32> to vector<8xf32>
    %347 = vector.shape_cast %346 : vector<8xf32> to vector<8x1xf32>
    %cst_161 = arith.constant 3.200000e+01 : f32
    %348 = vector.broadcast %cst_161 : f32 to vector<8x1xf32>
    %349 = arith.divf %347, %348 : vector<8x1xf32>
    %350 = vector.broadcast %349 : vector<8x1xf32> to vector<8x32xf32>
    %351 = arith.subf %343, %350 : vector<8x32xf32>
    %352 = arith.mulf %351, %351 : vector<8x32xf32>
    %cst_162 = arith.constant dense<0.000000e+00> : vector<8xf32>
    %353 = vector.multi_reduction <add>, %352, %cst_162 [1] : vector<8x32xf32> to vector<8xf32>
    %354 = vector.shape_cast %353 : vector<8xf32> to vector<8x1xf32>
    %cst_163 = arith.constant 3.200000e+01 : f32
    %355 = vector.broadcast %cst_163 : f32 to vector<8x1xf32>
    %356 = arith.divf %354, %355 : vector<8x1xf32>
    %357 = vector.broadcast %349 : vector<8x1xf32> to vector<8x32xf32>
    %358 = arith.subf %343, %357 : vector<8x32xf32>
    %cst_164 = arith.constant 9.99999974E-6 : f32
    %359 = vector.broadcast %cst_164 : f32 to vector<8x1xf32>
    %360 = arith.addf %356, %359 : vector<8x1xf32>
    %361 = math.rsqrt %360 : vector<8x1xf32>
    %362 = vector.broadcast %361 : vector<8x1xf32> to vector<8x32xf32>
    %363 = arith.mulf %358, %362 : vector<8x32xf32>
    %364 = vector.broadcast %344 : vector<1x32xf32> to vector<8x32xf32>
    %365 = arith.mulf %363, %364 : vector<8x32xf32>
    %366 = vector.broadcast %345 : vector<1x32xf32> to vector<8x32xf32>
    %367 = arith.addf %365, %366 : vector<8x32xf32>
    %c0_165 = arith.constant 0 : index
    %c0_166 = arith.constant 0 : index
    %c0_167 = arith.constant 0 : index
    %368 = vector.load %arg19[%c0_165, %c0_166, %c0_167] : memref<1x8x32xf32, #tpu.memory_space<vmem>>, vector<1x8x32xf32>
    %369 = vector.shape_cast %368 : vector<1x8x32xf32> to vector<8x32xf32>
    %370 = vector.shape_cast %367 : vector<8x32xf32> to vector<1x8x32xf32>
    tpu.vector_store %arg19[%c0_165, %c0_166, %c0_167], %370 {strides = array<i32>} : memref<1x8x32xf32, #tpu.memory_space<vmem>>, vector<1x8x32xf32>,
    return
  }
  func.func @transform_0(%arg0: i32) -> (i32, i32, i32) {
    %c0_i32 = arith.constant 0 : i32
    %c0_i32_0 = arith.constant 0 : i32
    %c0_i32_1 = arith.constant 0 : i32
    return %arg0, %c0_i32, %c0_i32_0 : i32, i32, i32
  }
  func.func @transform_1(%arg0: i32) -> (i32, i32, i32) {
    %c0_i32 = arith.constant 0 : i32
    %c0_i32_0 = arith.constant 0 : i32
    %c0_i32_1 = arith.constant 0 : i32
    return %arg0, %c0_i32, %c0_i32_0 : i32, i32, i32
  }
  func.func @transform_2(%arg0: i32) -> (i32, i32) {
    %c0_i32 = arith.constant 0 : i32
    %c0_i32_0 = arith.constant 0 : i32
    %c0_i32_1 = arith.constant 0 : i32
    return %c0_i32, %c0_i32_0 : i32, i32
  }
  func.func @transform_3(%arg0: i32) -> (i32, i32) {
    %c0_i32 = arith.constant 0 : i32
    %c0_i32_0 = arith.constant 0 : i32
    %c0_i32_1 = arith.constant 0 : i32
    return %c0_i32, %c0_i32_0 : i32, i32
  }
  func.func @transform_4(%arg0: i32) -> (i32, i32, i32) {
    %c0_i32 = arith.constant 0 : i32
    %c0_i32_0 = arith.constant 0 : i32
    %c0_i32_1 = arith.constant 0 : i32
    %c0_i32_2 = arith.constant 0 : i32
    return %c0_i32, %c0_i32_0, %c0_i32_1 : i32, i32, i32
  }
  func.func @transform_5(%arg0: i32) -> (i32, i32, i32) {
    %c0_i32 = arith.constant 0 : i32
    %c0_i32_0 = arith.constant 0 : i32
    %c0_i32_1 = arith.constant 0 : i32
    %c0_i32_2 = arith.constant 0 : i32
    return %c0_i32, %c0_i32_0, %c0_i32_1 : i32, i32, i32
  }
  func.func @transform_6(%arg0: i32) -> (i32, i32, i32) {
    %c0_i32 = arith.constant 0 : i32
    %c0_i32_0 = arith.constant 0 : i32
    %c0_i32_1 = arith.constant 0 : i32
    %c0_i32_2 = arith.constant 0 : i32
    return %c0_i32, %c0_i32_0, %c0_i32_1 : i32, i32, i32
  }
  func.func @transform_7(%arg0: i32) -> (i32, i32, i32) {
    %c0_i32 = arith.constant 0 : i32
    %c0_i32_0 = arith.constant 0 : i32
    %c0_i32_1 = arith.constant 0 : i32
    %c0_i32_2 = arith.constant 0 : i32
    return %c0_i32, %c0_i32_0, %c0_i32_1 : i32, i32, i32
  }
  func.func @transform_8(%arg0: i32) -> (i32, i32, i32) {
    %c0_i32 = arith.constant 0 : i32
    %c0_i32_0 = arith.constant 0 : i32
    %c0_i32_1 = arith.constant 0 : i32
    %c0_i32_2 = arith.constant 0 : i32
    return %c0_i32, %c0_i32_0, %c0_i32_1 : i32, i32, i32
  }
  func.func @transform_9(%arg0: i32) -> (i32, i32, i32) {
    %c0_i32 = arith.constant 0 : i32
    %c0_i32_0 = arith.constant 0 : i32
    %c0_i32_1 = arith.constant 0 : i32
    %c0_i32_2 = arith.constant 0 : i32
    return %c0_i32, %c0_i32_0, %c0_i32_1 : i32, i32, i32
  }
  func.func @transform_10(%arg0: i32) -> (i32, i32, i32) {
    %c0_i32 = arith.constant 0 : i32
    %c0_i32_0 = arith.constant 0 : i32
    %c0_i32_1 = arith.constant 0 : i32
    %c0_i32_2 = arith.constant 0 : i32
    return %c0_i32, %c0_i32_0, %c0_i32_1 : i32, i32, i32
  }
  func.func @transform_11(%arg0: i32) -> (i32, i32, i32) {
    %c0_i32 = arith.constant 0 : i32
    %c0_i32_0 = arith.constant 0 : i32
    %c0_i32_1 = arith.constant 0 : i32
    %c0_i32_2 = arith.constant 0 : i32
    return %c0_i32, %c0_i32_0, %c0_i32_1 : i32, i32, i32
  }
  func.func @transform_12(%arg0: i32) -> (i32, i32, i32) {
    %c0_i32 = arith.constant 0 : i32
    %c0_i32_0 = arith.constant 0 : i32
    %c0_i32_1 = arith.constant 0 : i32
    %c0_i32_2 = arith.constant 0 : i32
    return %c0_i32, %c0_i32_0, %c0_i32_1 : i32, i32, i32
  }
  func.func @transform_13(%arg0: i32) -> (i32, i32, i32) {
    %c0_i32 = arith.constant 0 : i32
    %c0_i32_0 = arith.constant 0 : i32
    %c0_i32_1 = arith.constant 0 : i32
    %c0_i32_2 = arith.constant 0 : i32
    return %c0_i32, %c0_i32_0, %c0_i32_1 : i32, i32, i32
  }
  func.func @transform_14(%arg0: i32) -> (i32, i32, i32) {
    %c0_i32 = arith.constant 0 : i32
    %c0_i32_0 = arith.constant 0 : i32
    %c0_i32_1 = arith.constant 0 : i32
    %c0_i32_2 = arith.constant 0 : i32
    return %c0_i32, %c0_i32_0, %c0_i32_1 : i32, i32, i32
  }
  func.func @transform_15(%arg0: i32) -> (i32, i32, i32) {
    %c0_i32 = arith.constant 0 : i32
    %c0_i32_0 = arith.constant 0 : i32
    %c0_i32_1 = arith.constant 0 : i32
    %c0_i32_2 = arith.constant 0 : i32
    return %c0_i32, %c0_i32_0, %c0_i32_1 : i32, i32, i32
  }
  func.func @transform_16(%arg0: i32) -> (i32, i32) {
    %c0_i32 = arith.constant 0 : i32
    %c0_i32_0 = arith.constant 0 : i32
    %c0_i32_1 = arith.constant 0 : i32
    return %c0_i32, %c0_i32_0 : i32, i32
  }
  func.func @transform_17(%arg0: i32) -> (i32, i32) {
    %c0_i32 = arith.constant 0 : i32
    %c0_i32_0 = arith.constant 0 : i32
    %c0_i32_1 = arith.constant 0 : i32
    return %c0_i32, %c0_i32_0 : i32, i32
  }
  func.func @transform_18(%arg0: i32) -> (i32, i32, i32) {
    %c0_i32 = arith.constant 0 : i32
    %c0_i32_0 = arith.constant 0 : i32
    %c0_i32_1 = arith.constant 0 : i32
    return %arg0, %c0_i32, %c0_i32_0 : i32, i32, i32
  }
}

</mosaic_0001>

<llo_original>
// kernel: context_encoder_forward.1
$region0: #{context_encoder_forward.1}
  #allocation0 [shape = 'u32[]', space=smem, size = 0x4, offset = 0x4, fixed_abs, tag = 'smem constant byte address 0x4 - core index']
  #allocation1 [shape = 'u32[144,128]{1,0:T(1,128)}', space=vmem, size = 0x12000, scoped, tag = 'internal scratch']
  %s0 = inlined_call_operand.vmem [shape: f32[2,8,64], index: 0, kind: input, shape index: {}]
  %s1 = inlined_call_operand.vmem [shape: f32[2,8,32], index: 1, kind: input, shape index: {}]
  %s2 = inlined_call_operand.vmem [shape: f32[64,32], index: 2, kind: input, shape index: {}]
  %s3 = inlined_call_operand.vmem [shape: f32[1,32], index: 3, kind: input, shape index: {}]
  %s4 = inlined_call_operand.vmem [shape: f32[2,1,32], index: 4, kind: input, shape index: {}]
  %s5 = inlined_call_operand.vmem [shape: f32[2,1,32], index: 5, kind: input, shape index: {}]
  %s6 = inlined_call_operand.vmem [shape: f32[2,32,96], index: 6, kind: input, shape index: {}]
  %s7 = inlined_call_operand.vmem [shape: f32[2,1,96], index: 7, kind: input, shape index: {}]
  %s8 = inlined_call_operand.vmem [shape: f32[2,32,32], index: 8, kind: input, shape index: {}]
  %s9 = inlined_call_operand.vmem [shape: f32[2,1,32], index: 9, kind: input, shape index: {}]
  %s10 = inlined_call_operand.vmem [shape: f32[2,1,32], index: 10, kind: input, shape index: {}]
  %s11 = inlined_call_operand.vmem [shape: f32[2,1,32], index: 11, kind: input, shape index: {}]
  %s12 = inlined_call_operand.vmem [shape: f32[2,32,128], index: 12, kind: input, shape index: {}]
  %s13 = inlined_call_operand.vmem [shape: f32[2,1,128], index: 13, kind: input, shape index: {}]
  %s14 = inlined_call_operand.vmem [shape: f32[2,128,32], index: 14, kind: input, shape index: {}]
  %s15 = inlined_call_operand.vmem [shape: f32[2,1,32], index: 15, kind: input, shape index: {}]
  %s16 = inlined_call_operand.vmem [shape: f32[1,32], index: 16, kind: input, shape index: {}]
  %s17 = inlined_call_operand.vmem [shape: f32[1,32], index: 17, kind: input, shape index: {}]
  %s18 = inlined_call_operand.vmem [shape: f32[2,8,32], index: 18, kind: output, shape index: {}]
  %s19 = sld [smem:[#allocation0]]
  $region105: #{context_encoder_forward.1} parent=0
    _
  %s21 = ssub.s32 1, %s19
  %s22 = scalar_select 0, %s21, %s19
  loop: start=0, step=1, limit=4
  $region2: #{context_encoder_forward.1} parent=0 // loop_pre_header
    _
  $region3: #{context_encoder_forward.1} parent=0 // loop_header
    %s24 = sphi 0, %s28
    %p25 = scmp.ge.s32.totalorder %s24, 4
    %s34 = sphi 0, %s36
    %s37 = sphi 0, %s34
    %s38 = sphi 0, %s37
    %s54 = sphi 0, %s38
    %s60 = sphi 0, %s62
    %s63 = sphi 0, %s60
    %s64 = sphi 0, %s63
    %s80 = sphi 0, %s64
    %s84 = sphi 0, %s84
    %s86 = sphi 0, %s84
    %s87 = sphi 0, %s86
    %s101 = sphi 0, %s87
    %s105 = sphi 0, %s105
    %s107 = sphi 0, %s105
    %s108 = sphi 0, %s107
    %s122 = sphi 0, %s108
    %s126 = sphi 0, %s126
    %s128 = sphi 0, %s126
    %s129 = sphi 0, %s128
    %s143 = sphi 0, %s129
    %s147 = sphi 0, %s147
    %s149 = sphi 0, %s147
    %s150 = sphi 0, %s149
    %s164 = sphi 0, %s150
    %s168 = sphi 0, %s168
    %s170 = sphi 0, %s168
    %s171 = sphi 0, %s170
    %s185 = sphi 0, %s171
    %s189 = sphi 0, %s189
    %s191 = sphi 0, %s189
    %s192 = sphi 0, %s191
    %s206 = sphi 0, %s192
    %s210 = sphi 0, %s210
    %s212 = sphi 0, %s210
    %s213 = sphi 0, %s212
    %s227 = sphi 0, %s213
    %s231 = sphi 0, %s231
    %s233 = sphi 0, %s231
    %s234 = sphi 0, %s233
    %s248 = sphi 0, %s234
    %s252 = sphi 0, %s252
    %s254 = sphi 0, %s252
    %s255 = sphi 0, %s254
    %s269 = sphi 0, %s255
    %s273 = sphi 0, %s273
    %s275 = sphi 0, %s273
    %s276 = sphi 0, %s275
    %s290 = sphi 0, %s276
    %s294 = sphi 0, %s294
    %s296 = sphi 0, %s294
    %s297 = sphi 0, %s296
    %s311 = sphi 0, %s297
    %s315 = sphi 0, %s315
    %s317 = sphi 0, %s315
    %s318 = sphi 0, %s317
    %s332 = sphi 0, %s318
    %s336 = sphi 0, %s336
    %s338 = sphi 0, %s336
    %s339 = sphi 0, %s338
    %s353 = sphi 0, %s339
    %s357 = sphi 0, %s357
    %s359 = sphi 0, %s357
    %s360 = sphi 0, %s359
    %s374 = sphi 0, %s360
    %s378 = sphi 0, %s378
    %s380 = sphi 0, %s378
    %s381 = sphi 0, %s380
    %s395 = sphi 0, %s381
    %s399 = sphi 0, %s399
    %s401 = sphi 0, %s399
    %s402 = sphi 0, %s401
    %s416 = sphi 0, %s402
    %s422 = sphi 0, %s424
    %s425 = sphi 0, %s422
    %s426 = sphi 0, %s425
    %s442 = sphi 0, %s426
  $region4: #{context_encoder_forward.1} parent=0 // loop_header_branch
    %27 = sbr.rel (%p25) target = $region8
  $region5: #{context_encoder_forward.1} parent=0 // loop_body
    %s29 = ssub.s32 %s24, 1
    %s30 = ssub.s32 %s24, 2
    %s31 = sadd.s32 %s24, 1
    %s32 = ssub.s32 %s24, %s31
    %p33 = scmp.eq.s32.totalorder %s32, 0
    %s35 = sadd.s32 %s34, 1
    %s36 = scalar_select %p33, %s34, %s35
    %p39 = pneg %p33
    %p40 = scmp.eq.s32.totalorder %s24, 1
    %p41 = por %p39, %p40
    %p42 = scmp.ne.s32.totalorder %s34, %s37
    %p43 = scmp.eq.s32.totalorder %s24, 0
    %p44 = por %p42, %p43
    %p45 = scmp.ne.s32.totalorder %s34, %s37
    %p46 = scmp.eq.s32.totalorder %s29, 1
    %p47 = por %p45, %p46
    %p48 = scmp.ne.s32.totalorder %s37, %s38
    %p49 = scmp.eq.s32.totalorder %s29, 0
    %p50 = por %p48, %p49
    %p51 = scmp.ne.s32.totalorder %s37, %s38
    %p52 = scmp.eq.s32.totalorder %s30, 1
    %p53 = por %p51, %p52
    %p55 = scmp.ne.s32.totalorder %s38, %s54
    %p56 = scmp.eq.s32.totalorder %s30, 0
    %p57 = por %p55, %p56
    %s58 = ssub.s32 %s24, %s31
    %p59 = scmp.eq.s32.totalorder %s58, 0
    %s61 = sadd.s32 %s60, 1
    %s62 = scalar_select %p59, %s60, %s61
    %p65 = pneg %p59
    %p66 = scmp.eq.s32.totalorder %s24, 1
    %p67 = por %p65, %p66
    %p68 = scmp.ne.s32.totalorder %s60, %s63
    %p69 = scmp.eq.s32.totalorder %s24, 0
    %p70 = por %p68, %p69
    %p71 = scmp.ne.s32.totalorder %s60, %s63
    %p72 = scmp.eq.s32.totalorder %s29, 1
    %p73 = por %p71, %p72
    %p74 = scmp.ne.s32.totalorder %s63, %s64
    %p75 = scmp.eq.s32.totalorder %s29, 0
    %p76 = por %p74, %p75
    %p77 = scmp.ne.s32.totalorder %s63, %s64
    %p78 = scmp.eq.s32.totalorder %s30, 1
    %p79 = por %p77, %p78
    %p81 = scmp.ne.s32.totalorder %s64, %s80
    %p82 = scmp.eq.s32.totalorder %s30, 0
    %p83 = por %p81, %p82
    %s85 = sadd.s32 %s84, 1
    %p88 = scmp.eq.s32.totalorder %s24, 1
    %p89 = scmp.ne.s32.totalorder %s84, %s86
    %p90 = scmp.eq.s32.totalorder %s24, 0
    %p91 = por %p89, %p90
    %p92 = scmp.ne.s32.totalorder %s84, %s86
    %p93 = scmp.eq.s32.totalorder %s29, 1
    %p94 = por %p92, %p93
    %p95 = scmp.ne.s32.totalorder %s86, %s87
    %p96 = scmp.eq.s32.totalorder %s29, 0
    %p97 = por %p95, %p96
    %p98 = scmp.ne.s32.totalorder %s86, %s87
    %p99 = scmp.eq.s32.totalorder %s30, 1
    %p100 = por %p98, %p99
    %p102 = scmp.ne.s32.totalorder %s87, %s101
    %p103 = scmp.eq.s32.totalorder %s30, 0
    %p104 = por %p102, %p103
    %s106 = sadd.s32 %s105, 1
    %p109 = scmp.eq.s32.totalorder %s24, 1
    %p110 = scmp.ne.s32.totalorder %s105, %s107
    %p111 = scmp.eq.s32.totalorder %s24, 0
    %p112 = por %p110, %p111
    %p113 = scmp.ne.s32.totalorder %s105, %s107
    %p114 = scmp.eq.s32.totalorder %s29, 1
    %p115 = por %p113, %p114
    %p116 = scmp.ne.s32.totalorder %s107, %s108
    %p117 = scmp.eq.s32.totalorder %s29, 0
    %p118 = por %p116, %p117
    %p119 = scmp.ne.s32.totalorder %s107, %s108
    %p120 = scmp.eq.s32.totalorder %s30, 1
    %p121 = por %p119, %p120
    %p123 = scmp.ne.s32.totalorder %s108, %s122
    %p124 = scmp.eq.s32.totalorder %s30, 0
    %p125 = por %p123, %p124
    %s127 = sadd.s32 %s126, 1
    %p130 = scmp.eq.s32.totalorder %s24, 1
    %p131 = scmp.ne.s32.totalorder %s126, %s128
    %p132 = scmp.eq.s32.totalorder %s24, 0
    %p133 = por %p131, %p132
    %p134 = scmp.ne.s32.totalorder %s126, %s128
    %p135 = scmp.eq.s32.totalorder %s29, 1
    %p136 = por %p134, %p135
    %p137 = scmp.ne.s32.totalorder %s128, %s129
    %p138 = scmp.eq.s32.totalorder %s29, 0
    %p139 = por %p137, %p138
    %p140 = scmp.ne.s32.totalorder %s128, %s129
    %p141 = scmp.eq.s32.totalorder %s30, 1
    %p142 = por %p140, %p141
    %p144 = scmp.ne.s32.totalorder %s129, %s143
    %p145 = scmp.eq.s32.totalorder %s30, 0
    %p146 = por %p144, %p145
    %s148 = sadd.s32 %s147, 1
    %p151 = scmp.eq.s32.totalorder %s24, 1
    %p152 = scmp.ne.s32.totalorder %s147, %s149
    %p153 = scmp.eq.s32.totalorder %s24, 0
    %p154 = por %p152, %p153
    %p155 = scmp.ne.s32.totalorder %s147, %s149
    %p156 = scmp.eq.s32.totalorder %s29, 1
    %p157 = por %p155, %p156
    %p158 = scmp.ne.s32.totalorder %s149, %s150
    %p159 = scmp.eq.s32.totalorder %s29, 0
    %p160 = por %p158, %p159
    %p161 = scmp.ne.s32.totalorder %s149, %s150
    %p162 = scmp.eq.s32.totalorder %s30, 1
    %p163 = por %p161, %p162
    %p165 = scmp.ne.s32.totalorder %s150, %s164
    %p166 = scmp.eq.s32.totalorder %s30, 0
    %p167 = por %p165, %p166
    %s169 = sadd.s32 %s168, 1
    %p172 = scmp.eq.s32.totalorder %s24, 1
    %p173 = scmp.ne.s32.totalorder %s168, %s170
    %p174 = scmp.eq.s32.totalorder %s24, 0
    %p175 = por %p173, %p174
    %p176 = scmp.ne.s32.totalorder %s168, %s170
    %p177 = scmp.eq.s32.totalorder %s29, 1
    %p178 = por %p176, %p177
    %p179 = scmp.ne.s32.totalorder %s170, %s171
    %p180 = scmp.eq.s32.totalorder %s29, 0
    %p181 = por %p179, %p180
    %p182 = scmp.ne.s32.totalorder %s170, %s171
    %p183 = scmp.eq.s32.totalorder %s30, 1
    %p184 = por %p182, %p183
    %p186 = scmp.ne.s32.totalorder %s171, %s185
    %p187 = scmp.eq.s32.totalorder %s30, 0
    %p188 = por %p186, %p187
    %s190 = sadd.s32 %s189, 1
    %p193 = scmp.eq.s32.totalorder %s24, 1
    %p194 = scmp.ne.s32.totalorder %s189, %s191
    %p195 = scmp.eq.s32.totalorder %s24, 0
    %p196 = por %p194, %p195
    %p197 = scmp.ne.s32.totalorder %s189, %s191
    %p198 = scmp.eq.s32.totalorder %s29, 1
    %p199 = por %p197, %p198
    %p200 = scmp.ne.s32.totalorder %s191, %s192
    %p201 = scmp.eq.s32.totalorder %s29, 0
    %p202 = por %p200, %p201
    %p203 = scmp.ne.s32.totalorder %s191, %s192
    %p204 = scmp.eq.s32.totalorder %s30, 1
    %p205 = por %p203, %p204
    %p207 = scmp.ne.s32.totalorder %s192, %s206
    %p208 = scmp.eq.s32.totalorder %s30, 0
    %p209 = por %p207, %p208
    %s211 = sadd.s32 %s210, 1
    %p214 = scmp.eq.s32.totalorder %s24, 1
    %p215 = scmp.ne.s32.totalorder %s210, %s212
    %p216 = scmp.eq.s32.totalorder %s24, 0
    %p217 = por %p215, %p216
    %p218 = scmp.ne.s32.totalorder %s210, %s212
    %p219 = scmp.eq.s32.totalorder %s29, 1
    %p220 = por %p218, %p219
    %p221 = scmp.ne.s32.totalorder %s212, %s213
    %p222 = scmp.eq.s32.totalorder %s29, 0
    %p223 = por %p221, %p222
    %p224 = scmp.ne.s32.totalorder %s212, %s213
    %p225 = scmp.eq.s32.totalorder %s30, 1
    %p226 = por %p224, %p225
    %p228 = scmp.ne.s32.totalorder %s213, %s227
    %p229 = scmp.eq.s32.totalorder %s30, 0
    %p230 = por %p228, %p229
    %s232 = sadd.s32 %s231, 1
    %p235 = scmp.eq.s32.totalorder %s24, 1
    %p236 = scmp.ne.s32.totalorder %s231, %s233
    %p237 = scmp.eq.s32.totalorder %s24, 0
    %p238 = por %p236, %p237
    %p239 = scmp.ne.s32.totalorder %s231, %s233
    %p240 = scmp.eq.s32.totalorder %s29, 1
    %p241 = por %p239, %p240
    %p242 = scmp.ne.s32.totalorder %s233, %s234
    %p243 = scmp.eq.s32.totalorder %s29, 0
    %p244 = por %p242, %p243
    %p245 = scmp.ne.s32.totalorder %s233, %s234
    %p246 = scmp.eq.s32.totalorder %s30, 1
    %p247 = por %p245, %p246
    %p249 = scmp.ne.s32.totalorder %s234, %s248
    %p250 = scmp.eq.s32.totalorder %s30, 0
    %p251 = por %p249, %p250
    %s253 = sadd.s32 %s252, 1
    %p256 = scmp.eq.s32.totalorder %s24, 1
    %p257 = scmp.ne.s32.totalorder %s252, %s254
    %p258 = scmp.eq.s32.totalorder %s24, 0
    %p259 = por %p257, %p258
    %p260 = scmp.ne.s32.totalorder %s252, %s254
    %p261 = scmp.eq.s32.totalorder %s29, 1
    %p262 = por %p260, %p261
    %p263 = scmp.ne.s32.totalorder %s254, %s255
    %p264 = scmp.eq.s32.totalorder %s29, 0
    %p265 = por %p263, %p264
    %p266 = scmp.ne.s32.totalorder %s254, %s255
    %p267 = scmp.eq.s32.totalorder %s30, 1
    %p268 = por %p266, %p267
    %p270 = scmp.ne.s32.totalorder %s255, %s269
    %p271 = scmp.eq.s32.totalorder %s30, 0
    %p272 = por %p270, %p271
    %s274 = sadd.s32 %s273, 1
    %p277 = scmp.eq.s32.totalorder %s24, 1
    %p278 = scmp.ne.s32.totalorder %s273, %s275
    %p279 = scmp.eq.s32.totalorder %s24, 0
    %p280 = por %p278, %p279
    %p281 = scmp.ne.s32.totalorder %s273, %s275
    %p282 = scmp.eq.s32.totalorder %s29, 1
    %p283 = por %p281, %p282
    %p284 = scmp.ne.s32.totalorder %s275, %s276
    %p285 = scmp.eq.s32.totalorder %s29, 0
    %p286 = por %p284, %p285
    %p287 = scmp.ne.s32.totalorder %s275, %s276
    %p288 = scmp.eq.s32.totalorder %s30, 1
    %p289 = por %p287, %p288
    %p291 = scmp.ne.s32.totalorder %s276, %s290
    %p292 = scmp.eq.s32.totalorder %s30, 0
    %p293 = por %p291, %p292
    %s295 = sadd.s32 %s294, 1
    %p298 = scmp.eq.s32.totalorder %s24, 1
    %p299 = scmp.ne.s32.totalorder %s294, %s296
    %p300 = scmp.eq.s32.totalorder %s24, 0
    %p301 = por %p299, %p300
    %p302 = scmp.ne.s32.totalorder %s294, %s296
    %p303 = scmp.eq.s32.totalorder %s29, 1
    %p304 = por %p302, %p303
    %p305 = scmp.ne.s32.totalorder %s296, %s297
    %p306 = scmp.eq.s32.totalorder %s29, 0
    %p307 = por %p305, %p306
    %p308 = scmp.ne.s32.totalorder %s296, %s297
    %p309 = scmp.eq.s32.totalorder %s30, 1
    %p310 = por %p308, %p309
    %p312 = scmp.ne.s32.totalorder %s297, %s311
    %p313 = scmp.eq.s32.totalorder %s30, 0
    %p314 = por %p312, %p313
    %s316 = sadd.s32 %s315, 1
    %p319 = scmp.eq.s32.totalorder %s24, 1
    %p320 = scmp.ne.s32.totalorder %s315, %s317
    %p321 = scmp.eq.s32.totalorder %s24, 0
    %p322 = por %p320, %p321
    %p323 = scmp.ne.s32.totalorder %s315, %s317
    %p324 = scmp.eq.s32.totalorder %s29, 1
    %p325 = por %p323, %p324
    %p326 = scmp.ne.s32.totalorder %s317, %s318
    %p327 = scmp.eq.s32.totalorder %s29, 0
    %p328 = por %p326, %p327
    %p329 = scmp.ne.s32.totalorder %s317, %s318
    %p330 = scmp.eq.s32.totalorder %s30, 1
    %p331 = por %p329, %p330
    %p333 = scmp.ne.s32.totalorder %s318, %s332
    %p334 = scmp.eq.s32.totalorder %s30, 0
    %p335 = por %p333, %p334
    %s337 = sadd.s32 %s336, 1
    %p340 = scmp.eq.s32.totalorder %s24, 1
    %p341 = scmp.ne.s32.totalorder %s336, %s338
    %p342 = scmp.eq.s32.totalorder %s24, 0
    %p343 = por %p341, %p342
    %p344 = scmp.ne.s32.totalorder %s336, %s338
    %p345 = scmp.eq.s32.totalorder %s29, 1
    %p346 = por %p344, %p345
    %p347 = scmp.ne.s32.totalorder %s338, %s339
    %p348 = scmp.eq.s32.totalorder %s29, 0
    %p349 = por %p347, %p348
    %p350 = scmp.ne.s32.totalorder %s338, %s339
    %p351 = scmp.eq.s32.totalorder %s30, 1
    %p352 = por %p350, %p351
    %p354 = scmp.ne.s32.totalorder %s339, %s353
    %p355 = scmp.eq.s32.totalorder %s30, 0
    %p356 = por %p354, %p355
    %s358 = sadd.s32 %s357, 1
    %p361 = scmp.eq.s32.totalorder %s24, 1
    %p362 = scmp.ne.s32.totalorder %s357, %s359
    %p363 = scmp.eq.s32.totalorder %s24, 0
    %p364 = por %p362, %p363
    %p365 = scmp.ne.s32.totalorder %s357, %s359
    %p366 = scmp.eq.s32.totalorder %s29, 1
    %p367 = por %p365, %p366
    %p368 = scmp.ne.s32.totalorder %s359, %s360
    %p369 = scmp.eq.s32.totalorder %s29, 0
    %p370 = por %p368, %p369
    %p371 = scmp.ne.s32.totalorder %s359, %s360
    %p372 = scmp.eq.s32.totalorder %s30, 1
    %p373 = por %p371, %p372
    %p375 = scmp.ne.s32.totalorder %s360, %s374
    %p376 = scmp.eq.s32.totalorder %s30, 0
    %p377 = por %p375, %p376
    %s379 = sadd.s32 %s378, 1
    %p382 = scmp.eq.s32.totalorder %s24, 1
    %p383 = scmp.ne.s32.totalorder %s378, %s380
    %p384 = scmp.eq.s32.totalorder %s24, 0
    %p385 = por %p383, %p384
    %p386 = scmp.ne.s32.totalorder %s378, %s380
    %p387 = scmp.eq.s32.totalorder %s29, 1
    %p388 = por %p386, %p387
    %p389 = scmp.ne.s32.totalorder %s380, %s381
    %p390 = scmp.eq.s32.totalorder %s29, 0
    %p391 = por %p389, %p390
    %p392 = scmp.ne.s32.totalorder %s380, %s381
    %p393 = scmp.eq.s32.totalorder %s30, 1
    %p394 = por %p392, %p393
    %p396 = scmp.ne.s32.totalorder %s381, %s395
    %p397 = scmp.eq.s32.totalorder %s30, 0
    %p398 = por %p396, %p397
    %s400 = sadd.s32 %s399, 1
    %p403 = scmp.eq.s32.totalorder %s24, 1
    %p404 = scmp.ne.s32.totalorder %s399, %s401
    %p405 = scmp.eq.s32.totalorder %s24, 0
    %p406 = por %p404, %p405
    %p407 = scmp.ne.s32.totalorder %s399, %s401
    %p408 = scmp.eq.s32.totalorder %s29, 1
    %p409 = por %p407, %p408
    %p410 = scmp.ne.s32.totalorder %s401, %s402
    %p411 = scmp.eq.s32.totalorder %s29, 0
    %p412 = por %p410, %p411
    %p413 = scmp.ne.s32.totalorder %s401, %s402
    %p414 = scmp.eq.s32.totalorder %s30, 1
    %p415 = por %p413, %p414
    %p417 = scmp.ne.s32.totalorder %s402, %s416
    %p418 = scmp.eq.s32.totalorder %s30, 0
    %p419 = por %p417, %p418
    %s420 = ssub.s32 %s24, %s31
    %p421 = scmp.eq.s32.totalorder %s420, 0
    %s423 = sadd.s32 %s422, 1
    %s424 = scalar_select %p421, %s422, %s423
    %p427 = pneg %p421
    %p428 = scmp.eq.s32.totalorder %s24, 1
    %p429 = por %p427, %p428
    %p430 = scmp.ne.s32.totalorder %s422, %s425
    %p431 = scmp.eq.s32.totalorder %s24, 0
    %p432 = por %p430, %p431
    %p433 = scmp.ne.s32.totalorder %s422, %s425
    %p434 = scmp.eq.s32.totalorder %s29, 1
    %p435 = por %p433, %p434
    %p436 = scmp.ne.s32.totalorder %s425, %s426
    %p437 = scmp.eq.s32.totalorder %s29, 0
    %p438 = por %p436, %p437
    %p439 = scmp.ne.s32.totalorder %s425, %s426
    %p440 = scmp.eq.s32.totalorder %s30, 1
    %p441 = por %p439, %p440
    %p443 = scmp.ne.s32.totalorder %s426, %s442
    %p444 = scmp.eq.s32.totalorder %s30, 0
    %p445 = por %p443, %p444
    %p446 = scmp.le.s32.totalorder 1, %s24
    %p447 = scmp.lt.s32.totalorder %s24, 3
    %p448 = pnand %p446, %p447
    %p449 = pneg %p448
    // Predicated region
    $region9: #{context_encoder_forward.1} parent=5 // pred_check
      _
    $region10: #{context_encoder_forward.1} parent=5 // pred_check_branch
      %451 = sbr.rel (%p448) target = $region12
    $region11: #{context_encoder_forward.1} parent=5 // pred_region
      %s452 = ssub.s32 %s24, 1
      // Predicated region
      $region13: #{context_encoder_forward.1} parent=11 // pred_check
        %p453 = pneg %p97
      $region14: #{context_encoder_forward.1} parent=11 // pred_check_branch
        %455 = sbr.rel (%p453) target = $region16
      $region15: #{context_encoder_forward.1} parent=11 // pred_region
        _
      $region16: #{context_encoder_forward.1} parent=11 // pred_fallthru
        _
      // Predicated region
      $region17: #{context_encoder_forward.1} parent=11 // pred_check
        %p456 = pneg %p118
      $region18: #{context_encoder_forward.1} parent=11 // pred_check_branch
        %458 = sbr.rel (%p456) target = $region20
      $region19: #{context_encoder_forward.1} parent=11 // pred_region
        _
      $region20: #{context_encoder_forward.1} parent=11 // pred_fallthru
        _
      // Predicated region
      $region21: #{context_encoder_forward.1} parent=11 // pred_check
        %p459 = pneg %p139
      $region22: #{context_encoder_forward.1} parent=11 // pred_check_branch
        %461 = sbr.rel (%p459) target = $region24
      $region23: #{context_encoder_forward.1} parent=11 // pred_region
        _
      $region24: #{context_encoder_forward.1} parent=11 // pred_fallthru
        _
      // Predicated region
      $region25: #{context_encoder_forward.1} parent=11 // pred_check
        %p462 = pneg %p160
      $region26: #{context_encoder_forward.1} parent=11 // pred_check_branch
        %464 = sbr.rel (%p462) target = $region28
      $region27: #{context_encoder_forward.1} parent=11 // pred_region
        _
      $region28: #{context_encoder_forward.1} parent=11 // pred_fallthru
        _
      // Predicated region
      $region29: #{context_encoder_forward.1} parent=11 // pred_check
        %p465 = pneg %p181
      $region30: #{context_encoder_forward.1} parent=11 // pred_check_branch
        %467 = sbr.rel (%p465) target = $region32
      $region31: #{context_encoder_forward.1} parent=11 // pred_region
        _
      $region32: #{context_encoder_forward.1} parent=11 // pred_fallthru
        _
      // Predicated region
      $region33: #{context_encoder_forward.1} parent=11 // pred_check
        %p468 = pneg %p202
      $region34: #{context_encoder_forward.1} parent=11 // pred_check_branch
        %470 = sbr.rel (%p468) target = $region36
      $region35: #{context_encoder_forward.1} parent=11 // pred_region
        _
      $region36: #{context_encoder_forward.1} parent=11 // pred_fallthru
        _
      // Predicated region
      $region37: #{context_encoder_forward.1} parent=11 // pred_check
        %p471 = pneg %p223
      $region38: #{context_encoder_forward.1} parent=11 // pred_check_branch
        %473 = sbr.rel (%p471) target = $region40
      $region39: #{context_encoder_forward.1} parent=11 // pred_region
        _
      $region40: #{context_encoder_forward.1} parent=11 // pred_fallthru
        _
      // Predicated region
      $region41: #{context_encoder_forward.1} parent=11 // pred_check
        %p474 = pneg %p244
      $region42: #{context_encoder_forward.1} parent=11 // pred_check_branch
        %476 = sbr.rel (%p474) target = $region44
      $region43: #{context_encoder_forward.1} parent=11 // pred_region
        _
      $region44: #{context_encoder_forward.1} parent=11 // pred_fallthru
        _
      // Predicated region
      $region45: #{context_encoder_forward.1} parent=11 // pred_check
        %p477 = pneg %p265
      $region46: #{context_encoder_forward.1} parent=11 // pred_check_branch
        %479 = sbr.rel (%p477) target = $region48
      $region47: #{context_encoder_forward.1} parent=11 // pred_region
        _
      $region48: #{context_encoder_forward.1} parent=11 // pred_fallthru
        _
      // Predicated region
      $region49: #{context_encoder_forward.1} parent=11 // pred_check
        %p480 = pneg %p286
      $region50: #{context_encoder_forward.1} parent=11 // pred_check_branch
        %482 = sbr.rel (%p480) target = $region52
      $region51: #{context_encoder_forward.1} parent=11 // pred_region
        _
      $region52: #{context_encoder_forward.1} parent=11 // pred_fallthru
        _
      // Predicated region
      $region53: #{context_encoder_forward.1} parent=11 // pred_check
        %p483 = pneg %p307
      $region54: #{context_encoder_forward.1} parent=11 // pred_check_branch
        %485 = sbr.rel (%p483) target = $region56
      $region55: #{context_encoder_forward.1} parent=11 // pred_region
        _
      $region56: #{context_encoder_forward.1} parent=11 // pred_fallthru
        _
      // Predicated region
      $region57: #{context_encoder_forward.1} parent=11 // pred_check
        %p486 = pneg %p328
      $region58: #{context_encoder_forward.1} parent=11 // pred_check_branch
        %488 = sbr.rel (%p486) target = $region60
      $region59: #{context_encoder_forward.1} parent=11 // pred_region
        _
      $region60: #{context_encoder_forward.1} parent=11 // pred_fallthru
        _
      // Predicated region
      $region61: #{context_encoder_forward.1} parent=11 // pred_check
        %p489 = pneg %p349
      $region62: #{context_encoder_forward.1} parent=11 // pred_check_branch
        %491 = sbr.rel (%p489) target = $region64
      $region63: #{context_encoder_forward.1} parent=11 // pred_region
        _
      $region64: #{context_encoder_forward.1} parent=11 // pred_fallthru
        _
      // Predicated region
      $region65: #{context_encoder_forward.1} parent=11 // pred_check
        %p492 = pneg %p370
      $region66: #{context_encoder_forward.1} parent=11 // pred_check_branch
        %494 = sbr.rel (%p492) target = $region68
      $region67: #{context_encoder_forward.1} parent=11 // pred_region
        _
      $region68: #{context_encoder_forward.1} parent=11 // pred_fallthru
        _
      // Predicated region
      $region69: #{context_encoder_forward.1} parent=11 // pred_check
        %p495 = pneg %p391
      $region70: #{context_encoder_forward.1} parent=11 // pred_check_branch
        %497 = sbr.rel (%p495) target = $region72
      $region71: #{context_encoder_forward.1} parent=11 // pred_region
        _
      $region72: #{context_encoder_forward.1} parent=11 // pred_fallthru
        _
      // Predicated region
      $region73: #{context_encoder_forward.1} parent=11 // pred_check
        %p498 = pneg %p412
      $region74: #{context_encoder_forward.1} parent=11 // pred_check_branch
        %500 = sbr.rel (%p498) target = $region76
      $region75: #{context_encoder_forward.1} parent=11 // pred_region
        _
      $region76: #{context_encoder_forward.1} parent=11 // pred_fallthru
        _
    $region12: #{context_encoder_forward.1} parent=5 // pred_fallthru
      _
    %p501 = scmp.lt.s32.totalorder %s24, 2
    // Predicated region
    $region77: #{context_encoder_forward.1} parent=5 // pred_check
      %p502 = pneg %p501
    $region78: #{context_encoder_forward.1} parent=5 // pred_check_branch
      %504 = sbr.rel (%p502) target = $region80
    $region79: #{context_encoder_forward.1} parent=5 // pred_region
      // Predicated region
      $region81: #{context_encoder_forward.1} parent=79 // pred_check
        %p505 = pneg %p44
      $region82: #{context_encoder_forward.1} parent=79 // pred_check_branch
        %507 = sbr.rel (%p505) target = $region84
      $region83: #{context_encoder_forward.1} parent=79 // pred_region
        %p508 = scmp.lt.s32.totalorder %s24, 1
        %s509 = scalar_select %p508, %s24, 1
        %s510 = smul.addr %s509, 8
        %s511 = scalar_lea.vmem %s0, %s510
      $region84: #{context_encoder_forward.1} parent=79 // pred_fallthru
        _
      // Predicated region
      $region85: #{context_encoder_forward.1} parent=79 // pred_check
        %p512 = pneg %p70
      $region86: #{context_encoder_forward.1} parent=79 // pred_check_branch
        %514 = sbr.rel (%p512) target = $region88
      $region87: #{context_encoder_forward.1} parent=79 // pred_region
        %p515 = scmp.lt.s32.totalorder %s24, 1
        %s516 = scalar_select %p515, %s24, 1
        %s517 = smul.addr %s516, 8
        %s518 = scalar_lea.vmem %s1, %s517
      $region88: #{context_encoder_forward.1} parent=79 // pred_fallthru
        _
    $region80: #{context_encoder_forward.1} parent=5 // pred_fallthru
      _
    %p519 = scmp.le.s32.totalorder 1, %s24
    %p520 = scmp.lt.s32.totalorder %s24, 3
    %p521 = pnand %p519, %p520
    %p522 = pneg %p521
    // Predicated region
    $region89: #{context_encoder_forward.1} parent=5 // pred_check
      _
    $region90: #{context_encoder_forward.1} parent=5 // pred_check_branch
      %524 = sbr.rel (%p521) target = $region92
    $region91: #{context_encoder_forward.1} parent=5 // pred_region
      %s525 = ssub.s32 %s24, 1
      %p526 = scmp.lt.s32.totalorder %s29, 1
      %s527 = scalar_select %p526, %s29, 1
      %s528 = smul.addr %s527, 8
      %s529 = scalar_lea.vmem %s0, %s528
      %p530 = pneg %p50
      %p531 = pneg %p47
      %p532 = scmp.lt.s32.totalorder %s29, 1
      %s533 = scalar_select %p532, %s29, 1
      %s534 = smul.addr %s533, 8
      %s535 = scalar_lea.vmem %s1, %s534
      %p536 = pneg %p76
      %p537 = pneg %p73
      %p538 = pneg %p97
      %p539 = pneg %p94
      %p540 = pneg %p118
      %p541 = pneg %p115
      %p542 = pneg %p139
      %p543 = pneg %p136
      %p544 = pneg %p160
      %p545 = pneg %p157
      %p546 = pneg %p181
      %p547 = pneg %p178
      %p548 = pneg %p202
      %p549 = pneg %p199
      %p550 = pneg %p223
      %p551 = pneg %p220
      %p552 = pneg %p244
      %p553 = pneg %p241
      %p554 = pneg %p265
      %p555 = pneg %p262
      %p556 = pneg %p286
      %p557 = pneg %p283
      %p558 = pneg %p307
      %p559 = pneg %p304
      %p560 = pneg %p328
      %p561 = pneg %p325
      %p562 = pneg %p349
      %p563 = pneg %p346
      %p564 = pneg %p370
      %p565 = pneg %p367
      %p566 = pneg %p391
      %p567 = pneg %p388
      %p568 = pneg %p412
      %p569 = pneg %p409
      %p570 = pneg %p438
      %p571 = pneg %p435
      %p572 = scmp.lt.s32.totalorder %s29, 1
      %s573 = scalar_select %p572, %s29, 1
      %s574 = smul.addr %s573, 8
      %s575 = scalar_lea.vmem %s18, %s574
      %p576 = scmp.lt.s32.totalorder %s29, 1
      %s577 = scalar_select %p576, %s29, 1
      %s578 = smul.addr %s577, 8
      %s579 = scalar_lea.vmem %s0, %s578
      %p580 = scmp.lt.s32.totalorder %s29, 1
      %s581 = scalar_select %p580, %s29, 1
      %s582 = smul.addr %s581, 8
      %s583 = scalar_lea.vmem %s1, %s582
      %p584 = scmp.lt.s32.totalorder %s29, 1
      %s585 = scalar_select %p584, %s29, 1
      %s586 = smul.addr %s585, 8
      %s587 = scalar_lea.vmem %s18, %s586
      %v588 = vld [vmem:[%s579] sm:$0xff]
      %v589 = vld [vmem:[%s2] sm:$0xff]
      %v590 = vld [vmem:[%s2 + $0x8] sm:$0xff]
      %v591 = vld [vmem:[%s2 + $0x10] sm:$0xff]
      %v592 = vld [vmem:[%s2 + $0x18] sm:$0xff]
      %v593 = vld [vmem:[%s2 + $0x20] sm:$0xff]
      %v594 = vld [vmem:[%s2 + $0x28] sm:$0xff]
      %v595 = vld [vmem:[%s2 + $0x30] sm:$0xff]
      %v596 = vld [vmem:[%s2 + $0x38] sm:$0xff]
      %v597 = vld [vmem:[%s3] sm:$0x1]
      %v599 = vlaneseq
      %v600 = vshrl.u32 %v599, 7
      %v601 = vsub.s32 0, %v600
      %v602 = vrot.slane %v597, %v601
      %vm604 = vcmask 523264
      %v606 = vsel %vm604, %v588, 0
      %608 = vmatprep.subr.mxu0 0.0
      %609 = vmatpush1.msra.mxu0 %v589
      %610 = vmatprep.subr.mxu0 0.0
      %611 = vmatpush1.msra.mxu0 %v590
      %612 = vmatprep.subr.mxu0 0.0
      %613 = vmatpush1.msra.mxu0 %v591
      %614 = vmatprep.subr.mxu0 0.0
      %615 = vmatpush1.msra.mxu0 %v592
      %616 = vmatprep.subr.mxu0 0.0
      %617 = vmatpush1.msra.mxu0 %v593
      %618 = vmatprep.subr.mxu0 0.0
      %619 = vmatpush1.msra.mxu0 %v594
      %620 = vmatprep.subr.mxu0 0.0
      %621 = vmatpush1.msra.mxu0 %v595
      %622 = vmatprep.subr.mxu0 0.0
      %623 = vmatpush1.msra.mxu0 %v596
      %624 = vmatprep.subr.mxu0 0.0
      %625 = vmatpush1.msra.mxu0 0.0
      %626 = vmatprep.subr.mxu0 0.0
      %627 = vmatpush1.msra.mxu0 0.0
      %628 = vmatprep.subr.mxu0 0.0
      %629 = vmatpush1.msra.mxu0 0.0
      %630 = vmatprep.subr.mxu0 0.0
      %631 = vmatpush1.msra.mxu0 0.0
      %632 = vmatprep.subr.mxu0 0.0
      %633 = vmatpush1.msra.mxu0 0.0
      %634 = vmatprep.subr.mxu0 0.0
      %635 = vmatpush1.msra.mxu0 0.0
      %636 = vmatprep.subr.mxu0 0.0
      %637 = vmatpush1.msra.mxu0 0.0
      %638 = vmatprep.subr.mxu0 0.0
      %639 = vmatpush1.msra.mxu0 0.0
      %640 = vmatprep.subr.mxu0 0.0
      %641 = vmatpush1.msra.mxu0 0.0
      %642 = vmatprep.subr.mxu0 0.0
      %643 = vmatpush1.msra.mxu0 0.0
      %644 = vmatprep.subr.mxu0 0.0
      %645 = vmatpush1.msra.mxu0 0.0
      %646 = vmatprep.subr.mxu0 0.0
      %647 = vmatpush1.msra.mxu0 0.0
      %648 = vmatprep.subr.mxu0 0.0
      %649 = vmatpush1.msra.mxu0 0.0
      %650 = vmatprep.subr.mxu0 0.0
      %651 = vmatpush1.msra.mxu0 0.0
      %652 = vmatprep.subr.mxu0 0.0
      %653 = vmatpush1.msra.mxu0 0.0
      %654 = vmatprep.subr.mxu0 0.0
      %655 = vmatpush1.msra.mxu0 0.0
      %656 = vmatprep.subr.mxu0 0.0
      %657 = vmatpush1.msra.mxu0 0.0
      %658 = vmatprep.subr.mxu0 0.0
      %659 = vmatpush1.msra.mxu0 0.0
      %660 = vmatprep.subr.mxu0 0.0
      %661 = vmatpush1.msra.mxu0 0.0
      %662 = vmatprep.subr.mxu0 0.0
      %663 = vmatpush1.msra.mxu0 0.0
      %664 = vmatprep.subr.mxu0 0.0
      %665 = vmatpush1.msra.mxu0 0.0
      %666 = vmatprep.subr.mxu0 0.0
      %667 = vmatpush1.msra.mxu0 0.0
      %668 = vmatprep.subr.mxu0 0.0
      %669 = vmatpush1.msra.mxu0 0.0
      %670 = vmatprep.subr.mxu0 0.0
      %671 = vmatpush1.msra.mxu0 0.0
      %672 = vmatprep.mubr.f32.mxu0 0.0
      %673 = vmatmul.mubr.f32.gmra.mrb[0].mxu0 %v606
      %v674 = vpop.f32.mrb[0].mxu0
      %v675 = vadd.f32 %v602, %v674
      %v676 = vpop.f32.mrb[0].mxu0
      %677 = vdwg.mxu0
      %v678 = vld [vmem:[%s583] sm:$0xff]
      %v679 = vadd.f32 %v675, %v678
      %v680 = vld [vmem:[%s4] sm:$0x1]
      %v681 = vld [vmem:[%s5] sm:$0x1]
      %vm682 = vcmask 261120
      %v683 = vsel %vm682, %v679, 0.0
      %684 = vadd.xlane.f32.xlu0 %v683
      %v685 = vpop.xlane.xlu0 %684
      %v686 = vrcp.pop 32.0
      %v687 = vmul.f32 %v685, %v686
      %v688 = vsub.f32 %v679, %v687
      %v689 = vmul.f32 %v688, %v688
      %v690 = vsel %vm682, %v689, 0.0
      %691 = vadd.xlane.f32.xlu0 %v690
      %v692 = vpop.xlane.xlu0 %691
      %v693 = vmul.f32 %v692, %v686
      %v694 = vadd.f32 %v693, 1e-05
      %v695 = vrsqrt.pop %v694
      %v696 = vmul.f32 %v688, %v695
      %v698 = vlaneseq
      %v699 = vshrl.u32 %v698, 7
      %v700 = vsub.s32 0, %v699
      %v701 = vrot.slane %v680, %v700
      %v703 = vmul.f32 %v696, %v701
      %v705 = vlaneseq
      %v706 = vshrl.u32 %v705, 7
      %v707 = vsub.s32 0, %v706
      %v708 = vrot.slane %v681, %v707
      %v710 = vadd.f32 %v703, %v708
      %v711 = vld [vmem:[%s6] sm:$0xff]
      %v712 = vld [vmem:[%s6 + $0x8] sm:$0xff]
      %v713 = vld [vmem:[%s6 + $0x10] sm:$0xff]
      %v714 = vld [vmem:[%s6 + $0x18] sm:$0xff]
      %v715 = vld [vmem:[%s7] sm:$0x1]
      %v717 = vlaneseq
      %v718 = vshrl.u32 %v717, 7
      %v719 = vsub.s32 0, %v718
      %v720 = vrot.slane %v715, %v719
      %v723 = vsel %vm682, %v710, 0
      %725 = vmatprep.subr.mxu0 0.0
      %726 = vmatpush1.msra.mxu0 %v711
      %727 = vmatprep.subr.mxu0 0.0
      %728 = vmatpush1.msra.mxu0 %v712
      %729 = vmatprep.subr.mxu0 0.0
      %730 = vmatpush1.msra.mxu0 %v713
      %731 = vmatprep.subr.mxu0 0.0
      %732 = vmatpush1.msra.mxu0 %v714
      %733 = vmatprep.subr.mxu0 0.0
      %734 = vmatpush1.msra.mxu0 0.0
      %735 = vmatprep.subr.mxu0 0.0
      %736 = vmatpush1.msra.mxu0 0.0
      %737 = vmatprep.subr.mxu0 0.0
      %738 = vmatpush1.msra.mxu0 0.0
      %739 = vmatprep.subr.mxu0 0.0
      %740 = vmatpush1.msra.mxu0 0.0
      %741 = vmatprep.subr.mxu0 0.0
      %742 = vmatpush1.msra.mxu0 0.0
      %743 = vmatprep.subr.mxu0 0.0
      %744 = vmatpush1.msra.mxu0 0.0
      %745 = vmatprep.subr.mxu0 0.0
      %746 = vmatpush1.msra.mxu0 0.0
      %747 = vmatprep.subr.mxu0 0.0
      %748 = vmatpush1.msra.mxu0 0.0
      %749 = vmatprep.subr.mxu0 0.0
      %750 = vmatpush1.msra.mxu0 0.0
      %751 = vmatprep.subr.mxu0 0.0
      %752 = vmatpush1.msra.mxu0 0.0
      %753 = vmatprep.subr.mxu0 0.0
      %754 = vmatpush1.msra.mxu0 0.0
      %755 = vmatprep.subr.mxu0 0.0
      %756 = vmatpush1.msra.mxu0 0.0
      %757 = vmatprep.subr.mxu0 0.0
      %758 = vmatpush1.msra.mxu0 0.0
      %759 = vmatprep.subr.mxu0 0.0
      %760 = vmatpush1.msra.mxu0 0.0
      %761 = vmatprep.subr.mxu0 0.0
      %762 = vmatpush1.msra.mxu0 0.0
      %763 = vmatprep.subr.mxu0 0.0
      %764 = vmatpush1.msra.mxu0 0.0
      %765 = vmatprep.subr.mxu0 0.0
      %766 = vmatpush1.msra.mxu0 0.0
      %767 = vmatprep.subr.mxu0 0.0
      %768 = vmatpush1.msra.mxu0 0.0
      %769 = vmatprep.subr.mxu0 0.0
      %770 = vmatpush1.msra.mxu0 0.0
      %771 = vmatprep.subr.mxu0 0.0
      %772 = vmatpush1.msra.mxu0 0.0
      %773 = vmatprep.subr.mxu0 0.0
      %774 = vmatpush1.msra.mxu0 0.0
      %775 = vmatprep.subr.mxu0 0.0
      %776 = vmatpush1.msra.mxu0 0.0
      %777 = vmatprep.subr.mxu0 0.0
      %778 = vmatpush1.msra.mxu0 0.0
      %779 = vmatprep.subr.mxu0 0.0
      %780 = vmatpush1.msra.mxu0 0.0
      %781 = vmatprep.subr.mxu0 0.0
      %782 = vmatpush1.msra.mxu0 0.0
      %783 = vmatprep.subr.mxu0 0.0
      %784 = vmatpush1.msra.mxu0 0.0
      %785 = vmatprep.subr.mxu0 0.0
      %786 = vmatpush1.msra.mxu0 0.0
      %787 = vmatprep.subr.mxu0 0.0
      %788 = vmatpush1.msra.mxu0 0.0
      %789 = vmatprep.mubr.f32.mxu0 0.0
      %790 = vmatmul.mubr.f32.gmra.mrb[0].mxu0 %v723
      %v791 = vpop.f32.mrb[0].mxu0
      %v792 = vadd.f32 %v720, %v791
      %v793 = vpop.f32.mrb[0].mxu0
      %794 = vdwg.mxu0
      %796 = vrot.lane.b32.xlu0 %v792, 96
      %v797 = vpop.permute.xlu0 %796
      %vm798 = vcmask 64512
      %v799 = vsel %vm798, %v792, 0
      %v801 = vsel %vm798, %v797, 0
      %803 = vmatprep.subr.mxu0 0.0
      %804 = vmatpush1.xpose.msra.mxu0 %v801
      %805 = vmatprep.subr.mxu0 0.0
      %806 = vmatpush1.xpose.msra.mxu0 0.0
      %807 = vmatprep.subr.mxu0 0.0
      %808 = vmatpush1.xpose.msra.mxu0 0.0
      %809 = vmatprep.subr.mxu0 0.0
      %810 = vmatpush1.xpose.msra.mxu0 0.0
      %811 = vmatprep.subr.mxu0 0.0
      %812 = vmatpush1.xpose.msra.mxu0 0.0
      %813 = vmatprep.subr.mxu0 0.0
      %814 = vmatpush1.xpose.msra.mxu0 0.0
      %815 = vmatprep.subr.mxu0 0.0
      %816 = vmatpush1.xpose.msra.mxu0 0.0
      %817 = vmatprep.subr.mxu0 0.0
      %818 = vmatpush1.xpose.msra.mxu0 0.0
      %819 = vmatprep.subr.mxu0 0.0
      %820 = vmatpush1.xpose.msra.mxu0 0.0
      %821 = vmatprep.subr.mxu0 0.0
      %822 = vmatpush1.xpose.msra.mxu0 0.0
      %823 = vmatprep.subr.mxu0 0.0
      %824 = vmatpush1.xpose.msra.mxu0 0.0
      %825 = vmatprep.subr.mxu0 0.0
      %826 = vmatpush1.xpose.msra.mxu0 0.0
      %827 = vmatprep.subr.mxu0 0.0
      %828 = vmatpush1.xpose.msra.mxu0 0.0
      %829 = vmatprep.subr.mxu0 0.0
      %830 = vmatpush1.xpose.msra.mxu0 0.0
      %831 = vmatprep.subr.mxu0 0.0
      %832 = vmatpush1.xpose.msra.mxu0 0.0
      %833 = vmatprep.subr.mxu0 0.0
      %834 = vmatpush1.xpose.msra.mxu0 0.0
      %835 = vmatprep.subr.mxu0 0.0
      %836 = vmatpush1.xpose.msra.mxu0 0.0
      %837 = vmatprep.subr.mxu0 0.0
      %838 = vmatpush1.xpose.msra.mxu0 0.0
      %839 = vmatprep.subr.mxu0 0.0
      %840 = vmatpush1.xpose.msra.mxu0 0.0
      %841 = vmatprep.subr.mxu0 0.0
      %842 = vmatpush1.xpose.msra.mxu0 0.0
      %843 = vmatprep.subr.mxu0 0.0
      %844 = vmatpush1.xpose.msra.mxu0 0.0
      %845 = vmatprep.subr.mxu0 0.0
      %846 = vmatpush1.xpose.msra.mxu0 0.0
      %847 = vmatprep.subr.mxu0 0.0
      %848 = vmatpush1.xpose.msra.mxu0 0.0
      %849 = vmatprep.subr.mxu0 0.0
      %850 = vmatpush1.xpose.msra.mxu0 0.0
      %851 = vmatprep.subr.mxu0 0.0
      %852 = vmatpush1.xpose.msra.mxu0 0.0
      %853 = vmatprep.subr.mxu0 0.0
      %854 = vmatpush1.xpose.msra.mxu0 0.0
      %855 = vmatprep.subr.mxu0 0.0
      %856 = vmatpush1.xpose.msra.mxu0 0.0
      %857 = vmatprep.subr.mxu0 0.0
      %858 = vmatpush1.xpose.msra.mxu0 0.0
      %859 = vmatprep.subr.mxu0 0.0
      %860 = vmatpush1.xpose.msra.mxu0 0.0
      %861 = vmatprep.subr.mxu0 0.0
      %862 = vmatpush1.xpose.msra.mxu0 0.0
      %863 = vmatprep.subr.mxu0 0.0
      %864 = vmatpush1.xpose.msra.mxu0 0.0
      %865 = vmatprep.subr.mxu0 0.0
      %866 = vmatpush1.xpose.msra.mxu0 0.0
      %867 = vmatprep.mubr.f32.mxu0 0.0
      %868 = vmatmul.mubr.f32.gmra.mrb[0].mxu0 %v799
      %v869 = vpop.f32.mrb[0].mxu0
      %v870 = vadd.f32 0.0, %v869
      %v871 = vpop.f32.mrb[0].mxu0
      %872 = vdwg.mxu0
      %v873 = vmul.f32 %v870, 0.35355338
      %v874 = vsel %vm798, %v873, -inf
      %875 = vmax.xlane.f32.xlu0 %v874
      %v876 = vpop.xlane.xlu0 %875
      %v877 = vsub.f32 %v873, %v876
      %v878 = vmul.f32 %v877, 1.442695
      %v879 = vpow.pop %v878
      %v880 = vsel %vm798, %v879, 0.0
      %881 = vadd.xlane.f32.xlu0 %v880
      %v882 = vpop.xlane.xlu0 %881
      %v883 = vrcp.pop %v882
      %v884 = vmul.f32 %v879, %v883
      %885 = vrot.lane.b32.xlu0 %v792, 64
      %v886 = vpop.permute.xlu0 %885
      %v889 = vsel %vm798, %v884, 0
      %891 = vmatprep.subr.mxu0 0.0
      %892 = vmatpush1.msra.mxu0 %v886
      %893 = vmatprep.subr.mxu0 0.0
      %894 = vmatpush1.msra.mxu0 0.0
      %895 = vmatprep.subr.mxu0 0.0
      %896 = vmatpush1.msra.mxu0 0.0
      %897 = vmatprep.subr.mxu0 0.0
      %898 = vmatpush1.msra.mxu0 0.0
      %899 = vmatprep.subr.mxu0 0.0
      %900 = vmatpush1.msra.mxu0 0.0
      %901 = vmatprep.subr.mxu0 0.0
      %902 = vmatpush1.msra.mxu0 0.0
      %903 = vmatprep.subr.mxu0 0.0
      %904 = vmatpush1.msra.mxu0 0.0
      %905 = vmatprep.subr.mxu0 0.0
      %906 = vmatpush1.msra.mxu0 0.0
      %907 = vmatprep.subr.mxu0 0.0
      %908 = vmatpush1.msra.mxu0 0.0
      %909 = vmatprep.subr.mxu0 0.0
      %910 = vmatpush1.msra.mxu0 0.0
      %911 = vmatprep.subr.mxu0 0.0
      %912 = vmatpush1.msra.mxu0 0.0
      %913 = vmatprep.subr.mxu0 0.0
      %914 = vmatpush1.msra.mxu0 0.0
      %915 = vmatprep.subr.mxu0 0.0
      %916 = vmatpush1.msra.mxu0 0.0
      %917 = vmatprep.subr.mxu0 0.0
      %918 = vmatpush1.msra.mxu0 0.0
      %919 = vmatprep.subr.mxu0 0.0
      %920 = vmatpush1.msra.mxu0 0.0
      %921 = vmatprep.subr.mxu0 0.0
      %922 = vmatpush1.msra.mxu0 0.0
      %923 = vmatprep.subr.mxu0 0.0
      %924 = vmatpush1.msra.mxu0 0.0
      %925 = vmatprep.subr.mxu0 0.0
      %926 = vmatpush1.msra.mxu0 0.0
      %927 = vmatprep.subr.mxu0 0.0
      %928 = vmatpush1.msra.mxu0 0.0
      %929 = vmatprep.subr.mxu0 0.0
      %930 = vmatpush1.msra.mxu0 0.0
      %931 = vmatprep.subr.mxu0 0.0
      %932 = vmatpush1.msra.mxu0 0.0
      %933 = vmatprep.subr.mxu0 0.0
      %934 = vmatpush1.msra.mxu0 0.0
      %935 = vmatprep.subr.mxu0 0.0
      %936 = vmatpush1.msra.mxu0 0.0
      %937 = vmatprep.subr.mxu0 0.0
      %938 = vmatpush1.msra.mxu0 0.0
      %939 = vmatprep.subr.mxu0 0.0
      %940 = vmatpush1.msra.mxu0 0.0
      %941 = vmatprep.subr.mxu0 0.0
      %942 = vmatpush1.msra.mxu0 0.0
      %943 = vmatprep.subr.mxu0 0.0
      %944 = vmatpush1.msra.mxu0 0.0
      %945 = vmatprep.subr.mxu0 0.0
      %946 = vmatpush1.msra.mxu0 0.0
      %947 = vmatprep.subr.mxu0 0.0
      %948 = vmatpush1.msra.mxu0 0.0
      %949 = vmatprep.subr.mxu0 0.0
      %950 = vmatpush1.msra.mxu0 0.0
      %951 = vmatprep.subr.mxu0 0.0
      %952 = vmatpush1.msra.mxu0 0.0
      %953 = vmatprep.subr.mxu0 0.0
      %954 = vmatpush1.msra.mxu0 0.0
      %955 = vmatprep.mubr.f32.mxu0 0.0
      %956 = vmatmul.mubr.f32.gmra.mrb[0].mxu0 %v889
      %v957 = vpop.f32.mrb[0].mxu0
      %v958 = vadd.f32 0.0, %v957
      %v959 = vpop.f32.mrb[0].mxu0
      %960 = vdwg.mxu0
      %961 = vrot.lane.b32.xlu0 %v792, 120
      %v962 = vpop.permute.xlu0 %961
      %963 = vrot.lane.b32.xlu0 %v792, 88
      %v964 = vpop.permute.xlu0 %963
      %v965 = vsel %vm798, %v962, 0
      %v967 = vsel %vm798, %v964, 0
      %969 = vmatprep.subr.mxu0 0.0
      %970 = vmatpush1.xpose.msra.mxu0 %v967
      %971 = vmatprep.subr.mxu0 0.0
      %972 = vmatpush1.xpose.msra.mxu0 0.0
      %973 = vmatprep.subr.mxu0 0.0
      %974 = vmatpush1.xpose.msra.mxu0 0.0
      %975 = vmatprep.subr.mxu0 0.0
      %976 = vmatpush1.xpose.msra.mxu0 0.0
      %977 = vmatprep.subr.mxu0 0.0
      %978 = vmatpush1.xpose.msra.mxu0 0.0
      %979 = vmatprep.subr.mxu0 0.0
      %980 = vmatpush1.xpose.msra.mxu0 0.0
      %981 = vmatprep.subr.mxu0 0.0
      %982 = vmatpush1.xpose.msra.mxu0 0.0
      %983 = vmatprep.subr.mxu0 0.0
      %984 = vmatpush1.xpose.msra.mxu0 0.0
      %985 = vmatprep.subr.mxu0 0.0
      %986 = vmatpush1.xpose.msra.mxu0 0.0
      %987 = vmatprep.subr.mxu0 0.0
      %988 = vmatpush1.xpose.msra.mxu0 0.0
      %989 = vmatprep.subr.mxu0 0.0
      %990 = vmatpush1.xpose.msra.mxu0 0.0
      %991 = vmatprep.subr.mxu0 0.0
      %992 = vmatpush1.xpose.msra.mxu0 0.0
      %993 = vmatprep.subr.mxu0 0.0
      %994 = vmatpush1.xpose.msra.mxu0 0.0
      %995 = vmatprep.subr.mxu0 0.0
      %996 = vmatpush1.xpose.msra.mxu0 0.0
      %997 = vmatprep.subr.mxu0 0.0
      %998 = vmatpush1.xpose.msra.mxu0 0.0
      %999 = vmatprep.subr.mxu0 0.0
      %1000 = vmatpush1.xpose.msra.mxu0 0.0
      %1001 = vmatprep.subr.mxu0 0.0
      %1002 = vmatpush1.xpose.msra.mxu0 0.0
      %1003 = vmatprep.subr.mxu0 0.0
      %1004 = vmatpush1.xpose.msra.mxu0 0.0
      %1005 = vmatprep.subr.mxu0 0.0
      %1006 = vmatpush1.xpose.msra.mxu0 0.0
      %1007 = vmatprep.subr.mxu0 0.0
      %1008 = vmatpush1.xpose.msra.mxu0 0.0
      %1009 = vmatprep.subr.mxu0 0.0
      %1010 = vmatpush1.xpose.msra.mxu0 0.0
      %1011 = vmatprep.subr.mxu0 0.0
      %1012 = vmatpush1.xpose.msra.mxu0 0.0
      %1013 = vmatprep.subr.mxu0 0.0
      %1014 = vmatpush1.xpose.msra.mxu0 0.0
      %1015 = vmatprep.subr.mxu0 0.0
      %1016 = vmatpush1.xpose.msra.mxu0 0.0
      %1017 = vmatprep.subr.mxu0 0.0
      %1018 = vmatpush1.xpose.msra.mxu0 0.0
      %1019 = vmatprep.subr.mxu0 0.0
      %1020 = vmatpush1.xpose.msra.mxu0 0.0
      %1021 = vmatprep.subr.mxu0 0.0
      %1022 = vmatpush1.xpose.msra.mxu0 0.0
      %1023 = vmatprep.subr.mxu0 0.0
      %1024 = vmatpush1.xpose.msra.mxu0 0.0
      %1025 = vmatprep.subr.mxu0 0.0
      %1026 = vmatpush1.xpose.msra.mxu0 0.0
      %1027 = vmatprep.subr.mxu0 0.0
      %1028 = vmatpush1.xpose.msra.mxu0 0.0
      %1029 = vmatprep.subr.mxu0 0.0
      %1030 = vmatpush1.xpose.msra.mxu0 0.0
      %1031 = vmatprep.subr.mxu0 0.0
      %1032 = vmatpush1.xpose.msra.mxu0 0.0
      %1033 = vmatprep.mubr.f32.mxu0 0.0
      %1034 = vmatmul.mubr.f32.gmra.mrb[0].mxu0 %v965
      %v1035 = vpop.f32.mrb[0].mxu0
      %v1036 = vadd.f32 0.0, %v1035
      %v1037 = vpop.f32.mrb[0].mxu0
      %1038 = vdwg.mxu0
      %v1039 = vmul.f32 %v1036, 0.35355338
      %v1040 = vsel %vm798, %v1039, -inf
      %1041 = vmax.xlane.f32.xlu0 %v1040
      %v1042 = vpop.xlane.xlu0 %1041
      %v1043 = vsub.f32 %v1039, %v1042
      %v1044 = vmul.f32 %v1043, 1.442695
      %v1045 = vpow.pop %v1044
      %v1046 = vsel %vm798, %v1045, 0.0
      %1047 = vadd.xlane.f32.xlu0 %v1046
      %v1048 = vpop.xlane.xlu0 %1047
      %v1049 = vrcp.pop %v1048
      %v1050 = vmul.f32 %v1045, %v1049
      %1051 = vrot.lane.b32.xlu0 %v792, 56
      %v1052 = vpop.permute.xlu0 %1051
      %v1055 = vsel %vm798, %v1050, 0
      %1057 = vmatprep.subr.mxu0 0.0
      %1058 = vmatpush1.msra.mxu0 %v1052
      %1059 = vmatprep.subr.mxu0 0.0
      %1060 = vmatpush1.msra.mxu0 0.0
      %1061 = vmatprep.subr.mxu0 0.0
      %1062 = vmatpush1.msra.mxu0 0.0
      %1063 = vmatprep.subr.mxu0 0.0
      %1064 = vmatpush1.msra.mxu0 0.0
      %1065 = vmatprep.subr.mxu0 0.0
      %1066 = vmatpush1.msra.mxu0 0.0
      %1067 = vmatprep.subr.mxu0 0.0
      %1068 = vmatpush1.msra.mxu0 0.0
      %1069 = vmatprep.subr.mxu0 0.0
      %1070 = vmatpush1.msra.mxu0 0.0
      %1071 = vmatprep.subr.mxu0 0.0
      %1072 = vmatpush1.msra.mxu0 0.0
      %1073 = vmatprep.subr.mxu0 0.0
      %1074 = vmatpush1.msra.mxu0 0.0
      %1075 = vmatprep.subr.mxu0 0.0
      %1076 = vmatpush1.msra.mxu0 0.0
      %1077 = vmatprep.subr.mxu0 0.0
      %1078 = vmatpush1.msra.mxu0 0.0
      %1079 = vmatprep.subr.mxu0 0.0
      %1080 = vmatpush1.msra.mxu0 0.0
      %1081 = vmatprep.subr.mxu0 0.0
      %1082 = vmatpush1.msra.mxu0 0.0
      %1083 = vmatprep.subr.mxu0 0.0
      %1084 = vmatpush1.msra.mxu0 0.0
      %1085 = vmatprep.subr.mxu0 0.0
      %1086 = vmatpush1.msra.mxu0 0.0
      %1087 = vmatprep.subr.mxu0 0.0
      %1088 = vmatpush1.msra.mxu0 0.0
      %1089 = vmatprep.subr.mxu0 0.0
      %1090 = vmatpush1.msra.mxu0 0.0
      %1091 = vmatprep.subr.mxu0 0.0
      %1092 = vmatpush1.msra.mxu0 0.0
      %1093 = vmatprep.subr.mxu0 0.0
      %1094 = vmatpush1.msra.mxu0 0.0
      %1095 = vmatprep.subr.mxu0 0.0
      %1096 = vmatpush1.msra.mxu0 0.0
      %1097 = vmatprep.subr.mxu0 0.0
      %1098 = vmatpush1.msra.mxu0 0.0
      %1099 = vmatprep.subr.mxu0 0.0
      %1100 = vmatpush1.msra.mxu0 0.0
      %1101 = vmatprep.subr.mxu0 0.0
      %1102 = vmatpush1.msra.mxu0 0.0
      %1103 = vmatprep.subr.mxu0 0.0
      %1104 = vmatpush1.msra.mxu0 0.0
      %1105 = vmatprep.subr.mxu0 0.0
      %1106 = vmatpush1.msra.mxu0 0.0
      %1107 = vmatprep.subr.mxu0 0.0
      %1108 = vmatpush1.msra.mxu0 0.0
      %1109 = vmatprep.subr.mxu0 0.0
      %1110 = vmatpush1.msra.mxu0 0.0
      %1111 = vmatprep.subr.mxu0 0.0
      %1112 = vmatpush1.msra.mxu0 0.0
      %1113 = vmatprep.subr.mxu0 0.0
      %1114 = vmatpush1.msra.mxu0 0.0
      %1115 = vmatprep.subr.mxu0 0.0
      %1116 = vmatpush1.msra.mxu0 0.0
      %1117 = vmatprep.subr.mxu0 0.0
      %1118 = vmatpush1.msra.mxu0 0.0
      %1119 = vmatprep.subr.mxu0 0.0
      %1120 = vmatpush1.msra.mxu0 0.0
      %1121 = vmatprep.mubr.f32.mxu0 0.0
      %1122 = vmatmul.mubr.f32.gmra.mrb[0].mxu0 %v1055
      %v1123 = vpop.f32.mrb[0].mxu0
      %v1124 = vadd.f32 0.0, %v1123
      %v1125 = vpop.f32.mrb[0].mxu0
      %1126 = vdwg.mxu0
      %1127 = vrot.lane.b32.xlu0 %v792, 112
      %v1128 = vpop.permute.xlu0 %1127
      %1129 = vrot.lane.b32.xlu0 %v792, 80
      %v1130 = vpop.permute.xlu0 %1129
      %v1131 = vsel %vm798, %v1128, 0
      %v1133 = vsel %vm798, %v1130, 0
      %1135 = vmatprep.subr.mxu0 0.0
      %1136 = vmatpush1.xpose.msra.mxu0 %v1133
      %1137 = vmatprep.subr.mxu0 0.0
      %1138 = vmatpush1.xpose.msra.mxu0 0.0
      %1139 = vmatprep.subr.mxu0 0.0
      %1140 = vmatpush1.xpose.msra.mxu0 0.0
      %1141 = vmatprep.subr.mxu0 0.0
      %1142 = vmatpush1.xpose.msra.mxu0 0.0
      %1143 = vmatprep.subr.mxu0 0.0
      %1144 = vmatpush1.xpose.msra.mxu0 0.0
      %1145 = vmatprep.subr.mxu0 0.0
      %1146 = vmatpush1.xpose.msra.mxu0 0.0
      %1147 = vmatprep.subr.mxu0 0.0
      %1148 = vmatpush1.xpose.msra.mxu0 0.0
      %1149 = vmatprep.subr.mxu0 0.0
      %1150 = vmatpush1.xpose.msra.mxu0 0.0
      %1151 = vmatprep.subr.mxu0 0.0
      %1152 = vmatpush1.xpose.msra.mxu0 0.0
      %1153 = vmatprep.subr.mxu0 0.0
      %1154 = vmatpush1.xpose.msra.mxu0 0.0
      %1155 = vmatprep.subr.mxu0 0.0
      %1156 = vmatpush1.xpose.msra.mxu0 0.0
      %1157 = vmatprep.subr.mxu0 0.0
      %1158 = vmatpush1.xpose.msra.mxu0 0.0
      %1159 = vmatprep.subr.mxu0 0.0
      %1160 = vmatpush1.xpose.msra.mxu0 0.0
      %1161 = vmatprep.subr.mxu0 0.0
      %1162 = vmatpush1.xpose.msra.mxu0 0.0
      %1163 = vmatprep.subr.mxu0 0.0
      %1164 = vmatpush1.xpose.msra.mxu0 0.0
      %1165 = vmatprep.subr.mxu0 0.0
      %1166 = vmatpush1.xpose.msra.mxu0 0.0
      %1167 = vmatprep.subr.mxu0 0.0
      %1168 = vmatpush1.xpose.msra.mxu0 0.0
      %1169 = vmatprep.subr.mxu0 0.0
      %1170 = vmatpush1.xpose.msra.mxu0 0.0
      %1171 = vmatprep.subr.mxu0 0.0
      %1172 = vmatpush1.xpose.msra.mxu0 0.0
      %1173 = vmatprep.subr.mxu0 0.0
      %1174 = vmatpush1.xpose.msra.mxu0 0.0
      %1175 = vmatprep.subr.mxu0 0.0
      %1176 = vmatpush1.xpose.msra.mxu0 0.0
      %1177 = vmatprep.subr.mxu0 0.0
      %1178 = vmatpush1.xpose.msra.mxu0 0.0
      %1179 = vmatprep.subr.mxu0 0.0
      %1180 = vmatpush1.xpose.msra.mxu0 0.0
      %1181 = vmatprep.subr.mxu0 0.0
      %1182 = vmatpush1.xpose.msra.mxu0 0.0
      %1183 = vmatprep.subr.mxu0 0.0
      %1184 = vmatpush1.xpose.msra.mxu0 0.0
      %1185 = vmatprep.subr.mxu0 0.0
      %1186 = vmatpush1.xpose.msra.mxu0 0.0
      %1187 = vmatprep.subr.mxu0 0.0
      %1188 = vmatpush1.xpose.msra.mxu0 0.0
      %1189 = vmatprep.subr.mxu0 0.0
      %1190 = vmatpush1.xpose.msra.mxu0 0.0
      %1191 = vmatprep.subr.mxu0 0.0
      %1192 = vmatpush1.xpose.msra.mxu0 0.0
      %1193 = vmatprep.subr.mxu0 0.0
      %1194 = vmatpush1.xpose.msra.mxu0 0.0
      %1195 = vmatprep.subr.mxu0 0.0
      %1196 = vmatpush1.xpose.msra.mxu0 0.0
      %1197 = vmatprep.subr.mxu0 0.0
      %1198 = vmatpush1.xpose.msra.mxu0 0.0
      %1199 = vmatprep.mubr.f32.mxu0 0.0
      %1200 = vmatmul.mubr.f32.gmra.mrb[0].mxu0 %v1131
      %v1201 = vpop.f32.mrb[0].mxu0
      %v1202 = vadd.f32 0.0, %v1201
      %v1203 = vpop.f32.mrb[0].mxu0
      %1204 = vdwg.mxu0
      %v1205 = vmul.f32 %v1202, 0.35355338
      %v1206 = vsel %vm798, %v1205, -inf
      %1207 = vmax.xlane.f32.xlu0 %v1206
      %v1208 = vpop.xlane.xlu0 %1207
      %v1209 = vsub.f32 %v1205, %v1208
      %v1210 = vmul.f32 %v1209, 1.442695
      %v1211 = vpow.pop %v1210
      %v1212 = vsel %vm798, %v1211, 0.0
      %1213 = vadd.xlane.f32.xlu0 %v1212
      %v1214 = vpop.xlane.xlu0 %1213
      %v1215 = vrcp.pop %v1214
      %v1216 = vmul.f32 %v1211, %v1215
      %1217 = vrot.lane.b32.xlu0 %v792, 48
      %v1218 = vpop.permute.xlu0 %1217
      %v1221 = vsel %vm798, %v1216, 0
      %1223 = vmatprep.subr.mxu0 0.0
      %1224 = vmatpush1.msra.mxu0 %v1218
      %1225 = vmatprep.subr.mxu0 0.0
      %1226 = vmatpush1.msra.mxu0 0.0
      %1227 = vmatprep.subr.mxu0 0.0
      %1228 = vmatpush1.msra.mxu0 0.0
      %1229 = vmatprep.subr.mxu0 0.0
      %1230 = vmatpush1.msra.mxu0 0.0
      %1231 = vmatprep.subr.mxu0 0.0
      %1232 = vmatpush1.msra.mxu0 0.0
      %1233 = vmatprep.subr.mxu0 0.0
      %1234 = vmatpush1.msra.mxu0 0.0
      %1235 = vmatprep.subr.mxu0 0.0
      %1236 = vmatpush1.msra.mxu0 0.0
      %1237 = vmatprep.subr.mxu0 0.0
      %1238 = vmatpush1.msra.mxu0 0.0
      %1239 = vmatprep.subr.mxu0 0.0
      %1240 = vmatpush1.msra.mxu0 0.0
      %1241 = vmatprep.subr.mxu0 0.0
      %1242 = vmatpush1.msra.mxu0 0.0
      %1243 = vmatprep.subr.mxu0 0.0
      %1244 = vmatpush1.msra.mxu0 0.0
      %1245 = vmatprep.subr.mxu0 0.0
      %1246 = vmatpush1.msra.mxu0 0.0
      %1247 = vmatprep.subr.mxu0 0.0
      %1248 = vmatpush1.msra.mxu0 0.0
      %1249 = vmatprep.subr.mxu0 0.0
      %1250 = vmatpush1.msra.mxu0 0.0
      %1251 = vmatprep.subr.mxu0 0.0
      %1252 = vmatpush1.msra.mxu0 0.0
      %1253 = vmatprep.subr.mxu0 0.0
      %1254 = vmatpush1.msra.mxu0 0.0
      %1255 = vmatprep.subr.mxu0 0.0
      %1256 = vmatpush1.msra.mxu0 0.0
      %1257 = vmatprep.subr.mxu0 0.0
      %1258 = vmatpush1.msra.mxu0 0.0
      %1259 = vmatprep.subr.mxu0 0.0
      %1260 = vmatpush1.msra.mxu0 0.0
      %1261 = vmatprep.subr.mxu0 0.0
      %1262 = vmatpush1.msra.mxu0 0.0
      %1263 = vmatprep.subr.mxu0 0.0
      %1264 = vmatpush1.msra.mxu0 0.0
      %1265 = vmatprep.subr.mxu0 0.0
      %1266 = vmatpush1.msra.mxu0 0.0
      %1267 = vmatprep.subr.mxu0 0.0
      %1268 = vmatpush1.msra.mxu0 0.0
      %1269 = vmatprep.subr.mxu0 0.0
      %1270 = vmatpush1.msra.mxu0 0.0
      %1271 = vmatprep.subr.mxu0 0.0
      %1272 = vmatpush1.msra.mxu0 0.0
      %1273 = vmatprep.subr.mxu0 0.0
      %1274 = vmatpush1.msra.mxu0 0.0
      %1275 = vmatprep.subr.mxu0 0.0
      %1276 = vmatpush1.msra.mxu0 0.0
      %1277 = vmatprep.subr.mxu0 0.0
      %1278 = vmatpush1.msra.mxu0 0.0
      %1279 = vmatprep.subr.mxu0 0.0
      %1280 = vmatpush1.msra.mxu0 0.0
      %1281 = vmatprep.subr.mxu0 0.0
      %1282 = vmatpush1.msra.mxu0 0.0
      %1283 = vmatprep.subr.mxu0 0.0
      %1284 = vmatpush1.msra.mxu0 0.0
      %1285 = vmatprep.subr.mxu0 0.0
      %1286 = vmatpush1.msra.mxu0 0.0
      %1287 = vmatprep.mubr.f32.mxu0 0.0
      %1288 = vmatmul.mubr.f32.gmra.mrb[0].mxu0 %v1221
      %v1289 = vpop.f32.mrb[0].mxu0
      %v1290 = vadd.f32 0.0, %v1289
      %v1291 = vpop.f32.mrb[0].mxu0
      %1292 = vdwg.mxu0
      %1293 = vrot.lane.b32.xlu0 %v792, 104
      %v1294 = vpop.permute.xlu0 %1293
      %1295 = vrot.lane.b32.xlu0 %v792, 72
      %v1296 = vpop.permute.xlu0 %1295
      %v1297 = vsel %vm798, %v1294, 0
      %v1299 = vsel %vm798, %v1296, 0
      %1301 = vmatprep.subr.mxu0 0.0
      %1302 = vmatpush1.xpose.msra.mxu0 %v1299
      %1303 = vmatprep.subr.mxu0 0.0
      %1304 = vmatpush1.xpose.msra.mxu0 0.0
      %1305 = vmatprep.subr.mxu0 0.0
      %1306 = vmatpush1.xpose.msra.mxu0 0.0
      %1307 = vmatprep.subr.mxu0 0.0
      %1308 = vmatpush1.xpose.msra.mxu0 0.0
      %1309 = vmatprep.subr.mxu0 0.0
      %1310 = vmatpush1.xpose.msra.mxu0 0.0
      %1311 = vmatprep.subr.mxu0 0.0
      %1312 = vmatpush1.xpose.msra.mxu0 0.0
      %1313 = vmatprep.subr.mxu0 0.0
      %1314 = vmatpush1.xpose.msra.mxu0 0.0
      %1315 = vmatprep.subr.mxu0 0.0
      %1316 = vmatpush1.xpose.msra.mxu0 0.0
      %1317 = vmatprep.subr.mxu0 0.0
      %1318 = vmatpush1.xpose.msra.mxu0 0.0
      %1319 = vmatprep.subr.mxu0 0.0
      %1320 = vmatpush1.xpose.msra.mxu0 0.0
      %1321 = vmatprep.subr.mxu0 0.0
      %1322 = vmatpush1.xpose.msra.mxu0 0.0
      %1323 = vmatprep.subr.mxu0 0.0
      %1324 = vmatpush1.xpose.msra.mxu0 0.0
      %1325 = vmatprep.subr.mxu0 0.0
      %1326 = vmatpush1.xpose.msra.mxu0 0.0
      %1327 = vmatprep.subr.mxu0 0.0
      %1328 = vmatpush1.xpose.msra.mxu0 0.0
      %1329 = vmatprep.subr.mxu0 0.0
      %1330 = vmatpush1.xpose.msra.mxu0 0.0
      %1331 = vmatprep.subr.mxu0 0.0
      %1332 = vmatpush1.xpose.msra.mxu0 0.0
      %1333 = vmatprep.subr.mxu0 0.0
      %1334 = vmatpush1.xpose.msra.mxu0 0.0
      %1335 = vmatprep.subr.mxu0 0.0
      %1336 = vmatpush1.xpose.msra.mxu0 0.0
      %1337 = vmatprep.subr.mxu0 0.0
      %1338 = vmatpush1.xpose.msra.mxu0 0.0
      %1339 = vmatprep.subr.mxu0 0.0
      %1340 = vmatpush1.xpose.msra.mxu0 0.0
      %1341 = vmatprep.subr.mxu0 0.0
      %1342 = vmatpush1.xpose.msra.mxu0 0.0
      %1343 = vmatprep.subr.mxu0 0.0
      %1344 = vmatpush1.xpose.msra.mxu0 0.0
      %1345 = vmatprep.subr.mxu0 0.0
      %1346 = vmatpush1.xpose.msra.mxu0 0.0
      %1347 = vmatprep.subr.mxu0 0.0
      %1348 = vmatpush1.xpose.msra.mxu0 0.0
      %1349 = vmatprep.subr.mxu0 0.0
      %1350 = vmatpush1.xpose.msra.mxu0 0.0
      %1351 = vmatprep.subr.mxu0 0.0
      %1352 = vmatpush1.xpose.msra.mxu0 0.0
      %1353 = vmatprep.subr.mxu0 0.0
      %1354 = vmatpush1.xpose.msra.mxu0 0.0
      %1355 = vmatprep.subr.mxu0 0.0
      %1356 = vmatpush1.xpose.msra.mxu0 0.0
      %1357 = vmatprep.subr.mxu0 0.0
      %1358 = vmatpush1.xpose.msra.mxu0 0.0
      %1359 = vmatprep.subr.mxu0 0.0
      %1360 = vmatpush1.xpose.msra.mxu0 0.0
      %1361 = vmatprep.subr.mxu0 0.0
      %1362 = vmatpush1.xpose.msra.mxu0 0.0
      %1363 = vmatprep.subr.mxu0 0.0
      %1364 = vmatpush1.xpose.msra.mxu0 0.0
      %1365 = vmatprep.mubr.f32.mxu0 0.0
      %1366 = vmatmul.mubr.f32.gmra.mrb[0].mxu0 %v1297
      %v1367 = vpop.f32.mrb[0].mxu0
      %v1368 = vadd.f32 0.0, %v1367
      %v1369 = vpop.f32.mrb[0].mxu0
      %1370 = vdwg.mxu0
      %v1371 = vmul.f32 %v1368, 0.35355338
      %v1372 = vsel %vm798, %v1371, -inf
      %1373 = vmax.xlane.f32.xlu0 %v1372
      %v1374 = vpop.xlane.xlu0 %1373
      %v1375 = vsub.f32 %v1371, %v1374
      %v1376 = vmul.f32 %v1375, 1.442695
      %v1377 = vpow.pop %v1376
      %v1378 = vsel %vm798, %v1377, 0.0
      %1379 = vadd.xlane.f32.xlu0 %v1378
      %v1380 = vpop.xlane.xlu0 %1379
      %v1381 = vrcp.pop %v1380
      %v1382 = vmul.f32 %v1377, %v1381
      %1383 = vrot.lane.b32.xlu0 %v792, 40
      %v1384 = vpop.permute.xlu0 %1383
      %v1387 = vsel %vm798, %v1382, 0
      %1389 = vmatprep.subr.mxu0 0.0
      %1390 = vmatpush1.msra.mxu0 %v1384
      %1391 = vmatprep.subr.mxu0 0.0
      %1392 = vmatpush1.msra.mxu0 0.0
      %1393 = vmatprep.subr.mxu0 0.0
      %1394 = vmatpush1.msra.mxu0 0.0
      %1395 = vmatprep.subr.mxu0 0.0
      %1396 = vmatpush1.msra.mxu0 0.0
      %1397 = vmatprep.subr.mxu0 0.0
      %1398 = vmatpush1.msra.mxu0 0.0
      %1399 = vmatprep.subr.mxu0 0.0
      %1400 = vmatpush1.msra.mxu0 0.0
      %1401 = vmatprep.subr.mxu0 0.0
      %1402 = vmatpush1.msra.mxu0 0.0
      %1403 = vmatprep.subr.mxu0 0.0
      %1404 = vmatpush1.msra.mxu0 0.0
      %1405 = vmatprep.subr.mxu0 0.0
      %1406 = vmatpush1.msra.mxu0 0.0
      %1407 = vmatprep.subr.mxu0 0.0
      %1408 = vmatpush1.msra.mxu0 0.0
      %1409 = vmatprep.subr.mxu0 0.0
      %1410 = vmatpush1.msra.mxu0 0.0
      %1411 = vmatprep.subr.mxu0 0.0
      %1412 = vmatpush1.msra.mxu0 0.0
      %1413 = vmatprep.subr.mxu0 0.0
      %1414 = vmatpush1.msra.mxu0 0.0
      %1415 = vmatprep.subr.mxu0 0.0
      %1416 = vmatpush1.msra.mxu0 0.0
      %1417 = vmatprep.subr.mxu0 0.0
      %1418 = vmatpush1.msra.mxu0 0.0
      %1419 = vmatprep.subr.mxu0 0.0
      %1420 = vmatpush1.msra.mxu0 0.0
      %1421 = vmatprep.subr.mxu0 0.0
      %1422 = vmatpush1.msra.mxu0 0.0
      %1423 = vmatprep.subr.mxu0 0.0
      %1424 = vmatpush1.msra.mxu0 0.0
      %1425 = vmatprep.subr.mxu0 0.0
      %1426 = vmatpush1.msra.mxu0 0.0
      %1427 = vmatprep.subr.mxu0 0.0
      %1428 = vmatpush1.msra.mxu0 0.0
      %1429 = vmatprep.subr.mxu0 0.0
      %1430 = vmatpush1.msra.mxu0 0.0
      %1431 = vmatprep.subr.mxu0 0.0
      %1432 = vmatpush1.msra.mxu0 0.0
      %1433 = vmatprep.subr.mxu0 0.0
      %1434 = vmatpush1.msra.mxu0 0.0
      %1435 = vmatprep.subr.mxu0 0.0
      %1436 = vmatpush1.msra.mxu0 0.0
      %1437 = vmatprep.subr.mxu0 0.0
      %1438 = vmatpush1.msra.mxu0 0.0
      %1439 = vmatprep.subr.mxu0 0.0
      %1440 = vmatpush1.msra.mxu0 0.0
      %1441 = vmatprep.subr.mxu0 0.0
      %1442 = vmatpush1.msra.mxu0 0.0
      %1443 = vmatprep.subr.mxu0 0.0
      %1444 = vmatpush1.msra.mxu0 0.0
      %1445 = vmatprep.subr.mxu0 0.0
      %1446 = vmatpush1.msra.mxu0 0.0
      %1447 = vmatprep.subr.mxu0 0.0
      %1448 = vmatpush1.msra.mxu0 0.0
      %1449 = vmatprep.subr.mxu0 0.0
      %1450 = vmatpush1.msra.mxu0 0.0
      %1451 = vmatprep.subr.mxu0 0.0
      %1452 = vmatpush1.msra.mxu0 0.0
      %1453 = vmatprep.mubr.f32.mxu0 0.0
      %1454 = vmatmul.mubr.f32.gmra.mrb[0].mxu0 %v1387
      %v1455 = vpop.f32.mrb[0].mxu0
      %v1456 = vadd.f32 0.0, %v1455
      %v1457 = vpop.f32.mrb[0].mxu0
      %1458 = vdwg.mxu0
      %1460 = vrot.lane.b32.xlu0 %v1124, 8
      %v1461 = vpop.permute.xlu0 %1460
      %1464 = vrot.lane.b32.xlu0 %v1290, 16
      %v1465 = vpop.permute.xlu0 %1464
      %1468 = vrot.lane.b32.xlu0 %v1456, 24
      %v1469 = vpop.permute.xlu0 %1468
      %v1471 = vsel %vm798, %v958, %v1461
      %vm1472 = vcmask 130048
      %v1473 = vsel %vm1472, %v1471, %v1465
      %vm1474 = vcmask 195584
      %v1475 = vsel %vm1474, %v1473, %v1469
      %v1476 = vld [vmem:[%s8] sm:$0xff]
      %v1477 = vld [vmem:[%s8 + $0x8] sm:$0xff]
      %v1478 = vld [vmem:[%s8 + $0x10] sm:$0xff]
      %v1479 = vld [vmem:[%s8 + $0x18] sm:$0xff]
      %v1480 = vld [vmem:[%s9] sm:$0x1]
      %v1482 = vlaneseq
      %v1483 = vshrl.u32 %v1482, 7
      %v1484 = vsub.s32 0, %v1483
      %v1485 = vrot.slane %v1480, %v1484
      %v1488 = vsel %vm682, %v1475, 0
      %1490 = vmatprep.subr.mxu0 0.0
      %1491 = vmatpush1.msra.mxu0 %v1476
      %1492 = vmatprep.subr.mxu0 0.0
      %1493 = vmatpush1.msra.mxu0 %v1477
      %1494 = vmatprep.subr.mxu0 0.0
      %1495 = vmatpush1.msra.mxu0 %v1478
      %1496 = vmatprep.subr.mxu0 0.0
      %1497 = vmatpush1.msra.mxu0 %v1479
      %1498 = vmatprep.subr.mxu0 0.0
      %1499 = vmatpush1.msra.mxu0 0.0
      %1500 = vmatprep.subr.mxu0 0.0
      %1501 = vmatpush1.msra.mxu0 0.0
      %1502 = vmatprep.subr.mxu0 0.0
      %1503 = vmatpush1.msra.mxu0 0.0
      %1504 = vmatprep.subr.mxu0 0.0
      %1505 = vmatpush1.msra.mxu0 0.0
      %1506 = vmatprep.subr.mxu0 0.0
      %1507 = vmatpush1.msra.mxu0 0.0
      %1508 = vmatprep.subr.mxu0 0.0
      %1509 = vmatpush1.msra.mxu0 0.0
      %1510 = vmatprep.subr.mxu0 0.0
      %1511 = vmatpush1.msra.mxu0 0.0
      %1512 = vmatprep.subr.mxu0 0.0
      %1513 = vmatpush1.msra.mxu0 0.0
      %1514 = vmatprep.subr.mxu0 0.0
      %1515 = vmatpush1.msra.mxu0 0.0
      %1516 = vmatprep.subr.mxu0 0.0
      %1517 = vmatpush1.msra.mxu0 0.0
      %1518 = vmatprep.subr.mxu0 0.0
      %1519 = vmatpush1.msra.mxu0 0.0
      %1520 = vmatprep.subr.mxu0 0.0
      %1521 = vmatpush1.msra.mxu0 0.0
      %1522 = vmatprep.subr.mxu0 0.0
      %1523 = vmatpush1.msra.mxu0 0.0
      %1524 = vmatprep.subr.mxu0 0.0
      %1525 = vmatpush1.msra.mxu0 0.0
      %1526 = vmatprep.subr.mxu0 0.0
      %1527 = vmatpush1.msra.mxu0 0.0
      %1528 = vmatprep.subr.mxu0 0.0
      %1529 = vmatpush1.msra.mxu0 0.0
      %1530 = vmatprep.subr.mxu0 0.0
      %1531 = vmatpush1.msra.mxu0 0.0
      %1532 = vmatprep.subr.mxu0 0.0
      %1533 = vmatpush1.msra.mxu0 0.0
      %1534 = vmatprep.subr.mxu0 0.0
      %1535 = vmatpush1.msra.mxu0 0.0
      %1536 = vmatprep.subr.mxu0 0.0
      %1537 = vmatpush1.msra.mxu0 0.0
      %1538 = vmatprep.subr.mxu0 0.0
      %1539 = vmatpush1.msra.mxu0 0.0
      %1540 = vmatprep.subr.mxu0 0.0
      %1541 = vmatpush1.msra.mxu0 0.0
      %1542 = vmatprep.subr.mxu0 0.0
      %1543 = vmatpush1.msra.mxu0 0.0
      %1544 = vmatprep.subr.mxu0 0.0
      %1545 = vmatpush1.msra.mxu0 0.0
      %1546 = vmatprep.subr.mxu0 0.0
      %1547 = vmatpush1.msra.mxu0 0.0
      %1548 = vmatprep.subr.mxu0 0.0
      %1549 = vmatpush1.msra.mxu0 0.0
      %1550 = vmatprep.subr.mxu0 0.0
      %1551 = vmatpush1.msra.mxu0 0.0
      %1552 = vmatprep.subr.mxu0 0.0
      %1553 = vmatpush1.msra.mxu0 0.0
      %1554 = vmatprep.mubr.f32.mxu0 0.0
      %1555 = vmatmul.mubr.f32.gmra.mrb[0].mxu0 %v1488
      %v1556 = vpop.f32.mrb[0].mxu0
      %v1557 = vadd.f32 %v1485, %v1556
      %v1558 = vpop.f32.mrb[0].mxu0
      %1559 = vdwg.mxu0
      %v1560 = vadd.f32 %v679, %v1557
      %v1561 = vld [vmem:[%s10] sm:$0x1]
      %v1562 = vld [vmem:[%s11] sm:$0x1]
      %v1563 = vsel %vm682, %v1560, 0.0
      %1564 = vadd.xlane.f32.xlu0 %v1563
      %v1565 = vpop.xlane.xlu0 %1564
      %v1566 = vmul.f32 %v1565, %v686
      %v1567 = vsub.f32 %v1560, %v1566
      %v1568 = vmul.f32 %v1567, %v1567
      %v1569 = vsel %vm682, %v1568, 0.0
      %1570 = vadd.xlane.f32.xlu0 %v1569
      %v1571 = vpop.xlane.xlu0 %1570
      %v1572 = vmul.f32 %v1571, %v686
      %v1573 = vadd.f32 %v1572, 1e-05
      %v1574 = vrsqrt.pop %v1573
      %v1575 = vmul.f32 %v1567, %v1574
      %v1577 = vlaneseq
      %v1578 = vshrl.u32 %v1577, 7
      %v1579 = vsub.s32 0, %v1578
      %v1580 = vrot.slane %v1561, %v1579
      %v1582 = vmul.f32 %v1575, %v1580
      %v1584 = vlaneseq
      %v1585 = vshrl.u32 %v1584, 7
      %v1586 = vsub.s32 0, %v1585
      %v1587 = vrot.slane %v1562, %v1586
      %v1589 = vadd.f32 %v1582, %v1587
      %v1590 = vld [vmem:[%s12] sm:$0xff]
      %v1591 = vld [vmem:[%s12 + $0x8] sm:$0xff]
      %v1592 = vld [vmem:[%s12 + $0x10] sm:$0xff]
      %v1593 = vld [vmem:[%s12 + $0x18] sm:$0xff]
      %v1594 = vld [vmem:[%s13] sm:$0x1]
      %v1596 = vlaneseq
      %v1597 = vshrl.u32 %v1596, 7
      %v1598 = vsub.s32 0, %v1597
      %v1599 = vrot.slane %v1594, %v1598
      %v1602 = vsel %vm682, %v1589, 0
      %1604 = vmatprep.subr.mxu0 0.0
      %1605 = vmatpush1.msra.mxu0 %v1590
      %1606 = vmatprep.subr.mxu0 0.0
      %1607 = vmatpush1.msra.mxu0 %v1591
      %1608 = vmatprep.subr.mxu0 0.0
      %1609 = vmatpush1.msra.mxu0 %v1592
      %1610 = vmatprep.subr.mxu0 0.0
      %1611 = vmatpush1.msra.mxu0 %v1593
      %1612 = vmatprep.subr.mxu0 0.0
      %1613 = vmatpush1.msra.mxu0 0.0
      %1614 = vmatprep.subr.mxu0 0.0
      %1615 = vmatpush1.msra.mxu0 0.0
      %1616 = vmatprep.subr.mxu0 0.0
      %1617 = vmatpush1.msra.mxu0 0.0
      %1618 = vmatprep.subr.mxu0 0.0
      %1619 = vmatpush1.msra.mxu0 0.0
      %1620 = vmatprep.subr.mxu0 0.0
      %1621 = vmatpush1.msra.mxu0 0.0
      %1622 = vmatprep.subr.mxu0 0.0
      %1623 = vmatpush1.msra.mxu0 0.0
      %1624 = vmatprep.subr.mxu0 0.0
      %1625 = vmatpush1.msra.mxu0 0.0
      %1626 = vmatprep.subr.mxu0 0.0
      %1627 = vmatpush1.msra.mxu0 0.0
      %1628 = vmatprep.subr.mxu0 0.0
      %1629 = vmatpush1.msra.mxu0 0.0
      %1630 = vmatprep.subr.mxu0 0.0
      %1631 = vmatpush1.msra.mxu0 0.0
      %1632 = vmatprep.subr.mxu0 0.0
      %1633 = vmatpush1.msra.mxu0 0.0
      %1634 = vmatprep.subr.mxu0 0.0
      %1635 = vmatpush1.msra.mxu0 0.0
      %1636 = vmatprep.subr.mxu0 0.0
      %1637 = vmatpush1.msra.mxu0 0.0
      %1638 = vmatprep.subr.mxu0 0.0
      %1639 = vmatpush1.msra.mxu0 0.0
      %1640 = vmatprep.subr.mxu0 0.0
      %1641 = vmatpush1.msra.mxu0 0.0
      %1642 = vmatprep.subr.mxu0 0.0
      %1643 = vmatpush1.msra.mxu0 0.0
      %1644 = vmatprep.subr.mxu0 0.0
      %1645 = vmatpush1.msra.mxu0 0.0
      %1646 = vmatprep.subr.mxu0 0.0
      %1647 = vmatpush1.msra.mxu0 0.0
      %1648 = vmatprep.subr.mxu0 0.0
      %1649 = vmatpush1.msra.mxu0 0.0
      %1650 = vmatprep.subr.mxu0 0.0
      %1651 = vmatpush1.msra.mxu0 0.0
      %1652 = vmatprep.subr.mxu0 0.0
      %1653 = vmatpush1.msra.mxu0 0.0
      %1654 = vmatprep.subr.mxu0 0.0
      %1655 = vmatpush1.msra.mxu0 0.0
      %1656 = vmatprep.subr.mxu0 0.0
      %1657 = vmatpush1.msra.mxu0 0.0
      %1658 = vmatprep.subr.mxu0 0.0
      %1659 = vmatpush1.msra.mxu0 0.0
      %1660 = vmatprep.subr.mxu0 0.0
      %1661 = vmatpush1.msra.mxu0 0.0
      %1662 = vmatprep.subr.mxu0 0.0
      %1663 = vmatpush1.msra.mxu0 0.0
      %1664 = vmatprep.subr.mxu0 0.0
      %1665 = vmatpush1.msra.mxu0 0.0
      %1666 = vmatprep.subr.mxu0 0.0
      %1667 = vmatpush1.msra.mxu0 0.0
      %1668 = vmatprep.mubr.f32.mxu0 0.0
      %1669 = vmatmul.mubr.f32.gmra.mrb[0].mxu0 %v1602
      %v1670 = vpop.f32.mrb[0].mxu0
      %v1671 = vadd.f32 %v1599, %v1670
      %v1672 = vpop.f32.mrb[0].mxu0
      %1673 = vdwg.mxu0
      %v1674 = vmul.f32 %v1671, 0.5
      %v1675 = vmul.f32 %v1671, 0.044715
      %v1676 = vmul.f32 %v1675, %v1671
      %v1677 = vmul.f32 %v1676, %v1671
      %v1678 = vadd.f32 %v1671, %v1677
      %v1679 = vmul.f32 %v1678, 0.7978846
      %v1680 = vtanh.pop %v1679
      %v1681 = vadd.f32 %v1680, 1.0
      %v1682 = vmul.f32 %v1674, %v1681
      %v1683 = vld [vmem:[%s14] sm:$0xff]
      %v1684 = vld [vmem:[%s14 + $0x8] sm:$0xff]
      %v1685 = vld [vmem:[%s14 + $0x10] sm:$0xff]
      %v1686 = vld [vmem:[%s14 + $0x18] sm:$0xff]
      %v1687 = vld [vmem:[%s14 + $0x20] sm:$0xff]
      %v1688 = vld [vmem:[%s14 + $0x28] sm:$0xff]
      %v1689 = vld [vmem:[%s14 + $0x30] sm:$0xff]
      %v1690 = vld [vmem:[%s14 + $0x38] sm:$0xff]
      %v1691 = vld [vmem:[%s14 + $0x40] sm:$0xff]
      %v1692 = vld [vmem:[%s14 + $0x48] sm:$0xff]
      %v1693 = vld [vmem:[%s14 + $0x50] sm:$0xff]
      %v1694 = vld [vmem:[%s14 + $0x58] sm:$0xff]
      %v1695 = vld [vmem:[%s14 + $0x60] sm:$0xff]
      %v1696 = vld [vmem:[%s14 + $0x68] sm:$0xff]
      %v1697 = vld [vmem:[%s14 + $0x70] sm:$0xff]
      %v1698 = vld [vmem:[%s14 + $0x78] sm:$0xff]
      %v1699 = vld [vmem:[%s15] sm:$0x1]
      %v1701 = vlaneseq
      %v1702 = vshrl.u32 %v1701, 7
      %v1703 = vsub.s32 0, %v1702
      %v1704 = vrot.slane %v1699, %v1703
      %1706 = vmatprep.subr.mxu0 0.0
      %1707 = vmatpush1.msra.mxu0 %v1683
      %1708 = vmatprep.subr.mxu0 0.0
      %1709 = vmatpush1.msra.mxu0 %v1684
      %1710 = vmatprep.subr.mxu0 0.0
      %1711 = vmatpush1.msra.mxu0 %v1685
      %1712 = vmatprep.subr.mxu0 0.0
      %1713 = vmatpush1.msra.mxu0 %v1686
      %1714 = vmatprep.subr.mxu0 0.0
      %1715 = vmatpush1.msra.mxu0 %v1687
      %1716 = vmatprep.subr.mxu0 0.0
      %1717 = vmatpush1.msra.mxu0 %v1688
      %1718 = vmatprep.subr.mxu0 0.0
      %1719 = vmatpush1.msra.mxu0 %v1689
      %1720 = vmatprep.subr.mxu0 0.0
      %1721 = vmatpush1.msra.mxu0 %v1690
      %1722 = vmatprep.subr.mxu0 0.0
      %1723 = vmatpush1.msra.mxu0 %v1691
      %1724 = vmatprep.subr.mxu0 0.0
      %1725 = vmatpush1.msra.mxu0 %v1692
      %1726 = vmatprep.subr.mxu0 0.0
      %1727 = vmatpush1.msra.mxu0 %v1693
      %1728 = vmatprep.subr.mxu0 0.0
      %1729 = vmatpush1.msra.mxu0 %v1694
      %1730 = vmatprep.subr.mxu0 0.0
      %1731 = vmatpush1.msra.mxu0 %v1695
      %1732 = vmatprep.subr.mxu0 0.0
      %1733 = vmatpush1.msra.mxu0 %v1696
      %1734 = vmatprep.subr.mxu0 0.0
      %1735 = vmatpush1.msra.mxu0 %v1697
      %1736 = vmatprep.subr.mxu0 0.0
      %1737 = vmatpush1.msra.mxu0 %v1698
      %1738 = vmatprep.subr.mxu0 0.0
      %1739 = vmatpush1.msra.mxu0 0.0
      %1740 = vmatprep.subr.mxu0 0.0
      %1741 = vmatpush1.msra.mxu0 0.0
      %1742 = vmatprep.subr.mxu0 0.0
      %1743 = vmatpush1.msra.mxu0 0.0
      %1744 = vmatprep.subr.mxu0 0.0
      %1745 = vmatpush1.msra.mxu0 0.0
      %1746 = vmatprep.subr.mxu0 0.0
      %1747 = vmatpush1.msra.mxu0 0.0
      %1748 = vmatprep.subr.mxu0 0.0
      %1749 = vmatpush1.msra.mxu0 0.0
      %1750 = vmatprep.subr.mxu0 0.0
      %1751 = vmatpush1.msra.mxu0 0.0
      %1752 = vmatprep.subr.mxu0 0.0
      %1753 = vmatpush1.msra.mxu0 0.0
      %1754 = vmatprep.subr.mxu0 0.0
      %1755 = vmatpush1.msra.mxu0 0.0
      %1756 = vmatprep.subr.mxu0 0.0
      %1757 = vmatpush1.msra.mxu0 0.0
      %1758 = vmatprep.subr.mxu0 0.0
      %1759 = vmatpush1.msra.mxu0 0.0
      %1760 = vmatprep.subr.mxu0 0.0
      %1761 = vmatpush1.msra.mxu0 0.0
      %1762 = vmatprep.subr.mxu0 0.0
      %1763 = vmatpush1.msra.mxu0 0.0
      %1764 = vmatprep.subr.mxu0 0.0
      %1765 = vmatpush1.msra.mxu0 0.0
      %1766 = vmatprep.subr.mxu0 0.0
      %1767 = vmatpush1.msra.mxu0 0.0
      %1768 = vmatprep.subr.mxu0 0.0
      %1769 = vmatpush1.msra.mxu0 0.0
      %1770 = vmatprep.mubr.f32.mxu0 0.0
      %1771 = vmatmul.mubr.f32.gmra.mrb[0].mxu0 %v1682
      %v1772 = vpop.f32.mrb[0].mxu0
      %v1773 = vadd.f32 %v1704, %v1772
      %v1774 = vpop.f32.mrb[0].mxu0
      %1775 = vdwg.mxu0
      %v1776 = vadd.f32 %v1560, %v1773
      %s1777 = scalar_lea.vmem %s4, 1
      %v1778 = vld [vmem:[%s1777] sm:$0x1]
      %s1779 = scalar_lea.vmem %s5, 1
      %v1780 = vld [vmem:[%s1779] sm:$0x1]
      %v1781 = vsel %vm682, %v1776, 0.0
      %1782 = vadd.xlane.f32.xlu0 %v1781
      %v1783 = vpop.xlane.xlu0 %1782
      %v1784 = vmul.f32 %v1783, %v686
      %v1785 = vsub.f32 %v1776, %v1784
      %v1786 = vmul.f32 %v1785, %v1785
      %v1787 = vsel %vm682, %v1786, 0.0
      %1788 = vadd.xlane.f32.xlu0 %v1787
      %v1789 = vpop.xlane.xlu0 %1788
      %v1790 = vmul.f32 %v1789, %v686
      %v1791 = vadd.f32 %v1790, 1e-05
      %v1792 = vrsqrt.pop %v1791
      %v1793 = vmul.f32 %v1785, %v1792
      %v1795 = vlaneseq
      %v1796 = vshrl.u32 %v1795, 7
      %v1797 = vsub.s32 0, %v1796
      %v1798 = vrot.slane %v1778, %v1797
      %v1800 = vmul.f32 %v1793, %v1798
      %v1802 = vlaneseq
      %v1803 = vshrl.u32 %v1802, 7
      %v1804 = vsub.s32 0, %v1803
      %v1805 = vrot.slane %v1780, %v1804
      %v1807 = vadd.f32 %v1800, %v1805
      %s1808 = scalar_lea.vmem %s6, 32
      %v1809 = vld [vmem:[%s1808] sm:$0xff]
      %v1810 = vld [vmem:[%s1808 + $0x8] sm:$0xff]
      %v1811 = vld [vmem:[%s1808 + $0x10] sm:$0xff]
      %v1812 = vld [vmem:[%s1808 + $0x18] sm:$0xff]
      %s1813 = scalar_lea.vmem %s7, 1
      %v1814 = vld [vmem:[%s1813] sm:$0x1]
      %v1816 = vlaneseq
      %v1817 = vshrl.u32 %v1816, 7
      %v1818 = vsub.s32 0, %v1817
      %v1819 = vrot.slane %v1814, %v1818
      %v1822 = vsel %vm682, %v1807, 0
      %1824 = vmatprep.subr.mxu0 0.0
      %1825 = vmatpush1.msra.mxu0 %v1809
      %1826 = vmatprep.subr.mxu0 0.0
      %1827 = vmatpush1.msra.mxu0 %v1810
      %1828 = vmatprep.subr.mxu0 0.0
      %1829 = vmatpush1.msra.mxu0 %v1811
      %1830 = vmatprep.subr.mxu0 0.0
      %1831 = vmatpush1.msra.mxu0 %v1812
      %1832 = vmatprep.subr.mxu0 0.0
      %1833 = vmatpush1.msra.mxu0 0.0
      %1834 = vmatprep.subr.mxu0 0.0
      %1835 = vmatpush1.msra.mxu0 0.0
      %1836 = vmatprep.subr.mxu0 0.0
      %1837 = vmatpush1.msra.mxu0 0.0
      %1838 = vmatprep.subr.mxu0 0.0
      %1839 = vmatpush1.msra.mxu0 0.0
      %1840 = vmatprep.subr.mxu0 0.0
      %1841 = vmatpush1.msra.mxu0 0.0
      %1842 = vmatprep.subr.mxu0 0.0
      %1843 = vmatpush1.msra.mxu0 0.0
      %1844 = vmatprep.subr.mxu0 0.0
      %1845 = vmatpush1.msra.mxu0 0.0
      %1846 = vmatprep.subr.mxu0 0.0
      %1847 = vmatpush1.msra.mxu0 0.0
      %1848 = vmatprep.subr.mxu0 0.0
      %1849 = vmatpush1.msra.mxu0 0.0
      %1850 = vmatprep.subr.mxu0 0.0
      %1851 = vmatpush1.msra.mxu0 0.0
      %1852 = vmatprep.subr.mxu0 0.0
      %1853 = vmatpush1.msra.mxu0 0.0
      %1854 = vmatprep.subr.mxu0 0.0
      %1855 = vmatpush1.msra.mxu0 0.0
      %1856 = vmatprep.subr.mxu0 0.0
      %1857 = vmatpush1.msra.mxu0 0.0
      %1858 = vmatprep.subr.mxu0 0.0
      %1859 = vmatpush1.msra.mxu0 0.0
      %1860 = vmatprep.subr.mxu0 0.0
      %1861 = vmatpush1.msra.mxu0 0.0
      %1862 = vmatprep.subr.mxu0 0.0
      %1863 = vmatpush1.msra.mxu0 0.0
      %1864 = vmatprep.subr.mxu0 0.0
      %1865 = vmatpush1.msra.mxu0 0.0
      %1866 = vmatprep.subr.mxu0 0.0
      %1867 = vmatpush1.msra.mxu0 0.0
      %1868 = vmatprep.subr.mxu0 0.0
      %1869 = vmatpush1.msra.mxu0 0.0
      %1870 = vmatprep.subr.mxu0 0.0
      %1871 = vmatpush1.msra.mxu0 0.0
      %1872 = vmatprep.subr.mxu0 0.0
      %1873 = vmatpush1.msra.mxu0 0.0
      %1874 = vmatprep.subr.mxu0 0.0
      %1875 = vmatpush1.msra.mxu0 0.0
      %1876 = vmatprep.subr.mxu0 0.0
      %1877 = vmatpush1.msra.mxu0 0.0
      %1878 = vmatprep.subr.mxu0 0.0
      %1879 = vmatpush1.msra.mxu0 0.0
      %1880 = vmatprep.subr.mxu0 0.0
      %1881 = vmatpush1.msra.mxu0 0.0
      %1882 = vmatprep.subr.mxu0 0.0
      %1883 = vmatpush1.msra.mxu0 0.0
      %1884 = vmatprep.subr.mxu0 0.0
      %1885 = vmatpush1.msra.mxu0 0.0
      %1886 = vmatprep.subr.mxu0 0.0
      %1887 = vmatpush1.msra.mxu0 0.0
      %1888 = vmatprep.mubr.f32.mxu0 0.0
      %1889 = vmatmul.mubr.f32.gmra.mrb[0].mxu0 %v1822
      %v1890 = vpop.f32.mrb[0].mxu0
      %v1891 = vadd.f32 %v1819, %v1890
      %v1892 = vpop.f32.mrb[0].mxu0
      %1893 = vdwg.mxu0
      %1895 = vrot.lane.b32.xlu0 %v1891, 96
      %v1896 = vpop.permute.xlu0 %1895
      %v1897 = vsel %vm798, %v1891, 0
      %v1899 = vsel %vm798, %v1896, 0
      %1901 = vmatprep.subr.mxu0 0.0
      %1902 = vmatpush1.xpose.msra.mxu0 %v1899
      %1903 = vmatprep.subr.mxu0 0.0
      %1904 = vmatpush1.xpose.msra.mxu0 0.0
      %1905 = vmatprep.subr.mxu0 0.0
      %1906 = vmatpush1.xpose.msra.mxu0 0.0
      %1907 = vmatprep.subr.mxu0 0.0
      %1908 = vmatpush1.xpose.msra.mxu0 0.0
      %1909 = vmatprep.subr.mxu0 0.0
      %1910 = vmatpush1.xpose.msra.mxu0 0.0
      %1911 = vmatprep.subr.mxu0 0.0
      %1912 = vmatpush1.xpose.msra.mxu0 0.0
      %1913 = vmatprep.subr.mxu0 0.0
      %1914 = vmatpush1.xpose.msra.mxu0 0.0
      %1915 = vmatprep.subr.mxu0 0.0
      %1916 = vmatpush1.xpose.msra.mxu0 0.0
      %1917 = vmatprep.subr.mxu0 0.0
      %1918 = vmatpush1.xpose.msra.mxu0 0.0
      %1919 = vmatprep.subr.mxu0 0.0
      %1920 = vmatpush1.xpose.msra.mxu0 0.0
      %1921 = vmatprep.subr.mxu0 0.0
      %1922 = vmatpush1.xpose.msra.mxu0 0.0
      %1923 = vmatprep.subr.mxu0 0.0
      %1924 = vmatpush1.xpose.msra.mxu0 0.0
      %1925 = vmatprep.subr.mxu0 0.0
      %1926 = vmatpush1.xpose.msra.mxu0 0.0
      %1927 = vmatprep.subr.mxu0 0.0
      %1928 = vmatpush1.xpose.msra.mxu0 0.0
      %1929 = vmatprep.subr.mxu0 0.0
      %1930 = vmatpush1.xpose.msra.mxu0 0.0
      %1931 = vmatprep.subr.mxu0 0.0
      %1932 = vmatpush1.xpose.msra.mxu0 0.0
      %1933 = vmatprep.subr.mxu0 0.0
      %1934 = vmatpush1.xpose.msra.mxu0 0.0
      %1935 = vmatprep.subr.mxu0 0.0
      %1936 = vmatpush1.xpose.msra.mxu0 0.0
      %1937 = vmatprep.subr.mxu0 0.0
      %1938 = vmatpush1.xpose.msra.mxu0 0.0
      %1939 = vmatprep.subr.mxu0 0.0
      %1940 = vmatpush1.xpose.msra.mxu0 0.0
      %1941 = vmatprep.subr.mxu0 0.0
      %1942 = vmatpush1.xpose.msra.mxu0 0.0
      %1943 = vmatprep.subr.mxu0 0.0
      %1944 = vmatpush1.xpose.msra.mxu0 0.0
      %1945 = vmatprep.subr.mxu0 0.0
      %1946 = vmatpush1.xpose.msra.mxu0 0.0
      %1947 = vmatprep.subr.mxu0 0.0
      %1948 = vmatpush1.xpose.msra.mxu0 0.0
      %1949 = vmatprep.subr.mxu0 0.0
      %1950 = vmatpush1.xpose.msra.mxu0 0.0
      %1951 = vmatprep.subr.mxu0 0.0
      %1952 = vmatpush1.xpose.msra.mxu0 0.0
      %1953 = vmatprep.subr.mxu0 0.0
      %1954 = vmatpush1.xpose.msra.mxu0 0.0
      %1955 = vmatprep.subr.mxu0 0.0
      %1956 = vmatpush1.xpose.msra.mxu0 0.0
      %1957 = vmatprep.subr.mxu0 0.0
      %1958 = vmatpush1.xpose.msra.mxu0 0.0
      %1959 = vmatprep.subr.mxu0 0.0
      %1960 = vmatpush1.xpose.msra.mxu0 0.0
      %1961 = vmatprep.subr.mxu0 0.0
      %1962 = vmatpush1.xpose.msra.mxu0 0.0
      %1963 = vmatprep.subr.mxu0 0.0
      %1964 = vmatpush1.xpose.msra.mxu0 0.0
      %1965 = vmatprep.mubr.f32.mxu0 0.0
      %1966 = vmatmul.mubr.f32.gmra.mrb[0].mxu0 %v1897
      %v1967 = vpop.f32.mrb[0].mxu0
      %v1968 = vadd.f32 0.0, %v1967
      %v1969 = vpop.f32.mrb[0].mxu0
      %1970 = vdwg.mxu0
      %v1971 = vmul.f32 %v1968, 0.35355338
      %v1972 = vsel %vm798, %v1971, -inf
      %1973 = vmax.xlane.f32.xlu0 %v1972
      %v1974 = vpop.xlane.xlu0 %1973
      %v1975 = vsub.f32 %v1971, %v1974
      %v1976 = vmul.f32 %v1975, 1.442695
      %v1977 = vpow.pop %v1976
      %v1978 = vsel %vm798, %v1977, 0.0
      %1979 = vadd.xlane.f32.xlu0 %v1978
      %v1980 = vpop.xlane.xlu0 %1979
      %v1981 = vrcp.pop %v1980
      %v1982 = vmul.f32 %v1977, %v1981
      %1983 = vrot.lane.b32.xlu0 %v1891, 64
      %v1984 = vpop.permute.xlu0 %1983
      %v1987 = vsel %vm798, %v1982, 0
      %1989 = vmatprep.subr.mxu0 0.0
      %1990 = vmatpush1.msra.mxu0 %v1984
      %1991 = vmatprep.subr.mxu0 0.0
      %1992 = vmatpush1.msra.mxu0 0.0
      %1993 = vmatprep.subr.mxu0 0.0
      %1994 = vmatpush1.msra.mxu0 0.0
      %1995 = vmatprep.subr.mxu0 0.0
      %1996 = vmatpush1.msra.mxu0 0.0
      %1997 = vmatprep.subr.mxu0 0.0
      %1998 = vmatpush1.msra.mxu0 0.0
      %1999 = vmatprep.subr.mxu0 0.0
      %2000 = vmatpush1.msra.mxu0 0.0
      %2001 = vmatprep.subr.mxu0 0.0
      %2002 = vmatpush1.msra.mxu0 0.0
      %2003 = vmatprep.subr.mxu0 0.0
      %2004 = vmatpush1.msra.mxu0 0.0
      %2005 = vmatprep.subr.mxu0 0.0
      %2006 = vmatpush1.msra.mxu0 0.0
      %2007 = vmatprep.subr.mxu0 0.0
      %2008 = vmatpush1.msra.mxu0 0.0
      %2009 = vmatprep.subr.mxu0 0.0
      %2010 = vmatpush1.msra.mxu0 0.0
      %2011 = vmatprep.subr.mxu0 0.0
      %2012 = vmatpush1.msra.mxu0 0.0
      %2013 = vmatprep.subr.mxu0 0.0
      %2014 = vmatpush1.msra.mxu0 0.0
      %2015 = vmatprep.subr.mxu0 0.0
      %2016 = vmatpush1.msra.mxu0 0.0
      %2017 = vmatprep.subr.mxu0 0.0
      %2018 = vmatpush1.msra.mxu0 0.0
      %2019 = vmatprep.subr.mxu0 0.0
      %2020 = vmatpush1.msra.mxu0 0.0
      %2021 = vmatprep.subr.mxu0 0.0
      %2022 = vmatpush1.msra.mxu0 0.0
      %2023 = vmatprep.subr.mxu0 0.0
      %2024 = vmatpush1.msra.mxu0 0.0
      %2025 = vmatprep.subr.mxu0 0.0
      %2026 = vmatpush1.msra.mxu0 0.0
      %2027 = vmatprep.subr.mxu0 0.0
      %2028 = vmatpush1.msra.mxu0 0.0
      %2029 = vmatprep.subr.mxu0 0.0
      %2030 = vmatpush1.msra.mxu0 0.0
      %2031 = vmatprep.subr.mxu0 0.0
      %2032 = vmatpush1.msra.mxu0 0.0
      %2033 = vmatprep.subr.mxu0 0.0
      %2034 = vmatpush1.msra.mxu0 0.0
      %2035 = vmatprep.subr.mxu0 0.0
      %2036 = vmatpush1.msra.mxu0 0.0
      %2037 = vmatprep.subr.mxu0 0.0
      %2038 = vmatpush1.msra.mxu0 0.0
      %2039 = vmatprep.subr.mxu0 0.0
      %2040 = vmatpush1.msra.mxu0 0.0
      %2041 = vmatprep.subr.mxu0 0.0
      %2042 = vmatpush1.msra.mxu0 0.0
      %2043 = vmatprep.subr.mxu0 0.0
      %2044 = vmatpush1.msra.mxu0 0.0
      %2045 = vmatprep.subr.mxu0 0.0
      %2046 = vmatpush1.msra.mxu0 0.0
      %2047 = vmatprep.subr.mxu0 0.0
      %2048 = vmatpush1.msra.mxu0 0.0
      %2049 = vmatprep.subr.mxu0 0.0
      %2050 = vmatpush1.msra.mxu0 0.0
      %2051 = vmatprep.subr.mxu0 0.0
      %2052 = vmatpush1.msra.mxu0 0.0
      %2053 = vmatprep.mubr.f32.mxu0 0.0
      %2054 = vmatmul.mubr.f32.gmra.mrb[0].mxu0 %v1987
      %v2055 = vpop.f32.mrb[0].mxu0
      %v2056 = vadd.f32 0.0, %v2055
      %v2057 = vpop.f32.mrb[0].mxu0
      %2058 = vdwg.mxu0
      %2059 = vrot.lane.b32.xlu0 %v1891, 120
      %v2060 = vpop.permute.xlu0 %2059
      %2061 = vrot.lane.b32.xlu0 %v1891, 88
      %v2062 = vpop.permute.xlu0 %2061
      %v2063 = vsel %vm798, %v2060, 0
      %v2065 = vsel %vm798, %v2062, 0
      %2067 = vmatprep.subr.mxu0 0.0
      %2068 = vmatpush1.xpose.msra.mxu0 %v2065
      %2069 = vmatprep.subr.mxu0 0.0
      %2070 = vmatpush1.xpose.msra.mxu0 0.0
      %2071 = vmatprep.subr.mxu0 0.0
      %2072 = vmatpush1.xpose.msra.mxu0 0.0
      %2073 = vmatprep.subr.mxu0 0.0
      %2074 = vmatpush1.xpose.msra.mxu0 0.0
      %2075 = vmatprep.subr.mxu0 0.0
      %2076 = vmatpush1.xpose.msra.mxu0 0.0
      %2077 = vmatprep.subr.mxu0 0.0
      %2078 = vmatpush1.xpose.msra.mxu0 0.0
      %2079 = vmatprep.subr.mxu0 0.0
      %2080 = vmatpush1.xpose.msra.mxu0 0.0
      %2081 = vmatprep.subr.mxu0 0.0
      %2082 = vmatpush1.xpose.msra.mxu0 0.0
      %2083 = vmatprep.subr.mxu0 0.0
      %2084 = vmatpush1.xpose.msra.mxu0 0.0
      %2085 = vmatprep.subr.mxu0 0.0
      %2086 = vmatpush1.xpose.msra.mxu0 0.0
      %2087 = vmatprep.subr.mxu0 0.0
      %2088 = vmatpush1.xpose.msra.mxu0 0.0
      %2089 = vmatprep.subr.mxu0 0.0
      %2090 = vmatpush1.xpose.msra.mxu0 0.0
      %2091 = vmatprep.subr.mxu0 0.0
      %2092 = vmatpush1.xpose.msra.mxu0 0.0
      %2093 = vmatprep.subr.mxu0 0.0
      %2094 = vmatpush1.xpose.msra.mxu0 0.0
      %2095 = vmatprep.subr.mxu0 0.0
      %2096 = vmatpush1.xpose.msra.mxu0 0.0
      %2097 = vmatprep.subr.mxu0 0.0
      %2098 = vmatpush1.xpose.msra.mxu0 0.0
      %2099 = vmatprep.subr.mxu0 0.0
      %2100 = vmatpush1.xpose.msra.mxu0 0.0
      %2101 = vmatprep.subr.mxu0 0.0
      %2102 = vmatpush1.xpose.msra.mxu0 0.0
      %2103 = vmatprep.subr.mxu0 0.0
      %2104 = vmatpush1.xpose.msra.mxu0 0.0
      %2105 = vmatprep.subr.mxu0 0.0
      %2106 = vmatpush1.xpose.msra.mxu0 0.0
      %2107 = vmatprep.subr.mxu0 0.0
      %2108 = vmatpush1.xpose.msra.mxu0 0.0
      %2109 = vmatprep.subr.mxu0 0.0
      %2110 = vmatpush1.xpose.msra.mxu0 0.0
      %2111 = vmatprep.subr.mxu0 0.0
      %2112 = vmatpush1.xpose.msra.mxu0 0.0
      %2113 = vmatprep.subr.mxu0 0.0
      %2114 = vmatpush1.xpose.msra.mxu0 0.0
      %2115 = vmatprep.subr.mxu0 0.0
      %2116 = vmatpush1.xpose.msra.mxu0 0.0
      %2117 = vmatprep.subr.mxu0 0.0
      %2118 = vmatpush1.xpose.msra.mxu0 0.0
      %2119 = vmatprep.subr.mxu0 0.0
      %2120 = vmatpush1.xpose.msra.mxu0 0.0
      %2121 = vmatprep.subr.mxu0 0.0
      %2122 = vmatpush1.xpose.msra.mxu0 0.0
      %2123 = vmatprep.subr.mxu0 0.0
      %2124 = vmatpush1.xpose.msra.mxu0 0.0
      %2125 = vmatprep.subr.mxu0 0.0
      %2126 = vmatpush1.xpose.msra.mxu0 0.0
      %2127 = vmatprep.subr.mxu0 0.0
      %2128 = vmatpush1.xpose.msra.mxu0 0.0
      %2129 = vmatprep.subr.mxu0 0.0
      %2130 = vmatpush1.xpose.msra.mxu0 0.0
      %2131 = vmatprep.mubr.f32.mxu0 0.0
      %2132 = vmatmul.mubr.f32.gmra.mrb[0].mxu0 %v2063
      %v2133 = vpop.f32.mrb[0].mxu0
      %v2134 = vadd.f32 0.0, %v2133
      %v2135 = vpop.f32.mrb[0].mxu0
      %2136 = vdwg.mxu0
      %v2137 = vmul.f32 %v2134, 0.35355338
      %v2138 = vsel %vm798, %v2137, -inf
      %2139 = vmax.xlane.f32.xlu0 %v2138
      %v2140 = vpop.xlane.xlu0 %2139
      %v2141 = vsub.f32 %v2137, %v2140
      %v2142 = vmul.f32 %v2141, 1.442695
      %v2143 = vpow.pop %v2142
      %v2144 = vsel %vm798, %v2143, 0.0
      %2145 = vadd.xlane.f32.xlu0 %v2144
      %v2146 = vpop.xlane.xlu0 %2145
      %v2147 = vrcp.pop %v2146
      %v2148 = vmul.f32 %v2143, %v2147
      %2149 = vrot.lane.b32.xlu0 %v1891, 56
      %v2150 = vpop.permute.xlu0 %2149
      %v2153 = vsel %vm798, %v2148, 0
      %2155 = vmatprep.subr.mxu0 0.0
      %2156 = vmatpush1.msra.mxu0 %v2150
      %2157 = vmatprep.subr.mxu0 0.0
      %2158 = vmatpush1.msra.mxu0 0.0
      %2159 = vmatprep.subr.mxu0 0.0
      %2160 = vmatpush1.msra.mxu0 0.0
      %2161 = vmatprep.subr.mxu0 0.0
      %2162 = vmatpush1.msra.mxu0 0.0
      %2163 = vmatprep.subr.mxu0 0.0
      %2164 = vmatpush1.msra.mxu0 0.0
      %2165 = vmatprep.subr.mxu0 0.0
      %2166 = vmatpush1.msra.mxu0 0.0
      %2167 = vmatprep.subr.mxu0 0.0
      %2168 = vmatpush1.msra.mxu0 0.0
      %2169 = vmatprep.subr.mxu0 0.0
      %2170 = vmatpush1.msra.mxu0 0.0
      %2171 = vmatprep.subr.mxu0 0.0
      %2172 = vmatpush1.msra.mxu0 0.0
      %2173 = vmatprep.subr.mxu0 0.0
      %2174 = vmatpush1.msra.mxu0 0.0
      %2175 = vmatprep.subr.mxu0 0.0
      %2176 = vmatpush1.msra.mxu0 0.0
      %2177 = vmatprep.subr.mxu0 0.0
      %2178 = vmatpush1.msra.mxu0 0.0
      %2179 = vmatprep.subr.mxu0 0.0
      %2180 = vmatpush1.msra.mxu0 0.0
      %2181 = vmatprep.subr.mxu0 0.0
      %2182 = vmatpush1.msra.mxu0 0.0
      %2183 = vmatprep.subr.mxu0 0.0
      %2184 = vmatpush1.msra.mxu0 0.0
      %2185 = vmatprep.subr.mxu0 0.0
      %2186 = vmatpush1.msra.mxu0 0.0
      %2187 = vmatprep.subr.mxu0 0.0
      %2188 = vmatpush1.msra.mxu0 0.0
      %2189 = vmatprep.subr.mxu0 0.0
      %2190 = vmatpush1.msra.mxu0 0.0
      %2191 = vmatprep.subr.mxu0 0.0
      %2192 = vmatpush1.msra.mxu0 0.0
      %2193 = vmatprep.subr.mxu0 0.0
      %2194 = vmatpush1.msra.mxu0 0.0
      %2195 = vmatprep.subr.mxu0 0.0
      %2196 = vmatpush1.msra.mxu0 0.0
      %2197 = vmatprep.subr.mxu0 0.0
      %2198 = vmatpush1.msra.mxu0 0.0
      %2199 = vmatprep.subr.mxu0 0.0
      %2200 = vmatpush1.msra.mxu0 0.0
      %2201 = vmatprep.subr.mxu0 0.0
      %2202 = vmatpush1.msra.mxu0 0.0
      %2203 = vmatprep.subr.mxu0 0.0
      %2204 = vmatpush1.msra.mxu0 0.0
      %2205 = vmatprep.subr.mxu0 0.0
      %2206 = vmatpush1.msra.mxu0 0.0
      %2207 = vmatprep.subr.mxu0 0.0
      %2208 = vmatpush1.msra.mxu0 0.0
      %2209 = vmatprep.subr.mxu0 0.0
      %2210 = vmatpush1.msra.mxu0 0.0
      %2211 = vmatprep.subr.mxu0 0.0
      %2212 = vmatpush1.msra.mxu0 0.0
      %2213 = vmatprep.subr.mxu0 0.0
      %2214 = vmatpush1.msra.mxu0 0.0
      %2215 = vmatprep.subr.mxu0 0.0
      %2216 = vmatpush1.msra.mxu0 0.0
      %2217 = vmatprep.subr.mxu0 0.0
      %2218 = vmatpush1.msra.mxu0 0.0
      %2219 = vmatprep.mubr.f32.mxu0 0.0
      %2220 = vmatmul.mubr.f32.gmra.mrb[0].mxu0 %v2153
      %v2221 = vpop.f32.mrb[0].mxu0
      %v2222 = vadd.f32 0.0, %v2221
      %v2223 = vpop.f32.mrb[0].mxu0
      %2224 = vdwg.mxu0
      %2225 = vrot.lane.b32.xlu0 %v1891, 112
      %v2226 = vpop.permute.xlu0 %2225
      %2227 = vrot.lane.b32.xlu0 %v1891, 80
      %v2228 = vpop.permute.xlu0 %2227
      %v2229 = vsel %vm798, %v2226, 0
      %v2231 = vsel %vm798, %v2228, 0
      %2233 = vmatprep.subr.mxu0 0.0
      %2234 = vmatpush1.xpose.msra.mxu0 %v2231
      %2235 = vmatprep.subr.mxu0 0.0
      %2236 = vmatpush1.xpose.msra.mxu0 0.0
      %2237 = vmatprep.subr.mxu0 0.0
      %2238 = vmatpush1.xpose.msra.mxu0 0.0
      %2239 = vmatprep.subr.mxu0 0.0
      %2240 = vmatpush1.xpose.msra.mxu0 0.0
      %2241 = vmatprep.subr.mxu0 0.0
      %2242 = vmatpush1.xpose.msra.mxu0 0.0
      %2243 = vmatprep.subr.mxu0 0.0
      %2244 = vmatpush1.xpose.msra.mxu0 0.0
      %2245 = vmatprep.subr.mxu0 0.0
      %2246 = vmatpush1.xpose.msra.mxu0 0.0
      %2247 = vmatprep.subr.mxu0 0.0
      %2248 = vmatpush1.xpose.msra.mxu0 0.0
      %2249 = vmatprep.subr.mxu0 0.0
      %2250 = vmatpush1.xpose.msra.mxu0 0.0
      %2251 = vmatprep.subr.mxu0 0.0
      %2252 = vmatpush1.xpose.msra.mxu0 0.0
      %2253 = vmatprep.subr.mxu0 0.0
      %2254 = vmatpush1.xpose.msra.mxu0 0.0
      %2255 = vmatprep.subr.mxu0 0.0
      %2256 = vmatpush1.xpose.msra.mxu0 0.0
      %2257 = vmatprep.subr.mxu0 0.0
      %2258 = vmatpush1.xpose.msra.mxu0 0.0
      %2259 = vmatprep.subr.mxu0 0.0
      %2260 = vmatpush1.xpose.msra.mxu0 0.0
      %2261 = vmatprep.subr.mxu0 0.0
      %2262 = vmatpush1.xpose.msra.mxu0 0.0
      %2263 = vmatprep.subr.mxu0 0.0
      %2264 = vmatpush1.xpose.msra.mxu0 0.0
      %2265 = vmatprep.subr.mxu0 0.0
      %2266 = vmatpush1.xpose.msra.mxu0 0.0
      %2267 = vmatprep.subr.mxu0 0.0
      %2268 = vmatpush1.xpose.msra.mxu0 0.0
      %2269 = vmatprep.subr.mxu0 0.0
      %2270 = vmatpush1.xpose.msra.mxu0 0.0
      %2271 = vmatprep.subr.mxu0 0.0
      %2272 = vmatpush1.xpose.msra.mxu0 0.0
      %2273 = vmatprep.subr.mxu0 0.0
      %2274 = vmatpush1.xpose.msra.mxu0 0.0
      %2275 = vmatprep.subr.mxu0 0.0
      %2276 = vmatpush1.xpose.msra.mxu0 0.0
      %2277 = vmatprep.subr.mxu0 0.0
      %2278 = vmatpush1.xpose.msra.mxu0 0.0
      %2279 = vmatprep.subr.mxu0 0.0
      %2280 = vmatpush1.xpose.msra.mxu0 0.0
      %2281 = vmatprep.subr.mxu0 0.0
      %2282 = vmatpush1.xpose.msra.mxu0 0.0
      %2283 = vmatprep.subr.mxu0 0.0
      %2284 = vmatpush1.xpose.msra.mxu0 0.0
      %2285 = vmatprep.subr.mxu0 0.0
      %2286 = vmatpush1.xpose.msra.mxu0 0.0
      %2287 = vmatprep.subr.mxu0 0.0
      %2288 = vmatpush1.xpose.msra.mxu0 0.0
      %2289 = vmatprep.subr.mxu0 0.0
      %2290 = vmatpush1.xpose.msra.mxu0 0.0
      %2291 = vmatprep.subr.mxu0 0.0
      %2292 = vmatpush1.xpose.msra.mxu0 0.0
      %2293 = vmatprep.subr.mxu0 0.0
      %2294 = vmatpush1.xpose.msra.mxu0 0.0
      %2295 = vmatprep.subr.mxu0 0.0
      %2296 = vmatpush1.xpose.msra.mxu0 0.0
      %2297 = vmatprep.mubr.f32.mxu0 0.0
      %2298 = vmatmul.mubr.f32.gmra.mrb[0].mxu0 %v2229
      %v2299 = vpop.f32.mrb[0].mxu0
      %v2300 = vadd.f32 0.0, %v2299
      %v2301 = vpop.f32.mrb[0].mxu0
      %2302 = vdwg.mxu0
      %v2303 = vmul.f32 %v2300, 0.35355338
      %v2304 = vsel %vm798, %v2303, -inf
      %2305 = vmax.xlane.f32.xlu0 %v2304
      %v2306 = vpop.xlane.xlu0 %2305
      %v2307 = vsub.f32 %v2303, %v2306
      %v2308 = vmul.f32 %v2307, 1.442695
      %v2309 = vpow.pop %v2308
      %v2310 = vsel %vm798, %v2309, 0.0
      %2311 = vadd.xlane.f32.xlu0 %v2310
      %v2312 = vpop.xlane.xlu0 %2311
      %v2313 = vrcp.pop %v2312
      %v2314 = vmul.f32 %v2309, %v2313
      %2315 = vrot.lane.b32.xlu0 %v1891, 48
      %v2316 = vpop.permute.xlu0 %2315
      %v2319 = vsel %vm798, %v2314, 0
      %2321 = vmatprep.subr.mxu0 0.0
      %2322 = vmatpush1.msra.mxu0 %v2316
      %2323 = vmatprep.subr.mxu0 0.0
      %2324 = vmatpush1.msra.mxu0 0.0
      %2325 = vmatprep.subr.mxu0 0.0
      %2326 = vmatpush1.msra.mxu0 0.0
      %2327 = vmatprep.subr.mxu0 0.0
      %2328 = vmatpush1.msra.mxu0 0.0
      %2329 = vmatprep.subr.mxu0 0.0
      %2330 = vmatpush1.msra.mxu0 0.0
      %2331 = vmatprep.subr.mxu0 0.0
      %2332 = vmatpush1.msra.mxu0 0.0
      %2333 = vmatprep.subr.mxu0 0.0
      %2334 = vmatpush1.msra.mxu0 0.0
      %2335 = vmatprep.subr.mxu0 0.0
      %2336 = vmatpush1.msra.mxu0 0.0
      %2337 = vmatprep.subr.mxu0 0.0
      %2338 = vmatpush1.msra.mxu0 0.0
      %2339 = vmatprep.subr.mxu0 0.0
      %2340 = vmatpush1.msra.mxu0 0.0
      %2341 = vmatprep.subr.mxu0 0.0
      %2342 = vmatpush1.msra.mxu0 0.0
      %2343 = vmatprep.subr.mxu0 0.0
      %2344 = vmatpush1.msra.mxu0 0.0
      %2345 = vmatprep.subr.mxu0 0.0
      %2346 = vmatpush1.msra.mxu0 0.0
      %2347 = vmatprep.subr.mxu0 0.0
      %2348 = vmatpush1.msra.mxu0 0.0
      %2349 = vmatprep.subr.mxu0 0.0
      %2350 = vmatpush1.msra.mxu0 0.0
      %2351 = vmatprep.subr.mxu0 0.0
      %2352 = vmatpush1.msra.mxu0 0.0
      %2353 = vmatprep.subr.mxu0 0.0
      %2354 = vmatpush1.msra.mxu0 0.0
      %2355 = vmatprep.subr.mxu0 0.0
      %2356 = vmatpush1.msra.mxu0 0.0
      %2357 = vmatprep.subr.mxu0 0.0
      %2358 = vmatpush1.msra.mxu0 0.0
      %2359 = vmatprep.subr.mxu0 0.0
      %2360 = vmatpush1.msra.mxu0 0.0
      %2361 = vmatprep.subr.mxu0 0.0
      %2362 = vmatpush1.msra.mxu0 0.0
      %2363 = vmatprep.subr.mxu0 0.0
      %2364 = vmatpush1.msra.mxu0 0.0
      %2365 = vmatprep.subr.mxu0 0.0
      %2366 = vmatpush1.msra.mxu0 0.0
      %2367 = vmatprep.subr.mxu0 0.0
      %2368 = vmatpush1.msra.mxu0 0.0
      %2369 = vmatprep.subr.mxu0 0.0
      %2370 = vmatpush1.msra.mxu0 0.0
      %2371 = vmatprep.subr.mxu0 0.0
      %2372 = vmatpush1.msra.mxu0 0.0
      %2373 = vmatprep.subr.mxu0 0.0
      %2374 = vmatpush1.msra.mxu0 0.0
      %2375 = vmatprep.subr.mxu0 0.0
      %2376 = vmatpush1.msra.mxu0 0.0
      %2377 = vmatprep.subr.mxu0 0.0
      %2378 = vmatpush1.msra.mxu0 0.0
      %2379 = vmatprep.subr.mxu0 0.0
      %2380 = vmatpush1.msra.mxu0 0.0
      %2381 = vmatprep.subr.mxu0 0.0
      %2382 = vmatpush1.msra.mxu0 0.0
      %2383 = vmatprep.subr.mxu0 0.0
      %2384 = vmatpush1.msra.mxu0 0.0
      %2385 = vmatprep.mubr.f32.mxu0 0.0
      %2386 = vmatmul.mubr.f32.gmra.mrb[0].mxu0 %v2319
      %v2387 = vpop.f32.mrb[0].mxu0
      %v2388 = vadd.f32 0.0, %v2387
      %v2389 = vpop.f32.mrb[0].mxu0
      %2390 = vdwg.mxu0
      %2391 = vrot.lane.b32.xlu0 %v1891, 104
      %v2392 = vpop.permute.xlu0 %2391
      %2393 = vrot.lane.b32.xlu0 %v1891, 72
      %v2394 = vpop.permute.xlu0 %2393
      %v2395 = vsel %vm798, %v2392, 0
      %v2397 = vsel %vm798, %v2394, 0
      %2399 = vmatprep.subr.mxu0 0.0
      %2400 = vmatpush1.xpose.msra.mxu0 %v2397
      %2401 = vmatprep.subr.mxu0 0.0
      %2402 = vmatpush1.xpose.msra.mxu0 0.0
      %2403 = vmatprep.subr.mxu0 0.0
      %2404 = vmatpush1.xpose.msra.mxu0 0.0
      %2405 = vmatprep.subr.mxu0 0.0
      %2406 = vmatpush1.xpose.msra.mxu0 0.0
      %2407 = vmatprep.subr.mxu0 0.0
      %2408 = vmatpush1.xpose.msra.mxu0 0.0
      %2409 = vmatprep.subr.mxu0 0.0
      %2410 = vmatpush1.xpose.msra.mxu0 0.0
      %2411 = vmatprep.subr.mxu0 0.0
      %2412 = vmatpush1.xpose.msra.mxu0 0.0
      %2413 = vmatprep.subr.mxu0 0.0
      %2414 = vmatpush1.xpose.msra.mxu0 0.0
      %2415 = vmatprep.subr.mxu0 0.0
      %2416 = vmatpush1.xpose.msra.mxu0 0.0
      %2417 = vmatprep.subr.mxu0 0.0
      %2418 = vmatpush1.xpose.msra.mxu0 0.0
      %2419 = vmatprep.subr.mxu0 0.0
      %2420 = vmatpush1.xpose.msra.mxu0 0.0
      %2421 = vmatprep.subr.mxu0 0.0
      %2422 = vmatpush1.xpose.msra.mxu0 0.0
      %2423 = vmatprep.subr.mxu0 0.0
      %2424 = vmatpush1.xpose.msra.mxu0 0.0
      %2425 = vmatprep.subr.mxu0 0.0
      %2426 = vmatpush1.xpose.msra.mxu0 0.0
      %2427 = vmatprep.subr.mxu0 0.0
      %2428 = vmatpush1.xpose.msra.mxu0 0.0
      %2429 = vmatprep.subr.mxu0 0.0
      %2430 = vmatpush1.xpose.msra.mxu0 0.0
      %2431 = vmatprep.subr.mxu0 0.0
      %2432 = vmatpush1.xpose.msra.mxu0 0.0
      %2433 = vmatprep.subr.mxu0 0.0
      %2434 = vmatpush1.xpose.msra.mxu0 0.0
      %2435 = vmatprep.subr.mxu0 0.0
      %2436 = vmatpush1.xpose.msra.mxu0 0.0
      %2437 = vmatprep.subr.mxu0 0.0
      %2438 = vmatpush1.xpose.msra.mxu0 0.0
      %2439 = vmatprep.subr.mxu0 0.0
      %2440 = vmatpush1.xpose.msra.mxu0 0.0
      %2441 = vmatprep.subr.mxu0 0.0
      %2442 = vmatpush1.xpose.msra.mxu0 0.0
      %2443 = vmatprep.subr.mxu0 0.0
      %2444 = vmatpush1.xpose.msra.mxu0 0.0
      %2445 = vmatprep.subr.mxu0 0.0
      %2446 = vmatpush1.xpose.msra.mxu0 0.0
      %2447 = vmatprep.subr.mxu0 0.0
      %2448 = vmatpush1.xpose.msra.mxu0 0.0
      %2449 = vmatprep.subr.mxu0 0.0
      %2450 = vmatpush1.xpose.msra.mxu0 0.0
      %2451 = vmatprep.subr.mxu0 0.0
      %2452 = vmatpush1.xpose.msra.mxu0 0.0
      %2453 = vmatprep.subr.mxu0 0.0
      %2454 = vmatpush1.xpose.msra.mxu0 0.0
      %2455 = vmatprep.subr.mxu0 0.0
      %2456 = vmatpush1.xpose.msra.mxu0 0.0
      %2457 = vmatprep.subr.mxu0 0.0
      %2458 = vmatpush1.xpose.msra.mxu0 0.0
      %2459 = vmatprep.subr.mxu0 0.0
      %2460 = vmatpush1.xpose.msra.mxu0 0.0
      %2461 = vmatprep.subr.mxu0 0.0
      %2462 = vmatpush1.xpose.msra.mxu0 0.0
      %2463 = vmatprep.mubr.f32.mxu0 0.0
      %2464 = vmatmul.mubr.f32.gmra.mrb[0].mxu0 %v2395
      %v2465 = vpop.f32.mrb[0].mxu0
      %v2466 = vadd.f32 0.0, %v2465
      %v2467 = vpop.f32.mrb[0].mxu0
      %2468 = vdwg.mxu0
      %v2469 = vmul.f32 %v2466, 0.35355338
      %v2470 = vsel %vm798, %v2469, -inf
      %2471 = vmax.xlane.f32.xlu0 %v2470
      %v2472 = vpop.xlane.xlu0 %2471
      %v2473 = vsub.f32 %v2469, %v2472
      %v2474 = vmul.f32 %v2473, 1.442695
      %v2475 = vpow.pop %v2474
      %v2476 = vsel %vm798, %v2475, 0.0
      %2477 = vadd.xlane.f32.xlu0 %v2476
      %v2478 = vpop.xlane.xlu0 %2477
      %v2479 = vrcp.pop %v2478
      %v2480 = vmul.f32 %v2475, %v2479
      %2481 = vrot.lane.b32.xlu0 %v1891, 40
      %v2482 = vpop.permute.xlu0 %2481
      %v2485 = vsel %vm798, %v2480, 0
      %2487 = vmatprep.subr.mxu0 0.0
      %2488 = vmatpush1.msra.mxu0 %v2482
      %2489 = vmatprep.subr.mxu0 0.0
      %2490 = vmatpush1.msra.mxu0 0.0
      %2491 = vmatprep.subr.mxu0 0.0
      %2492 = vmatpush1.msra.mxu0 0.0
      %2493 = vmatprep.subr.mxu0 0.0
      %2494 = vmatpush1.msra.mxu0 0.0
      %2495 = vmatprep.subr.mxu0 0.0
      %2496 = vmatpush1.msra.mxu0 0.0
      %2497 = vmatprep.subr.mxu0 0.0
      %2498 = vmatpush1.msra.mxu0 0.0
      %2499 = vmatprep.subr.mxu0 0.0
      %2500 = vmatpush1.msra.mxu0 0.0
      %2501 = vmatprep.subr.mxu0 0.0
      %2502 = vmatpush1.msra.mxu0 0.0
      %2503 = vmatprep.subr.mxu0 0.0
      %2504 = vmatpush1.msra.mxu0 0.0
      %2505 = vmatprep.subr.mxu0 0.0
      %2506 = vmatpush1.msra.mxu0 0.0
      %2507 = vmatprep.subr.mxu0 0.0
      %2508 = vmatpush1.msra.mxu0 0.0
      %2509 = vmatprep.subr.mxu0 0.0
      %2510 = vmatpush1.msra.mxu0 0.0
      %2511 = vmatprep.subr.mxu0 0.0
      %2512 = vmatpush1.msra.mxu0 0.0
      %2513 = vmatprep.subr.mxu0 0.0
      %2514 = vmatpush1.msra.mxu0 0.0
      %2515 = vmatprep.subr.mxu0 0.0
      %2516 = vmatpush1.msra.mxu0 0.0
      %2517 = vmatprep.subr.mxu0 0.0
      %2518 = vmatpush1.msra.mxu0 0.0
      %2519 = vmatprep.subr.mxu0 0.0
      %2520 = vmatpush1.msra.mxu0 0.0
      %2521 = vmatprep.subr.mxu0 0.0
      %2522 = vmatpush1.msra.mxu0 0.0
      %2523 = vmatprep.subr.mxu0 0.0
      %2524 = vmatpush1.msra.mxu0 0.0
      %2525 = vmatprep.subr.mxu0 0.0
      %2526 = vmatpush1.msra.mxu0 0.0
      %2527 = vmatprep.subr.mxu0 0.0
      %2528 = vmatpush1.msra.mxu0 0.0
      %2529 = vmatprep.subr.mxu0 0.0
      %2530 = vmatpush1.msra.mxu0 0.0
      %2531 = vmatprep.subr.mxu0 0.0
      %2532 = vmatpush1.msra.mxu0 0.0
      %2533 = vmatprep.subr.mxu0 0.0
      %2534 = vmatpush1.msra.mxu0 0.0
      %2535 = vmatprep.subr.mxu0 0.0
      %2536 = vmatpush1.msra.mxu0 0.0
      %2537 = vmatprep.subr.mxu0 0.0
      %2538 = vmatpush1.msra.mxu0 0.0
      %2539 = vmatprep.subr.mxu0 0.0
      %2540 = vmatpush1.msra.mxu0 0.0
      %2541 = vmatprep.subr.mxu0 0.0
      %2542 = vmatpush1.msra.mxu0 0.0
      %2543 = vmatprep.subr.mxu0 0.0
      %2544 = vmatpush1.msra.mxu0 0.0
      %2545 = vmatprep.subr.mxu0 0.0
      %2546 = vmatpush1.msra.mxu0 0.0
      %2547 = vmatprep.subr.mxu0 0.0
      %2548 = vmatpush1.msra.mxu0 0.0
      %2549 = vmatprep.subr.mxu0 0.0
      %2550 = vmatpush1.msra.mxu0 0.0
      %2551 = vmatprep.mubr.f32.mxu0 0.0
      %2552 = vmatmul.mubr.f32.gmra.mrb[0].mxu0 %v2485
      %v2553 = vpop.f32.mrb[0].mxu0
      %v2554 = vadd.f32 0.0, %v2553
      %v2555 = vpop.f32.mrb[0].mxu0
      %2556 = vdwg.mxu0
      %2558 = vrot.lane.b32.xlu0 %v2222, 8
      %v2559 = vpop.permute.xlu0 %2558
      %2562 = vrot.lane.b32.xlu0 %v2388, 16
      %v2563 = vpop.permute.xlu0 %2562
      %2566 = vrot.lane.b32.xlu0 %v2554, 24
      %v2567 = vpop.permute.xlu0 %2566
      %v2569 = vsel %vm798, %v2056, %v2559
      %v2570 = vsel %vm1472, %v2569, %v2563
      %v2571 = vsel %vm1474, %v2570, %v2567
      %s2572 = scalar_lea.vmem %s8, 32
      %v2573 = vld [vmem:[%s2572] sm:$0xff]
      %v2574 = vld [vmem:[%s2572 + $0x8] sm:$0xff]
      %v2575 = vld [vmem:[%s2572 + $0x10] sm:$0xff]
      %v2576 = vld [vmem:[%s2572 + $0x18] sm:$0xff]
      %s2577 = scalar_lea.vmem %s9, 1
      %v2578 = vld [vmem:[%s2577] sm:$0x1]
      %v2580 = vlaneseq
      %v2581 = vshrl.u32 %v2580, 7
      %v2582 = vsub.s32 0, %v2581
      %v2583 = vrot.slane %v2578, %v2582
      %v2586 = vsel %vm682, %v2571, 0
      %2588 = vmatprep.subr.mxu0 0.0
      %2589 = vmatpush1.msra.mxu0 %v2573
      %2590 = vmatprep.subr.mxu0 0.0
      %2591 = vmatpush1.msra.mxu0 %v2574
      %2592 = vmatprep.subr.mxu0 0.0
      %2593 = vmatpush1.msra.mxu0 %v2575
      %2594 = vmatprep.subr.mxu0 0.0
      %2595 = vmatpush1.msra.mxu0 %v2576
      %2596 = vmatprep.subr.mxu0 0.0
      %2597 = vmatpush1.msra.mxu0 0.0
      %2598 = vmatprep.subr.mxu0 0.0
      %2599 = vmatpush1.msra.mxu0 0.0
      %2600 = vmatprep.subr.mxu0 0.0
      %2601 = vmatpush1.msra.mxu0 0.0
      %2602 = vmatprep.subr.mxu0 0.0
      %2603 = vmatpush1.msra.mxu0 0.0
      %2604 = vmatprep.subr.mxu0 0.0
      %2605 = vmatpush1.msra.mxu0 0.0
      %2606 = vmatprep.subr.mxu0 0.0
      %2607 = vmatpush1.msra.mxu0 0.0
      %2608 = vmatprep.subr.mxu0 0.0
      %2609 = vmatpush1.msra.mxu0 0.0
      %2610 = vmatprep.subr.mxu0 0.0
      %2611 = vmatpush1.msra.mxu0 0.0
      %2612 = vmatprep.subr.mxu0 0.0
      %2613 = vmatpush1.msra.mxu0 0.0
      %2614 = vmatprep.subr.mxu0 0.0
      %2615 = vmatpush1.msra.mxu0 0.0
      %2616 = vmatprep.subr.mxu0 0.0
      %2617 = vmatpush1.msra.mxu0 0.0
      %2618 = vmatprep.subr.mxu0 0.0
      %2619 = vmatpush1.msra.mxu0 0.0
      %2620 = vmatprep.subr.mxu0 0.0
      %2621 = vmatpush1.msra.mxu0 0.0
      %2622 = vmatprep.subr.mxu0 0.0
      %2623 = vmatpush1.msra.mxu0 0.0
      %2624 = vmatprep.subr.mxu0 0.0
      %2625 = vmatpush1.msra.mxu0 0.0
      %2626 = vmatprep.subr.mxu0 0.0
      %2627 = vmatpush1.msra.mxu0 0.0
      %2628 = vmatprep.subr.mxu0 0.0
      %2629 = vmatpush1.msra.mxu0 0.0
      %2630 = vmatprep.subr.mxu0 0.0
      %2631 = vmatpush1.msra.mxu0 0.0
      %2632 = vmatprep.subr.mxu0 0.0
      %2633 = vmatpush1.msra.mxu0 0.0
      %2634 = vmatprep.subr.mxu0 0.0
      %2635 = vmatpush1.msra.mxu0 0.0
      %2636 = vmatprep.subr.mxu0 0.0
      %2637 = vmatpush1.msra.mxu0 0.0
      %2638 = vmatprep.subr.mxu0 0.0
      %2639 = vmatpush1.msra.mxu0 0.0
      %2640 = vmatprep.subr.mxu0 0.0
      %2641 = vmatpush1.msra.mxu0 0.0
      %2642 = vmatprep.subr.mxu0 0.0
      %2643 = vmatpush1.msra.mxu0 0.0
      %2644 = vmatprep.subr.mxu0 0.0
      %2645 = vmatpush1.msra.mxu0 0.0
      %2646 = vmatprep.subr.mxu0 0.0
      %2647 = vmatpush1.msra.mxu0 0.0
      %2648 = vmatprep.subr.mxu0 0.0
      %2649 = vmatpush1.msra.mxu0 0.0
      %2650 = vmatprep.subr.mxu0 0.0
      %2651 = vmatpush1.msra.mxu0 0.0
      %2652 = vmatprep.mubr.f32.mxu0 0.0
      %2653 = vmatmul.mubr.f32.gmra.mrb[0].mxu0 %v2586
      %v2654 = vpop.f32.mrb[0].mxu0
      %v2655 = vadd.f32 %v2583, %v2654
      %v2656 = vpop.f32.mrb[0].mxu0
      %2657 = vdwg.mxu0
      %v2658 = vadd.f32 %v1776, %v2655
      %s2659 = scalar_lea.vmem %s10, 1
      %v2660 = vld [vmem:[%s2659] sm:$0x1]
      %s2661 = scalar_lea.vmem %s11, 1
      %v2662 = vld [vmem:[%s2661] sm:$0x1]
      %v2663 = vsel %vm682, %v2658, 0.0
      %2664 = vadd.xlane.f32.xlu0 %v2663
      %v2665 = vpop.xlane.xlu0 %2664
      %v2666 = vmul.f32 %v2665, %v686
      %v2667 = vsub.f32 %v2658, %v2666
      %v2668 = vmul.f32 %v2667, %v2667
      %v2669 = vsel %vm682, %v2668, 0.0
      %2670 = vadd.xlane.f32.xlu0 %v2669
      %v2671 = vpop.xlane.xlu0 %2670
      %v2672 = vmul.f32 %v2671, %v686
      %v2673 = vadd.f32 %v2672, 1e-05
      %v2674 = vrsqrt.pop %v2673
      %v2675 = vmul.f32 %v2667, %v2674
      %v2677 = vlaneseq
      %v2678 = vshrl.u32 %v2677, 7
      %v2679 = vsub.s32 0, %v2678
      %v2680 = vrot.slane %v2660, %v2679
      %v2682 = vmul.f32 %v2675, %v2680
      %v2684 = vlaneseq
      %v2685 = vshrl.u32 %v2684, 7
      %v2686 = vsub.s32 0, %v2685
      %v2687 = vrot.slane %v2662, %v2686
      %v2689 = vadd.f32 %v2682, %v2687
      %s2690 = scalar_lea.vmem %s12, 32
      %v2691 = vld [vmem:[%s2690] sm:$0xff]
      %v2692 = vld [vmem:[%s2690 + $0x8] sm:$0xff]
      %v2693 = vld [vmem:[%s2690 + $0x10] sm:$0xff]
      %v2694 = vld [vmem:[%s2690 + $0x18] sm:$0xff]
      %s2695 = scalar_lea.vmem %s13, 1
      %v2696 = vld [vmem:[%s2695] sm:$0x1]
      %v2698 = vlaneseq
      %v2699 = vshrl.u32 %v2698, 7
      %v2700 = vsub.s32 0, %v2699
      %v2701 = vrot.slane %v2696, %v2700
      %v2704 = vsel %vm682, %v2689, 0
      %2706 = vmatprep.subr.mxu0 0.0
      %2707 = vmatpush1.msra.mxu0 %v2691
      %2708 = vmatprep.subr.mxu0 0.0
      %2709 = vmatpush1.msra.mxu0 %v2692
      %2710 = vmatprep.subr.mxu0 0.0
      %2711 = vmatpush1.msra.mxu0 %v2693
      %2712 = vmatprep.subr.mxu0 0.0
      %2713 = vmatpush1.msra.mxu0 %v2694
      %2714 = vmatprep.subr.mxu0 0.0
      %2715 = vmatpush1.msra.mxu0 0.0
      %2716 = vmatprep.subr.mxu0 0.0
      %2717 = vmatpush1.msra.mxu0 0.0
      %2718 = vmatprep.subr.mxu0 0.0
      %2719 = vmatpush1.msra.mxu0 0.0
      %2720 = vmatprep.subr.mxu0 0.0
      %2721 = vmatpush1.msra.mxu0 0.0
      %2722 = vmatprep.subr.mxu0 0.0
      %2723 = vmatpush1.msra.mxu0 0.0
      %2724 = vmatprep.subr.mxu0 0.0
      %2725 = vmatpush1.msra.mxu0 0.0
      %2726 = vmatprep.subr.mxu0 0.0
      %2727 = vmatpush1.msra.mxu0 0.0
      %2728 = vmatprep.subr.mxu0 0.0
      %2729 = vmatpush1.msra.mxu0 0.0
      %2730 = vmatprep.subr.mxu0 0.0
      %2731 = vmatpush1.msra.mxu0 0.0
      %2732 = vmatprep.subr.mxu0 0.0
      %2733 = vmatpush1.msra.mxu0 0.0
      %2734 = vmatprep.subr.mxu0 0.0
      %2735 = vmatpush1.msra.mxu0 0.0
      %2736 = vmatprep.subr.mxu0 0.0
      %2737 = vmatpush1.msra.mxu0 0.0
      %2738 = vmatprep.subr.mxu0 0.0
      %2739 = vmatpush1.msra.mxu0 0.0
      %2740 = vmatprep.subr.mxu0 0.0
      %2741 = vmatpush1.msra.mxu0 0.0
      %2742 = vmatprep.subr.mxu0 0.0
      %2743 = vmatpush1.msra.mxu0 0.0
      %2744 = vmatprep.subr.mxu0 0.0
      %2745 = vmatpush1.msra.mxu0 0.0
      %2746 = vmatprep.subr.mxu0 0.0
      %2747 = vmatpush1.msra.mxu0 0.0
      %2748 = vmatprep.subr.mxu0 0.0
      %2749 = vmatpush1.msra.mxu0 0.0
      %2750 = vmatprep.subr.mxu0 0.0
      %2751 = vmatpush1.msra.mxu0 0.0
      %2752 = vmatprep.subr.mxu0 0.0
      %2753 = vmatpush1.msra.mxu0 0.0
      %2754 = vmatprep.subr.mxu0 0.0
      %2755 = vmatpush1.msra.mxu0 0.0
      %2756 = vmatprep.subr.mxu0 0.0
      %2757 = vmatpush1.msra.mxu0 0.0
      %2758 = vmatprep.subr.mxu0 0.0
      %2759 = vmatpush1.msra.mxu0 0.0
      %2760 = vmatprep.subr.mxu0 0.0
      %2761 = vmatpush1.msra.mxu0 0.0
      %2762 = vmatprep.subr.mxu0 0.0
      %2763 = vmatpush1.msra.mxu0 0.0
      %2764 = vmatprep.subr.mxu0 0.0
      %2765 = vmatpush1.msra.mxu0 0.0
      %2766 = vmatprep.subr.mxu0 0.0
      %2767 = vmatpush1.msra.mxu0 0.0
      %2768 = vmatprep.subr.mxu0 0.0
      %2769 = vmatpush1.msra.mxu0 0.0
      %2770 = vmatprep.mubr.f32.mxu0 0.0
      %2771 = vmatmul.mubr.f32.gmra.mrb[0].mxu0 %v2704
      %v2772 = vpop.f32.mrb[0].mxu0
      %v2773 = vadd.f32 %v2701, %v2772
      %v2774 = vpop.f32.mrb[0].mxu0
      %2775 = vdwg.mxu0
      %v2776 = vmul.f32 %v2773, 0.5
      %v2777 = vmul.f32 %v2773, 0.044715
      %v2778 = vmul.f32 %v2777, %v2773
      %v2779 = vmul.f32 %v2778, %v2773
      %v2780 = vadd.f32 %v2773, %v2779
      %v2781 = vmul.f32 %v2780, 0.7978846
      %v2782 = vtanh.pop %v2781
      %v2783 = vadd.f32 %v2782, 1.0
      %v2784 = vmul.f32 %v2776, %v2783
      %s2785 = scalar_lea.vmem %s14, 128
      %v2786 = vld [vmem:[%s2785] sm:$0xff]
      %v2787 = vld [vmem:[%s2785 + $0x8] sm:$0xff]
      %v2788 = vld [vmem:[%s2785 + $0x10] sm:$0xff]
      %v2789 = vld [vmem:[%s2785 + $0x18] sm:$0xff]
      %v2790 = vld [vmem:[%s2785 + $0x20] sm:$0xff]
      %v2791 = vld [vmem:[%s2785 + $0x28] sm:$0xff]
      %v2792 = vld [vmem:[%s2785 + $0x30] sm:$0xff]
      %v2793 = vld [vmem:[%s2785 + $0x38] sm:$0xff]
      %v2794 = vld [vmem:[%s2785 + $0x40] sm:$0xff]
      %v2795 = vld [vmem:[%s2785 + $0x48] sm:$0xff]
      %v2796 = vld [vmem:[%s2785 + $0x50] sm:$0xff]
      %v2797 = vld [vmem:[%s2785 + $0x58] sm:$0xff]
      %v2798 = vld [vmem:[%s2785 + $0x60] sm:$0xff]
      %v2799 = vld [vmem:[%s2785 + $0x68] sm:$0xff]
      %v2800 = vld [vmem:[%s2785 + $0x70] sm:$0xff]
      %v2801 = vld [vmem:[%s2785 + $0x78] sm:$0xff]
      %s2802 = scalar_lea.vmem %s15, 1
      %v2803 = vld [vmem:[%s2802] sm:$0x1]
      %v2805 = vlaneseq
      %v2806 = vshrl.u32 %v2805, 7
      %v2807 = vsub.s32 0, %v2806
      %v2808 = vrot.slane %v2803, %v2807
      %2810 = vmatprep.subr.mxu0 0.0
      %2811 = vmatpush1.msra.mxu0 %v2786
      %2812 = vmatprep.subr.mxu0 0.0
      %2813 = vmatpush1.msra.mxu0 %v2787
      %2814 = vmatprep.subr.mxu0 0.0
      %2815 = vmatpush1.msra.mxu0 %v2788
      %2816 = vmatprep.subr.mxu0 0.0
      %2817 = vmatpush1.msra.mxu0 %v2789
      %2818 = vmatprep.subr.mxu0 0.0
      %2819 = vmatpush1.msra.mxu0 %v2790
      %2820 = vmatprep.subr.mxu0 0.0
      %2821 = vmatpush1.msra.mxu0 %v2791
      %2822 = vmatprep.subr.mxu0 0.0
      %2823 = vmatpush1.msra.mxu0 %v2792
      %2824 = vmatprep.subr.mxu0 0.0
      %2825 = vmatpush1.msra.mxu0 %v2793
      %2826 = vmatprep.subr.mxu0 0.0
      %2827 = vmatpush1.msra.mxu0 %v2794
      %2828 = vmatprep.subr.mxu0 0.0
      %2829 = vmatpush1.msra.mxu0 %v2795
      %2830 = vmatprep.subr.mxu0 0.0
      %2831 = vmatpush1.msra.mxu0 %v2796
      %2832 = vmatprep.subr.mxu0 0.0
      %2833 = vmatpush1.msra.mxu0 %v2797
      %2834 = vmatprep.subr.mxu0 0.0
      %2835 = vmatpush1.msra.mxu0 %v2798
      %2836 = vmatprep.subr.mxu0 0.0
      %2837 = vmatpush1.msra.mxu0 %v2799
      %2838 = vmatprep.subr.mxu0 0.0
      %2839 = vmatpush1.msra.mxu0 %v2800
      %2840 = vmatprep.subr.mxu0 0.0
      %2841 = vmatpush1.msra.mxu0 %v2801
      %2842 = vmatprep.subr.mxu0 0.0
      %2843 = vmatpush1.msra.mxu0 0.0
      %2844 = vmatprep.subr.mxu0 0.0
      %2845 = vmatpush1.msra.mxu0 0.0
      %2846 = vmatprep.subr.mxu0 0.0
      %2847 = vmatpush1.msra.mxu0 0.0
      %2848 = vmatprep.subr.mxu0 0.0
      %2849 = vmatpush1.msra.mxu0 0.0
      %2850 = vmatprep.subr.mxu0 0.0
      %2851 = vmatpush1.msra.mxu0 0.0
      %2852 = vmatprep.subr.mxu0 0.0
      %2853 = vmatpush1.msra.mxu0 0.0
      %2854 = vmatprep.subr.mxu0 0.0
      %2855 = vmatpush1.msra.mxu0 0.0
      %2856 = vmatprep.subr.mxu0 0.0
      %2857 = vmatpush1.msra.mxu0 0.0
      %2858 = vmatprep.subr.mxu0 0.0
      %2859 = vmatpush1.msra.mxu0 0.0
      %2860 = vmatprep.subr.mxu0 0.0
      %2861 = vmatpush1.msra.mxu0 0.0
      %2862 = vmatprep.subr.mxu0 0.0
      %2863 = vmatpush1.msra.mxu0 0.0
      %2864 = vmatprep.subr.mxu0 0.0
      %2865 = vmatpush1.msra.mxu0 0.0
      %2866 = vmatprep.subr.mxu0 0.0
      %2867 = vmatpush1.msra.mxu0 0.0
      %2868 = vmatprep.subr.mxu0 0.0
      %2869 = vmatpush1.msra.mxu0 0.0
      %2870 = vmatprep.subr.mxu0 0.0
      %2871 = vmatpush1.msra.mxu0 0.0
      %2872 = vmatprep.subr.mxu0 0.0
      %2873 = vmatpush1.msra.mxu0 0.0
      %2874 = vmatprep.mubr.f32.mxu0 0.0
      %2875 = vmatmul.mubr.f32.gmra.mrb[0].mxu0 %v2784
      %v2876 = vpop.f32.mrb[0].mxu0
      %v2877 = vadd.f32 %v2808, %v2876
      %v2878 = vpop.f32.mrb[0].mxu0
      %2879 = vdwg.mxu0
      %v2880 = vadd.f32 %v2658, %v2877
      %v2881 = vld [vmem:[%s16] sm:$0x1]
      %v2882 = vld [vmem:[%s17] sm:$0x1]
      %v2883 = vsel %vm682, %v2880, 0.0
      %2884 = vadd.xlane.f32.xlu0 %v2883
      %v2885 = vpop.xlane.xlu0 %2884
      %v2886 = vmul.f32 %v2885, %v686
      %v2887 = vsub.f32 %v2880, %v2886
      %v2888 = vmul.f32 %v2887, %v2887
      %v2889 = vsel %vm682, %v2888, 0.0
      %2890 = vadd.xlane.f32.xlu0 %v2889
      %v2891 = vpop.xlane.xlu0 %2890
      %v2892 = vmul.f32 %v2891, %v686
      %v2893 = vadd.f32 %v2892, 1e-05
      %v2894 = vrsqrt.pop %v2893
      %v2895 = vmul.f32 %v2887, %v2894
      %v2897 = vlaneseq
      %v2898 = vshrl.u32 %v2897, 7
      %v2899 = vsub.s32 0, %v2898
      %v2900 = vrot.slane %v2881, %v2899
      %v2902 = vmul.f32 %v2895, %v2900
      %v2904 = vlaneseq
      %v2905 = vshrl.u32 %v2904, 7
      %v2906 = vsub.s32 0, %v2905
      %v2907 = vrot.slane %v2882, %v2906
      %v2909 = vadd.f32 %v2902, %v2907
      %2910 = vst.msk [vmem:[%s587] sm:$0xff] %vm682, %v2909
      %p2911 = scmp.lt.s32.totalorder %s29, 1
      %s2912 = scalar_select %p2911, %s29, 1
      %s2913 = smul.addr %s2912, 8
      %s2914 = scalar_lea.vmem %s18, %s2913
      // Predicated region
      $region93: #{context_encoder_forward.1} parent=91 // pred_check
        %p2915 = pneg %p435
      $region94: #{context_encoder_forward.1} parent=91 // pred_check_branch
        %2917 = sbr.rel (%p2915) target = $region96
      $region95: #{context_encoder_forward.1} parent=91 // pred_region
        _
      $region96: #{context_encoder_forward.1} parent=91 // pred_fallthru
        _
    $region92: #{context_encoder_forward.1} parent=5 // pred_fallthru
      _
    %p2918 = scmp.le.s32.totalorder 2, %s24
    // Predicated region
    $region97: #{context_encoder_forward.1} parent=5 // pred_check
      %p2919 = pneg %p2918
    $region98: #{context_encoder_forward.1} parent=5 // pred_check_branch
      %2921 = sbr.rel (%p2919) target = $region100
    $region99: #{context_encoder_forward.1} parent=5 // pred_region
      %s2922 = ssub.s32 %s24, 2
      // Predicated region
      $region101: #{context_encoder_forward.1} parent=99 // pred_check
        %p2923 = pneg %p441
      $region102: #{context_encoder_forward.1} parent=99 // pred_check_branch
        %2925 = sbr.rel (%p2923) target = $region104
      $region103: #{context_encoder_forward.1} parent=99 // pred_region
        %p2926 = scmp.lt.s32.totalorder %s30, 1
        %s2927 = scalar_select %p2926, %s30, 1
        %s2928 = smul.addr %s2927, 8
        %s2929 = scalar_lea.vmem %s18, %s2928
      $region104: #{context_encoder_forward.1} parent=99 // pred_fallthru
        _
    $region100: #{context_encoder_forward.1} parent=5 // pred_fallthru
      _
  $region6: #{context_encoder_forward.1} parent=0 // loop_footer
    %s28 = sadd.s32 1, %s24
  $region7: #{context_encoder_forward.1} parent=0 // loop_footer_branch
    %23 = sbr.rel target = $region3
  $region8: #{context_encoder_forward.1} parent=0 // loop_exit
    _

</llo_original>
